<compile_context>
chip_gen: v6e
topology: v6e:2x2x1
jax: 0.10.0
libtpu: 0.0.40
codegen_flags: <defaults>
</compile_context>

<pallas_src>
import math
import functools

import jax
import jax.numpy as jnp
from jax import lax
from jax.experimental import pallas as pl
from jax.experimental.pallas import tpu as pltpu

F32 = jnp.float32
BF16 = jnp.bfloat16

# ---- model hyper-parameters (small, structure-preserving) -------------------
B = 2            # batch
C_IN = 3         # image channels
IMG = 16         # image H = W
PATCH = 8        # conv kernel == stride
NP = (IMG // PATCH) ** 2          # patches per image
N_POS = NP + 1                    # +1 class token
SEQ = 8          # text sequence length
VOCAB = 50
MAX_POS = 16
D_I = 256        # "1024"  image / bridge dim   (multiple of 128)
D_L = 128        # "768"   text dim             (multiple of 128)
N_HEADS = 2      # "8"     heads  -> head_dim = 128, same as real scale
D_FFN = 512      # "4096"
N_LAYERS = 2     # cnt_layer
N_CLASSES = 5
CLS_PAD = 128    # classifier output padded to a lane-dense 128, sliced in glue


# =============================== Pallas kernel ===============================

def vl_fused_kernel(patch_ref, ipos_ref, wsum_ref, mask_ref,
                    wpatch_ref, vg_ref, vb_ref, tg_ref, tb_ref, l2i_ref,
                    wq_ref, bq_ref, wkv_ref, bkv_ref, wo_ref, bo_ref,
                    w1_ref, w2_ref, g_ref, b_ref,
                    pw_ref, pb_ref, cw_ref, cb_ref,
                    hid_ref, logit_ref,
                    kv_vmem,
                    *, batch, num_heads, eps_img, eps_txt, eps_ffn):
    """Entire VL_encoders forward.  grid = (n_layers,); hid_ref is the carry."""
    l = pl.program_id(0)
    last = pl.num_programs(0) - 1
    M, D = hid_ref.shape                 # M = B * NQ flattened query rows
    nq = M // batch
    dh = D // num_heads

    def layernorm(t, g, b, eps):
        mu = jnp.mean(t, axis=-1, keepdims=True)
        var = jnp.mean((t - mu) ** 2, axis=-1, keepdims=True)
        return (t - mu) * lax.rsqrt(var + eps) * g + b

    # ---- embeddings: computed once, at layer 0 ------------------------------
    @pl.when(l == 0)
    def _embed():
        # Vision: patch conv as one (B*NQ, K) x (K, D) matmul.  The cls row is
        # a zero patch row and the class embedding is pre-folded into position
        # row 0, so one LN + one lane-dense store covers the whole tile.
        pe = jnp.dot(patch_ref[...].astype(BF16), wpatch_ref[...],
                     preferred_element_type=jnp.float32)              # (M, D)
        hid_ref[...] = layernorm(pe + ipos_ref[...],
                                 vg_ref[...], vb_ref[...], eps_img)

        # Text: LN(word+pos+type) then L_toI projection, kept resident in VMEM
        # as bf16 for all layers (halves VMEM bytes, no per-layer cast).
        tn = layernorm(wsum_ref[...], tg_ref[...], tb_ref[...], eps_txt)
        kv_vmem[...] = jnp.dot(tn.astype(BF16), l2i_ref[...],
                               preferred_element_type=jnp.float32).astype(BF16)

    # ---- encoder layer l (whole batch, flattened rows) -----------------------
    x = hid_ref[...].astype(BF16)                         # (B*NQ, D)
    kv = kv_vmem[...]                                     # (B*NK, D) bf16

    # 1/sqrt(dh) is folded into wq / bq at pack time.
    q = jnp.dot(x, wq_ref[0], preferred_element_type=jnp.float32) + bq_ref[0]
    kvp = jnp.dot(kv, wkv_ref[0], preferred_element_type=jnp.float32) + bkv_ref[0]
    k = kvp[:, :D]
    v = kvp[:, D:]

    # Attention: per-head 2-D matmuls on lane-aligned slices (dh = 128); the
    # additive mask is block-diagonal over the batch + key padding, so no
    # 3-D reshapes / stacks / concats are needed.  Out-projection is
    # accumulated per head (attn = sum_h ctx_h @ wo[h*dh:(h+1)*dh, :]).
    mask = mask_ref[...]                                  # (B*NQ, B*NK)
    acc = None
    for h in range(num_heads):                            # unrolled (tiny H)
        lo = h * dh
        qh = q[:, lo:lo + dh].astype(BF16)
        kh = k[:, lo:lo + dh].astype(BF16)
        vh = v[:, lo:lo + dh].astype(BF16)
        s = jnp.einsum('qd,kd->qk', qh, kh,
                       preferred_element_type=jnp.float32) + mask
        m = jnp.max(s, axis=-1, keepdims=True)
        e = jnp.exp(s - m)
        p = e * pl.reciprocal(jnp.sum(e, axis=-1, keepdims=True), approx=True)
        ctx = jnp.dot(p.astype(BF16), vh, preferred_element_type=jnp.float32)
        part = jnp.dot(ctx.astype(BF16), wo_ref[0, lo:lo + dh, :],
                       preferred_element_type=jnp.float32)
        acc = part if acc is None else acc + part
    attn = acc + bo_ref[0]                                # (B*NQ, D) f32

    # FeedForwardNet: LN(W2 @ relu(W1 @ attn) + attn)
    hff = jnp.maximum(jnp.dot(attn.astype(BF16), w1_ref[0],
                              preferred_element_type=jnp.float32), 0.0)
    y = jnp.dot(hff.astype(BF16), w2_ref[0],
                preferred_element_type=jnp.float32) + attn
    out = layernorm(y, g_ref[0], b_ref[0], eps_ffn)
    hid_ref[...] = out

    # ---- pooler + classifier: only on the final layer ------------------------
    @pl.when(l == last)
    def _head():
        cls_tok = jnp.concatenate(
            [out[b * nq:b * nq + 1, :] for b in range(batch)], axis=0)  # (B, D)
        pooled = jnp.tanh(jnp.dot(cls_tok.astype(BF16), pw_ref[...],
                                  preferred_element_type=jnp.float32)
                          + pb_ref[...])
        logit_ref[...] = (jnp.dot(pooled.astype(BF16), cw_ref[...],
                                  preferred_element_type=jnp.float32)
                          + cb_ref[...])


# =============================== wrapper =====================================

def fused_forward(patches2d, ipos_tiled, wsum2d, mask_full, pp, batch):
    M, K = patches2d.shape
    D = ipos_tiled.shape[1]
    Mk, DL = wsum2d.shape
    L = pp["wq"].shape[0]
    F_ = pp["w1"].shape[2]

    kernel = functools.partial(vl_fused_kernel, batch=batch, num_heads=N_HEADS,
                               eps_img=1e-5, eps_txt=1e-12, eps_ffn=1e-5)

    def cspec(shape):            # constant block: fetched once (index never changes)
        return pl.BlockSpec(shape, lambda l: (0, 0))

    def lspec(r, c):             # per-layer stacked weight, indexed by the layer axis
        return pl.BlockSpec((1, r, c), lambda l: (l, 0, 0))

    hidden2d, logits_pad = pl.pallas_call(
        kernel,
        out_shape=(jax.ShapeDtypeStruct((M, D), F32),
                   jax.ShapeDtypeStruct((batch, CLS_PAD), F32)),
        grid=(L,),
        in_specs=[
            cspec((M, K)),          # patch rows (zero cls row folded in)
            cspec((M, D)),          # tiled position embeddings (+cls in row 0)
            cspec((Mk, DL)),        # word + pos + type embeddings
            cspec((M, Mk)),         # additive block-diagonal key-padding mask
            cspec((K, D)),          # patch conv weight (bf16)
            cspec((1, D)), cspec((1, D)),      # vision pre-LN gamma / beta
            cspec((1, DL)), cspec((1, DL)),    # text LN gamma / beta
            cspec((DL, D)),         # L_toI weight (bf16)
            lspec(D, D),            # wq (1/sqrt(dh) folded)
            lspec(1, D),            # bq
            lspec(D, 2 * D),        # wkv packed
            lspec(1, 2 * D),        # bkv packed
            lspec(D, D),            # wo
            lspec(1, D),            # bo
            lspec(D, F_),           # ffn w1
            lspec(F_, D),           # ffn w2
            lspec(1, D),            # ffn ln gamma
            lspec(1, D),            # ffn ln beta
            cspec((D, D)),          # pooler w
            cspec((1, D)),          # pooler b
            cspec((D, CLS_PAD)),    # classifier w (lane padded)
            cspec((1, CLS_PAD)),    # classifier b (lane padded)
        ],
        out_specs=(pl.BlockSpec((M, D), lambda l: (0, 0)),
                   pl.BlockSpec((batch, CLS_PAD), lambda l: (0, 0))),
        scratch_shapes=[pltpu.VMEM((Mk, D), BF16)],       # projected text (kv)
        compiler_params=pltpu.CompilerParams(
            dimension_semantics=("arbitrary",)),
    )(patches2d, ipos_tiled, wsum2d, mask_full,
      pp["w_patch"], pp["pre_ln_g"], pp["pre_ln_b"],
      pp["txt_ln_g"], pp["txt_ln_b"], pp["l2i_w"],
      pp["wq"], pp["bq"], pp["wkv"], pp["bkv"], pp["wo"], pp["bo"],
      pp["w1"], pp["w2"], pp["ln_g"], pp["ln_b"],
      pp["pooler_w"], pp["pooler_b"], pp["cls_w"], pp["cls_b"])
    return hidden2d, logits_pad


# =============================== full forward ================================

def vl_encoders_forward(params, img, token_ids, atten_mask):
    Bq, C, H, W = img.shape
    gh, gw = H // PATCH, W // PATCH
    n_patch = gh * gw
    nq = n_patch + 1
    S = token_ids.shape[1]

    # Patch extraction + leading zero "cls" row per image (pure layout glue;
    # the conv itself is the in-kernel matmul).
    patch_rows = (img.reshape(Bq, C, gh, PATCH, gw, PATCH)
                     .transpose(0, 2, 4, 1, 3, 5)
                     .reshape(Bq, n_patch, C * PATCH * PATCH))
    patches2d = jnp.pad(patch_rows, ((0, 0), (1, 0), (0, 0))).reshape(
        Bq * nq, C * PATCH * PATCH)

    # Position embeddings with the class embedding folded into row 0, tiled
    # over the batch so the kernel works on flattened (B*NQ, D) rows.
    ipos_tiled = jnp.tile(params["img_pos_cls"], (Bq, 1))

    # TODO(synk): the embedding-table gather is data-dependent row indexing and
    # stays in plain JAX (it fuses with the pos/type adds into one XLA op).
    word_sum = (params["word_emb"][token_ids]
                + params["txt_pos"][:S][None]
                + params["type_emb"][0][None, None]).reshape(Bq * S, D_L)

    # Key-padding + cross-batch block-diagonal additive bias, computed once.
    key_ok = (atten_mask > 0)[None, :, :] & jnp.eye(Bq, dtype=bool)[:, :, None]
    mask_full = jnp.where(key_ok, 0.0, -1e30).astype(F32)          # (Bq, Bq, S)
    mask_full = jnp.broadcast_to(mask_full[:, None, :, :], (Bq, nq, Bq, S))
    mask_full = mask_full.reshape(Bq * nq, Bq * S)

    hidden2d, logits_pad = fused_forward(patches2d, ipos_tiled, word_sum,
                                         mask_full, params, Bq)
    hidden = hidden2d.reshape(Bq, nq, -1)
    logits = logits_pad[:, :N_CLASSES]
    return hidden, logits


# =============================== parameters ==================================

def init_params(key):
    """Parameters in PyTorch layout (Linear weight = (out, in), etc.)."""
    keys = jax.random.split(key, 10)

    def nrm(k, shape, s=0.02):
        return jax.random.normal(k, shape, F32) * s

    params = dict(
        patch_w=nrm(keys[0], (D_I, C_IN, PATCH, PATCH)),
        cls_embed=nrm(keys[1], (D_I,)),
        img_pos=nrm(keys[2], (N_POS, D_I)),
        pre_ln_g=jnp.ones((D_I,), F32), pre_ln_b=jnp.zeros((D_I,), F32),
        word_emb=nrm(keys[3], (VOCAB, D_L)),
        txt_pos=nrm(keys[4], (MAX_POS, D_L)),
        type_emb=nrm(keys[5], (2, D_L)),
        txt_ln_g=jnp.ones((D_L,), F32), txt_ln_b=jnp.zeros((D_L,), F32),
        l2i_w=nrm(keys[6], (D_I, D_L)),                  # torch Linear(768,1024)
        pooler_w=nrm(keys[7], (D_I, D_I)), pooler_b=jnp.zeros((D_I,), F32),
        cls_w=nrm(keys[8], (N_CLASSES, D_I)), cls_b=jnp.zeros((N_CLASSES,), F32),
    )
    layers = []
    for lk in jax.random.split(keys[9], N_LAYERS):
        k = jax.random.split(lk, 4)
        layers.append(dict(
            in_proj_w=nrm(k[0], (3 * D_I, D_I)), in_proj_b=jnp.zeros((3 * D_I,), F32),
            out_proj_w=nrm(k[1], (D_I, D_I)), out_proj_b=jnp.zeros((D_I,), F32),
            ffn_w1=nrm(k[2], (D_FFN, D_I)), ffn_w2=nrm(k[3], (D_I, D_FFN)),
            ffn_ln_g=jnp.ones((D_I,), F32), ffn_ln_b=jnp.zeros((D_I,), F32)))
    params["layers"] = layers
    return params


def pack_params(p):
    """One-time pre-pack: transpose, fuse KV, fold attention scale, fold the cls
    embedding into position row 0, stack layers, cast matmul weights to bf16,
    pad the classifier to a lane-dense 128."""
    D = D_I
    dh = D // N_HEADS
    scale = 1.0 / math.sqrt(dh)

    def stack(fn):
        return jnp.stack([fn(lp) for lp in p["layers"]], axis=0)

    return dict(
        # vision path
        w_patch=p["patch_w"].reshape(D, C_IN * PATCH * PATCH).T.astype(BF16),
        img_pos_cls=p["img_pos"].at[0].add(p["cls_embed"]),       # cls folded in
        pre_ln_g=p["pre_ln_g"].reshape(1, D), pre_ln_b=p["pre_ln_b"].reshape(1, D),
        # text path
        word_emb=p["word_emb"], txt_pos=p["txt_pos"], type_emb=p["type_emb"],
        txt_ln_g=p["txt_ln_g"].reshape(1, D_L), txt_ln_b=p["txt_ln_b"].reshape(1, D_L),
        l2i_w=p["l2i_w"].T.astype(BF16),
        # stacked encoder-layer weights (layer axis first)
        wq=stack(lambda lp: lp["in_proj_w"][:D].T * scale).astype(BF16),
        bq=stack(lambda lp: (lp["in_proj_b"][:D] * scale).reshape(1, D)),
        wkv=stack(lambda lp: lp["in_proj_w"][D:].T).astype(BF16),        # (D, 2D)
        bkv=stack(lambda lp: lp["in_proj_b"][D:].reshape(1, 2 * D)),
        wo=stack(lambda lp: lp["out_proj_w"].T).astype(BF16),
        bo=stack(lambda lp: lp["out_proj_b"].reshape(1, D)),
        w1=stack(lambda lp: lp["ffn_w1"].T).astype(BF16),
        w2=stack(lambda lp: lp["ffn_w2"].T).astype(BF16),
        ln_g=stack(lambda lp: lp["ffn_ln_g"].reshape(1, D)),
        ln_b=stack(lambda lp: lp["ffn_ln_b"].reshape(1, D)),
        # pooler + lane-padded classifier
        pooler_w=p["pooler_w"].T.astype(BF16),
        pooler_b=p["pooler_b"].reshape(1, D),
        cls_w=jnp.zeros((D, CLS_PAD), F32).at[:, :N_CLASSES].set(p["cls_w"].T).astype(BF16),
        cls_b=jnp.zeros((1, CLS_PAD), F32).at[:, :N_CLASSES].set(p["cls_b"][None, :]),
    )


# =============================== main ========================================

if __name__ == "__main__":
    key = jax.random.PRNGKey(0)
    k_img, k_tok, k_par = jax.random.split(key, 3)

    img = jax.random.normal(k_img, (B, C_IN, IMG, IMG), F32)
    token_ids = jax.random.randint(k_tok, (B, SEQ), 0, VOCAB)
    atten_mask = jnp.array([[1.0] * SEQ,
                            [1.0] * (SEQ - 3) + [0.0] * 3], dtype=F32)

    params = pack_params(init_params(k_par))

    fwd = jax.jit(vl_encoders_forward)
    hidden_state, logits = fwd(params, img, token_ids, atten_mask)
    jax.block_until_ready((hidden_state, logits))

    assert hidden_state.shape == (B, N_POS, D_I)
    assert logits.shape == (B, N_CLASSES)
    print("KERNEL_OK")
</pallas_src>

<mosaic_0001>
module attributes {stable_mosaic.version = 11 : i64} {
  func.func @vl_fused_kernel(%arg0: i32, %arg1: memref<10x192xf32, #tpu.memory_space<vmem>>, %arg2: memref<10x256xf32, #tpu.memory_space<vmem>>, %arg3: memref<16x128xf32, #tpu.memory_space<vmem>>, %arg4: memref<10x16xf32, #tpu.memory_space<vmem>>, %arg5: memref<192x256xbf16, #tpu.memory_space<vmem>>, %arg6: memref<1x256xf32, #tpu.memory_space<vmem>>, %arg7: memref<1x256xf32, #tpu.memory_space<vmem>>, %arg8: memref<1x128xf32, #tpu.memory_space<vmem>>, %arg9: memref<1x128xf32, #tpu.memory_space<vmem>>, %arg10: memref<128x256xbf16, #tpu.memory_space<vmem>>, %arg11: memref<1x256x256xbf16, #tpu.memory_space<vmem>>, %arg12: memref<1x1x256xf32, #tpu.memory_space<vmem>>, %arg13: memref<1x256x512xbf16, #tpu.memory_space<vmem>>, %arg14: memref<1x1x512xf32, #tpu.memory_space<vmem>>, %arg15: memref<1x256x256xbf16, #tpu.memory_space<vmem>>, %arg16: memref<1x1x256xf32, #tpu.memory_space<vmem>>, %arg17: memref<1x256x512xbf16, #tpu.memory_space<vmem>>, %arg18: memref<1x512x256xbf16, #tpu.memory_space<vmem>>, %arg19: memref<1x1x256xf32, #tpu.memory_space<vmem>>, %arg20: memref<1x1x256xf32, #tpu.memory_space<vmem>>, %arg21: memref<256x256xbf16, #tpu.memory_space<vmem>>, %arg22: memref<1x256xf32, #tpu.memory_space<vmem>>, %arg23: memref<256x128xbf16, #tpu.memory_space<vmem>>, %arg24: memref<1x128xf32, #tpu.memory_space<vmem>>, %arg25: memref<10x256xf32, #tpu.memory_space<vmem>>, %arg26: memref<2x128xf32, #tpu.memory_space<vmem>>, %arg27: memref<16x256xbf16, #tpu.memory_space<vmem>>) attributes {dimension_semantics = [#tpu.dimension_semantics<arbitrary>], iteration_bounds = array<i64: 2>, scalar_prefetch = 0 : i64, scratch_operands = 1 : i64, tpu.core_type = #tpu.core_type<tc>, window_params = [{pipeline_mode = #tpu.pipeline_mode<synchronous>, transform_indices = @transform_0, window_bounds = array<i64: 10, 192>}, {pipeline_mode = #tpu.pipeline_mode<synchronous>, transform_indices = @transform_1, window_bounds = array<i64: 10, 256>}, {pipeline_mode = #tpu.pipeline_mode<synchronous>, transform_indices = @transform_2, window_bounds = array<i64: 16, 128>}, {pipeline_mode = #tpu.pipeline_mode<synchronous>, transform_indices = @transform_3, window_bounds = array<i64: 10, 16>}, {pipeline_mode = #tpu.pipeline_mode<synchronous>, transform_indices = @transform_4, window_bounds = array<i64: 192, 256>}, {pipeline_mode = #tpu.pipeline_mode<synchronous>, transform_indices = @transform_5, window_bounds = array<i64: 1, 256>}, {pipeline_mode = #tpu.pipeline_mode<synchronous>, transform_indices = @transform_6, window_bounds = array<i64: 1, 256>}, {pipeline_mode = #tpu.pipeline_mode<synchronous>, transform_indices = @transform_7, window_bounds = array<i64: 1, 128>}, {pipeline_mode = #tpu.pipeline_mode<synchronous>, transform_indices = @transform_8, window_bounds = array<i64: 1, 128>}, {pipeline_mode = #tpu.pipeline_mode<synchronous>, transform_indices = @transform_9, window_bounds = array<i64: 128, 256>}, {transform_indices = @transform_10, window_bounds = array<i64: 1, 256, 256>}, {transform_indices = @transform_11, window_bounds = array<i64: 1, 1, 256>}, {transform_indices = @transform_12, window_bounds = array<i64: 1, 256, 512>}, {transform_indices = @transform_13, window_bounds = array<i64: 1, 1, 512>}, {transform_indices = @transform_14, window_bounds = array<i64: 1, 256, 256>}, {transform_indices = @transform_15, window_bounds = array<i64: 1, 1, 256>}, {transform_indices = @transform_16, window_bounds = array<i64: 1, 256, 512>}, {transform_indices = @transform_17, window_bounds = array<i64: 1, 512, 256>}, {transform_indices = @transform_18, window_bounds = array<i64: 1, 1, 256>}, {transform_indices = @transform_19, window_bounds = array<i64: 1, 1, 256>}, {pipeline_mode = #tpu.pipeline_mode<synchronous>, transform_indices = @transform_20, window_bounds = array<i64: 256, 256>}, {pipeline_mode = #tpu.pipeline_mode<synchronous>, transform_indices = @transform_21, window_bounds = array<i64: 1, 256>}, {pipeline_mode = #tpu.pipeline_mode<synchronous>, transform_indices = @transform_22, window_bounds = array<i64: 256, 128>}, {pipeline_mode = #tpu.pipeline_mode<synchronous>, transform_indices = @transform_23, window_bounds = array<i64: 1, 128>}, {pipeline_mode = #tpu.pipeline_mode<synchronous>, transform_indices = @transform_24, window_bounds = array<i64: 10, 256>}, {pipeline_mode = #tpu.pipeline_mode<synchronous>, transform_indices = @transform_25, window_bounds = array<i64: 2, 128>}]} {
    %c0_i32 = arith.constant 0 : i32
    %0 = arith.cmpi eq, %arg0, %c0_i32 : i32
    %1 = arith.extui %0 : i1 to i32
    %c0_i32_0 = arith.constant 0 : i32
    %2 = arith.cmpi ne, %1, %c0_i32_0 : i32
    scf.if %2 {
      %c0_60 = arith.constant 0 : index
      %c0_61 = arith.constant 0 : index
      %117 = vector.load %arg1[%c0_60, %c0_61] : memref<10x192xf32, #tpu.memory_space<vmem>>, vector<10x192xf32>
      %118 = arith.truncf %117 : vector<10x192xf32> to vector<10x192xbf16>
      %c0_62 = arith.constant 0 : index
      %c0_63 = arith.constant 0 : index
      %119 = vector.load %arg5[%c0_62, %c0_63] : memref<192x256xbf16, #tpu.memory_space<vmem>>, vector<192x256xbf16>
      %cst_64 = arith.constant dense<0.000000e+00> : vector<10x256xf32>
      %120 = tpu.matmul %118, %119, %cst_64 {dimension_numbers = #tpu.dot_dimension_numbers<[1], [0], [0], [1], [0, 0, 1, 1], [], []>} : vector<10x192xbf16>, vector<192x256xbf16>, vector<10x256xf32> -> vector<10x256xf32>
      %c0_65 = arith.constant 0 : index
      %c0_66 = arith.constant 0 : index
      %121 = vector.load %arg2[%c0_65, %c0_66] : memref<10x256xf32, #tpu.memory_space<vmem>>, vector<10x256xf32>
      %122 = arith.addf %120, %121 : vector<10x256xf32>
      %c0_67 = arith.constant 0 : index
      %c0_68 = arith.constant 0 : index
      %123 = vector.load %arg6[%c0_67, %c0_68] : memref<1x256xf32, #tpu.memory_space<vmem>>, vector<1x256xf32>
      %c0_69 = arith.constant 0 : index
      %c0_70 = arith.constant 0 : index
      %124 = vector.load %arg7[%c0_69, %c0_70] : memref<1x256xf32, #tpu.memory_space<vmem>>, vector<1x256xf32>
      %cst_71 = arith.constant dense<0.000000e+00> : vector<10xf32>
      %125 = vector.multi_reduction <add>, %122, %cst_71 [1] : vector<10x256xf32> to vector<10xf32>
      %126 = vector.shape_cast %125 : vector<10xf32> to vector<10x1xf32>
      %cst_72 = arith.constant 2.560000e+02 : f32
      %127 = vector.broadcast %cst_72 : f32 to vector<10x1xf32>
      %128 = arith.divf %126, %127 : vector<10x1xf32>
      %129 = vector.broadcast %128 : vector<10x1xf32> to vector<10x256xf32>
      %130 = arith.subf %122, %129 : vector<10x256xf32>
      %131 = arith.mulf %130, %130 : vector<10x256xf32>
      %cst_73 = arith.constant dense<0.000000e+00> : vector<10xf32>
      %132 = vector.multi_reduction <add>, %131, %cst_73 [1] : vector<10x256xf32> to vector<10xf32>
      %133 = vector.shape_cast %132 : vector<10xf32> to vector<10x1xf32>
      %cst_74 = arith.constant 2.560000e+02 : f32
      %134 = vector.broadcast %cst_74 : f32 to vector<10x1xf32>
      %135 = arith.divf %133, %134 : vector<10x1xf32>
      %136 = vector.broadcast %128 : vector<10x1xf32> to vector<10x256xf32>
      %137 = arith.subf %122, %136 : vector<10x256xf32>
      %cst_75 = arith.constant 9.99999974E-6 : f32
      %138 = vector.broadcast %cst_75 : f32 to vector<10x1xf32>
      %139 = arith.addf %135, %138 : vector<10x1xf32>
      %140 = math.rsqrt %139 : vector<10x1xf32>
      %141 = vector.broadcast %140 : vector<10x1xf32> to vector<10x256xf32>
      %142 = arith.mulf %137, %141 : vector<10x256xf32>
      %143 = vector.broadcast %123 : vector<1x256xf32> to vector<10x256xf32>
      %144 = arith.mulf %142, %143 : vector<10x256xf32>
      %145 = vector.broadcast %124 : vector<1x256xf32> to vector<10x256xf32>
      %146 = arith.addf %144, %145 : vector<10x256xf32>
      %c0_76 = arith.constant 0 : index
      %c0_77 = arith.constant 0 : index
      %147 = vector.load %arg25[%c0_76, %c0_77] : memref<10x256xf32, #tpu.memory_space<vmem>>, vector<10x256xf32>
      tpu.vector_store %arg25[%c0_76, %c0_77], %146 {strides = array<i32>} : memref<10x256xf32, #tpu.memory_space<vmem>>, vector<10x256xf32>,
      %c0_78 = arith.constant 0 : index
      %c0_79 = arith.constant 0 : index
      %148 = vector.load %arg3[%c0_78, %c0_79] : memref<16x128xf32, #tpu.memory_space<vmem>>, vector<16x128xf32>
      %c0_80 = arith.constant 0 : index
      %c0_81 = arith.constant 0 : index
      %149 = vector.load %arg8[%c0_80, %c0_81] : memref<1x128xf32, #tpu.memory_space<vmem>>, vector<1x128xf32>
      %c0_82 = arith.constant 0 : index
      %c0_83 = arith.constant 0 : index
      %150 = vector.load %arg9[%c0_82, %c0_83] : memref<1x128xf32, #tpu.memory_space<vmem>>, vector<1x128xf32>
      %cst_84 = arith.constant dense<0.000000e+00> : vector<16xf32>
      %151 = vector.multi_reduction <add>, %148, %cst_84 [1] : vector<16x128xf32> to vector<16xf32>
      %152 = vector.shape_cast %151 : vector<16xf32> to vector<16x1xf32>
      %cst_85 = arith.constant 1.280000e+02 : f32
      %153 = vector.broadcast %cst_85 : f32 to vector<16x1xf32>
      %154 = arith.divf %152, %153 : vector<16x1xf32>
      %155 = vector.broadcast %154 : vector<16x1xf32> to vector<16x128xf32>
      %156 = arith.subf %148, %155 : vector<16x128xf32>
      %157 = arith.mulf %156, %156 : vector<16x128xf32>
      %cst_86 = arith.constant dense<0.000000e+00> : vector<16xf32>
      %158 = vector.multi_reduction <add>, %157, %cst_86 [1] : vector<16x128xf32> to vector<16xf32>
      %159 = vector.shape_cast %158 : vector<16xf32> to vector<16x1xf32>
      %cst_87 = arith.constant 1.280000e+02 : f32
      %160 = vector.broadcast %cst_87 : f32 to vector<16x1xf32>
      %161 = arith.divf %159, %160 : vector<16x1xf32>
      %162 = vector.broadcast %154 : vector<16x1xf32> to vector<16x128xf32>
      %163 = arith.subf %148, %162 : vector<16x128xf32>
      %cst_88 = arith.constant 9.99999996E-13 : f32
      %164 = vector.broadcast %cst_88 : f32 to vector<16x1xf32>
      %165 = arith.addf %161, %164 : vector<16x1xf32>
      %166 = math.rsqrt %165 : vector<16x1xf32>
      %167 = vector.broadcast %166 : vector<16x1xf32> to vector<16x128xf32>
      %168 = arith.mulf %163, %167 : vector<16x128xf32>
      %169 = vector.broadcast %149 : vector<1x128xf32> to vector<16x128xf32>
      %170 = arith.mulf %168, %169 : vector<16x128xf32>
      %171 = vector.broadcast %150 : vector<1x128xf32> to vector<16x128xf32>
      %172 = arith.addf %170, %171 : vector<16x128xf32>
      %173 = arith.truncf %172 : vector<16x128xf32> to vector<16x128xbf16>
      %c0_89 = arith.constant 0 : index
      %c0_90 = arith.constant 0 : index
      %174 = vector.load %arg10[%c0_89, %c0_90] : memref<128x256xbf16, #tpu.memory_space<vmem>>, vector<128x256xbf16>
      %cst_91 = arith.constant dense<0.000000e+00> : vector<16x256xf32>
      %175 = tpu.matmul %173, %174, %cst_91 {dimension_numbers = #tpu.dot_dimension_numbers<[1], [0], [0], [1], [0, 0, 1, 1], [], []>} : vector<16x128xbf16>, vector<128x256xbf16>, vector<16x256xf32> -> vector<16x256xf32>
      %176 = arith.truncf %175 : vector<16x256xf32> to vector<16x256xbf16>
      %c0_92 = arith.constant 0 : index
      %c0_93 = arith.constant 0 : index
      %177 = vector.load %arg27[%c0_92, %c0_93] : memref<16x256xbf16, #tpu.memory_space<vmem>>, vector<16x256xbf16>
      tpu.vector_store %arg27[%c0_92, %c0_93], %176 {strides = array<i32>} : memref<16x256xbf16, #tpu.memory_space<vmem>>, vector<16x256xbf16>,
    } else {
    }
    %c0 = arith.constant 0 : index
    %c0_1 = arith.constant 0 : index
    %3 = vector.load %arg25[%c0, %c0_1] : memref<10x256xf32, #tpu.memory_space<vmem>>, vector<10x256xf32>
    %4 = arith.truncf %3 : vector<10x256xf32> to vector<10x256xbf16>
    %c0_2 = arith.constant 0 : index
    %c0_3 = arith.constant 0 : index
    %5 = vector.load %arg27[%c0_2, %c0_3] : memref<16x256xbf16, #tpu.memory_space<vmem>>, vector<16x256xbf16>
    %c0_4 = arith.constant 0 : index
    %c0_5 = arith.constant 0 : index
    %c0_6 = arith.constant 0 : index
    %6 = vector.load %arg11[%c0_4, %c0_5, %c0_6] : memref<1x256x256xbf16, #tpu.memory_space<vmem>>, vector<1x256x256xbf16>
    %7 = vector.shape_cast %6 : vector<1x256x256xbf16> to vector<256x256xbf16>
    %cst = arith.constant dense<0.000000e+00> : vector<10x256xf32>
    %8 = tpu.matmul %4, %7, %cst {dimension_numbers = #tpu.dot_dimension_numbers<[1], [0], [0], [1], [0, 0, 1, 1], [], []>} : vector<10x256xbf16>, vector<256x256xbf16>, vector<10x256xf32> -> vector<10x256xf32>
    %c0_7 = arith.constant 0 : index
    %c0_8 = arith.constant 0 : index
    %c0_9 = arith.constant 0 : index
    %9 = vector.load %arg12[%c0_7, %c0_8, %c0_9] : memref<1x1x256xf32, #tpu.memory_space<vmem>>, vector<1x1x256xf32>
    %10 = vector.shape_cast %9 : vector<1x1x256xf32> to vector<1x256xf32>
    %11 = vector.broadcast %10 : vector<1x256xf32> to vector<10x256xf32>
    %12 = arith.addf %8, %11 : vector<10x256xf32>
    %c0_10 = arith.constant 0 : index
    %c0_11 = arith.constant 0 : index
    %c0_12 = arith.constant 0 : index
    %13 = vector.load %arg13[%c0_10, %c0_11, %c0_12] : memref<1x256x512xbf16, #tpu.memory_space<vmem>>, vector<1x256x512xbf16>
    %14 = vector.shape_cast %13 : vector<1x256x512xbf16> to vector<256x512xbf16>
    %cst_13 = arith.constant dense<0.000000e+00> : vector<16x512xf32>
    %15 = tpu.matmul %5, %14, %cst_13 {dimension_numbers = #tpu.dot_dimension_numbers<[1], [0], [0], [1], [0, 0, 1, 1], [], []>} : vector<16x256xbf16>, vector<256x512xbf16>, vector<16x512xf32> -> vector<16x512xf32>
    %c0_14 = arith.constant 0 : index
    %c0_15 = arith.constant 0 : index
    %c0_16 = arith.constant 0 : index
    %16 = vector.load %arg14[%c0_14, %c0_15, %c0_16] : memref<1x1x512xf32, #tpu.memory_space<vmem>>, vector<1x1x512xf32>
    %17 = vector.shape_cast %16 : vector<1x1x512xf32> to vector<1x512xf32>
    %18 = vector.broadcast %17 : vector<1x512xf32> to vector<16x512xf32>
    %19 = arith.addf %15, %18 : vector<16x512xf32>
    %20 = vector.extract_strided_slice %19 {offsets = [0, 0], sizes = [16, 256], strides = [1, 1]} : vector<16x512xf32> to vector<16x256xf32>
    %21 = vector.extract_strided_slice %19 {offsets = [0, 256], sizes = [16, 256], strides = [1, 1]} : vector<16x512xf32> to vector<16x256xf32>
    %c0_17 = arith.constant 0 : index
    %c0_18 = arith.constant 0 : index
    %22 = vector.load %arg4[%c0_17, %c0_18] : memref<10x16xf32, #tpu.memory_space<vmem>>, vector<10x16xf32>
    %23 = vector.extract_strided_slice %12 {offsets = [0, 0], sizes = [10, 128], strides = [1, 1]} : vector<10x256xf32> to vector<10x128xf32>
    %24 = arith.truncf %23 : vector<10x128xf32> to vector<10x128xbf16>
    %25 = vector.extract_strided_slice %20 {offsets = [0, 0], sizes = [16, 128], strides = [1, 1]} : vector<16x256xf32> to vector<16x128xf32>
    %26 = arith.truncf %25 : vector<16x128xf32> to vector<16x128xbf16>
    %27 = vector.extract_strided_slice %21 {offsets = [0, 0], sizes = [16, 128], strides = [1, 1]} : vector<16x256xf32> to vector<16x128xf32>
    %28 = arith.truncf %27 : vector<16x128xf32> to vector<16x128xbf16>
    "tpu.trace_start"() <{level = 10 : i32, message = "qd,kd->qk"}> : () -> ()
    %cst_19 = arith.constant dense<0.000000e+00> : vector<10x16xf32>
    %29 = tpu.matmul %24, %26, %cst_19 {dimension_numbers = #tpu.dot_dimension_numbers<[1], [1], [0], [0], [0, 0, 1, 0], [], []>} : vector<10x128xbf16>, vector<16x128xbf16>, vector<10x16xf32> -> vector<10x16xf32>
    "tpu.trace_stop"() : () -> ()
    %30 = arith.addf %29, %22 : vector<10x16xf32>
    %cst_20 = arith.constant dense<0xFF800000> : vector<10xf32>
    %31 = vector.multi_reduction <maximumf>, %30, %cst_20 [1] : vector<10x16xf32> to vector<10xf32>
    %32 = vector.shape_cast %31 : vector<10xf32> to vector<10x1xf32>
    %33 = vector.broadcast %32 : vector<10x1xf32> to vector<10x16xf32>
    %34 = arith.subf %30, %33 : vector<10x16xf32>
    %35 = math.exp %34 : vector<10x16xf32>
    %cst_21 = arith.constant dense<0.000000e+00> : vector<10xf32>
    %36 = vector.multi_reduction <add>, %35, %cst_21 [1] : vector<10x16xf32> to vector<10xf32>
    %37 = vector.shape_cast %36 : vector<10xf32> to vector<10x1xf32>
    %38 = tpu.reciprocal %37 {approx = true} : vector<10x1xf32> -> vector<10x1xf32>
    %39 = vector.broadcast %38 : vector<10x1xf32> to vector<10x16xf32>
    %40 = arith.mulf %35, %39 : vector<10x16xf32>
    %41 = arith.truncf %40 : vector<10x16xf32> to vector<10x16xbf16>
    %cst_22 = arith.constant dense<0.000000e+00> : vector<10x128xf32>
    %42 = tpu.matmul %41, %28, %cst_22 {dimension_numbers = #tpu.dot_dimension_numbers<[1], [0], [0], [1], [0, 0, 1, 1], [], []>} : vector<10x16xbf16>, vector<16x128xbf16>, vector<10x128xf32> -> vector<10x128xf32>
    %43 = arith.truncf %42 : vector<10x128xf32> to vector<10x128xbf16>
    %c0_23 = arith.constant 0 : index
    %c0_24 = arith.constant 0 : index
    %c0_25 = arith.constant 0 : index
    %44 = vector.load %arg15[%c0_23, %c0_24, %c0_25] : memref<1x256x256xbf16, #tpu.memory_space<vmem>>, vector<1x128x256xbf16>
    %45 = vector.shape_cast %44 : vector<1x128x256xbf16> to vector<128x256xbf16>
    %cst_26 = arith.constant dense<0.000000e+00> : vector<10x256xf32>
    %46 = tpu.matmul %43, %45, %cst_26 {dimension_numbers = #tpu.dot_dimension_numbers<[1], [0], [0], [1], [0, 0, 1, 1], [], []>} : vector<10x128xbf16>, vector<128x256xbf16>, vector<10x256xf32> -> vector<10x256xf32>
    %47 = vector.extract_strided_slice %12 {offsets = [0, 128], sizes = [10, 128], strides = [1, 1]} : vector<10x256xf32> to vector<10x128xf32>
    %48 = arith.truncf %47 : vector<10x128xf32> to vector<10x128xbf16>
    %49 = vector.extract_strided_slice %20 {offsets = [0, 128], sizes = [16, 128], strides = [1, 1]} : vector<16x256xf32> to vector<16x128xf32>
    %50 = arith.truncf %49 : vector<16x128xf32> to vector<16x128xbf16>
    %51 = vector.extract_strided_slice %21 {offsets = [0, 128], sizes = [16, 128], strides = [1, 1]} : vector<16x256xf32> to vector<16x128xf32>
    %52 = arith.truncf %51 : vector<16x128xf32> to vector<16x128xbf16>
    "tpu.trace_start"() <{level = 10 : i32, message = "qd,kd->qk"}> : () -> ()
    %cst_27 = arith.constant dense<0.000000e+00> : vector<10x16xf32>
    %53 = tpu.matmul %48, %50, %cst_27 {dimension_numbers = #tpu.dot_dimension_numbers<[1], [1], [0], [0], [0, 0, 1, 0], [], []>} : vector<10x128xbf16>, vector<16x128xbf16>, vector<10x16xf32> -> vector<10x16xf32>
    "tpu.trace_stop"() : () -> ()
    %54 = arith.addf %53, %22 : vector<10x16xf32>
    %cst_28 = arith.constant dense<0xFF800000> : vector<10xf32>
    %55 = vector.multi_reduction <maximumf>, %54, %cst_28 [1] : vector<10x16xf32> to vector<10xf32>
    %56 = vector.shape_cast %55 : vector<10xf32> to vector<10x1xf32>
    %57 = vector.broadcast %56 : vector<10x1xf32> to vector<10x16xf32>
    %58 = arith.subf %54, %57 : vector<10x16xf32>
    %59 = math.exp %58 : vector<10x16xf32>
    %cst_29 = arith.constant dense<0.000000e+00> : vector<10xf32>
    %60 = vector.multi_reduction <add>, %59, %cst_29 [1] : vector<10x16xf32> to vector<10xf32>
    %61 = vector.shape_cast %60 : vector<10xf32> to vector<10x1xf32>
    %62 = tpu.reciprocal %61 {approx = true} : vector<10x1xf32> -> vector<10x1xf32>
    %63 = vector.broadcast %62 : vector<10x1xf32> to vector<10x16xf32>
    %64 = arith.mulf %59, %63 : vector<10x16xf32>
    %65 = arith.truncf %64 : vector<10x16xf32> to vector<10x16xbf16>
    %cst_30 = arith.constant dense<0.000000e+00> : vector<10x128xf32>
    %66 = tpu.matmul %65, %52, %cst_30 {dimension_numbers = #tpu.dot_dimension_numbers<[1], [0], [0], [1], [0, 0, 1, 1], [], []>} : vector<10x16xbf16>, vector<16x128xbf16>, vector<10x128xf32> -> vector<10x128xf32>
    %67 = arith.truncf %66 : vector<10x128xf32> to vector<10x128xbf16>
    %c0_31 = arith.constant 0 : index
    %c128 = arith.constant 128 : index
    %c0_32 = arith.constant 0 : index
    %68 = vector.load %arg15[%c0_31, %c128, %c0_32] : memref<1x256x256xbf16, #tpu.memory_space<vmem>>, vector<1x128x256xbf16>
    %69 = vector.shape_cast %68 : vector<1x128x256xbf16> to vector<128x256xbf16>
    %cst_33 = arith.constant dense<0.000000e+00> : vector<10x256xf32>
    %70 = tpu.matmul %67, %69, %cst_33 {dimension_numbers = #tpu.dot_dimension_numbers<[1], [0], [0], [1], [0, 0, 1, 1], [], []>} : vector<10x128xbf16>, vector<128x256xbf16>, vector<10x256xf32> -> vector<10x256xf32>
    %71 = arith.addf %46, %70 : vector<10x256xf32>
    %c0_34 = arith.constant 0 : index
    %c0_35 = arith.constant 0 : index
    %c0_36 = arith.constant 0 : index
    %72 = vector.load %arg16[%c0_34, %c0_35, %c0_36] : memref<1x1x256xf32, #tpu.memory_space<vmem>>, vector<1x1x256xf32>
    %73 = vector.shape_cast %72 : vector<1x1x256xf32> to vector<1x256xf32>
    %74 = vector.broadcast %73 : vector<1x256xf32> to vector<10x256xf32>
    %75 = arith.addf %71, %74 : vector<10x256xf32>
    %76 = arith.truncf %75 : vector<10x256xf32> to vector<10x256xbf16>
    %c0_37 = arith.constant 0 : index
    %c0_38 = arith.constant 0 : index
    %c0_39 = arith.constant 0 : index
    %77 = vector.load %arg17[%c0_37, %c0_38, %c0_39] : memref<1x256x512xbf16, #tpu.memory_space<vmem>>, vector<1x256x512xbf16>
    %78 = vector.shape_cast %77 : vector<1x256x512xbf16> to vector<256x512xbf16>
    %cst_40 = arith.constant dense<0.000000e+00> : vector<10x512xf32>
    %79 = tpu.matmul %76, %78, %cst_40 {dimension_numbers = #tpu.dot_dimension_numbers<[1], [0], [0], [1], [0, 0, 1, 1], [], []>} : vector<10x256xbf16>, vector<256x512xbf16>, vector<10x512xf32> -> vector<10x512xf32>
    %cst_41 = arith.constant 0.000000e+00 : f32
    %80 = vector.broadcast %cst_41 : f32 to vector<10x512xf32>
    %81 = arith.maximumf %79, %80 : vector<10x512xf32>
    %82 = arith.truncf %81 : vector<10x512xf32> to vector<10x512xbf16>
    %c0_42 = arith.constant 0 : index
    %c0_43 = arith.constant 0 : index
    %c0_44 = arith.constant 0 : index
    %83 = vector.load %arg18[%c0_42, %c0_43, %c0_44] : memref<1x512x256xbf16, #tpu.memory_space<vmem>>, vector<1x512x256xbf16>
    %84 = vector.shape_cast %83 : vector<1x512x256xbf16> to vector<512x256xbf16>
    %cst_45 = arith.constant dense<0.000000e+00> : vector<10x256xf32>
    %85 = tpu.matmul %82, %84, %cst_45 {dimension_numbers = #tpu.dot_dimension_numbers<[1], [0], [0], [1], [0, 0, 1, 1], [], []>} : vector<10x512xbf16>, vector<512x256xbf16>, vector<10x256xf32> -> vector<10x256xf32>
    %86 = arith.addf %85, %75 : vector<10x256xf32>
    %c0_46 = arith.constant 0 : index
    %c0_47 = arith.constant 0 : index
    %c0_48 = arith.constant 0 : index
    %87 = vector.load %arg19[%c0_46, %c0_47, %c0_48] : memref<1x1x256xf32, #tpu.memory_space<vmem>>, vector<1x1x256xf32>
    %88 = vector.shape_cast %87 : vector<1x1x256xf32> to vector<1x256xf32>
    %c0_49 = arith.constant 0 : index
    %c0_50 = arith.constant 0 : index
    %c0_51 = arith.constant 0 : index
    %89 = vector.load %arg20[%c0_49, %c0_50, %c0_51] : memref<1x1x256xf32, #tpu.memory_space<vmem>>, vector<1x1x256xf32>
    %90 = vector.shape_cast %89 : vector<1x1x256xf32> to vector<1x256xf32>
    %cst_52 = arith.constant dense<0.000000e+00> : vector<10xf32>
    %91 = vector.multi_reduction <add>, %86, %cst_52 [1] : vector<10x256xf32> to vector<10xf32>
    %92 = vector.shape_cast %91 : vector<10xf32> to vector<10x1xf32>
    %cst_53 = arith.constant 2.560000e+02 : f32
    %93 = vector.broadcast %cst_53 : f32 to vector<10x1xf32>
    %94 = arith.divf %92, %93 : vector<10x1xf32>
    %95 = vector.broadcast %94 : vector<10x1xf32> to vector<10x256xf32>
    %96 = arith.subf %86, %95 : vector<10x256xf32>
    %97 = arith.mulf %96, %96 : vector<10x256xf32>
    %cst_54 = arith.constant dense<0.000000e+00> : vector<10xf32>
    %98 = vector.multi_reduction <add>, %97, %cst_54 [1] : vector<10x256xf32> to vector<10xf32>
    %99 = vector.shape_cast %98 : vector<10xf32> to vector<10x1xf32>
    %cst_55 = arith.constant 2.560000e+02 : f32
    %100 = vector.broadcast %cst_55 : f32 to vector<10x1xf32>
    %101 = arith.divf %99, %100 : vector<10x1xf32>
    %102 = vector.broadcast %94 : vector<10x1xf32> to vector<10x256xf32>
    %103 = arith.subf %86, %102 : vector<10x256xf32>
    %cst_56 = arith.constant 9.99999974E-6 : f32
    %104 = vector.broadcast %cst_56 : f32 to vector<10x1xf32>
    %105 = arith.addf %101, %104 : vector<10x1xf32>
    %106 = math.rsqrt %105 : vector<10x1xf32>
    %107 = vector.broadcast %106 : vector<10x1xf32> to vector<10x256xf32>
    %108 = arith.mulf %103, %107 : vector<10x256xf32>
    %109 = vector.broadcast %88 : vector<1x256xf32> to vector<10x256xf32>
    %110 = arith.mulf %108, %109 : vector<10x256xf32>
    %111 = vector.broadcast %90 : vector<1x256xf32> to vector<10x256xf32>
    %112 = arith.addf %110, %111 : vector<10x256xf32>
    %c0_57 = arith.constant 0 : index
    %c0_58 = arith.constant 0 : index
    %113 = vector.load %arg25[%c0_57, %c0_58] : memref<10x256xf32, #tpu.memory_space<vmem>>, vector<10x256xf32>
    tpu.vector_store %arg25[%c0_57, %c0_58], %112 {strides = array<i32>} : memref<10x256xf32, #tpu.memory_space<vmem>>, vector<10x256xf32>,
    %c1_i32 = arith.constant 1 : i32
    %114 = arith.cmpi eq, %arg0, %c1_i32 : i32
    %115 = arith.extui %114 : i1 to i32
    %c0_i32_59 = arith.constant 0 : i32
    %116 = arith.cmpi ne, %115, %c0_i32_59 : i32
    scf.if %116 {
      %117 = vector.extract_strided_slice %112 {offsets = [0, 0], sizes = [1, 256], strides = [1, 1]} : vector<10x256xf32> to vector<1x256xf32>
      %118 = vector.extract_strided_slice %112 {offsets = [5, 0], sizes = [1, 256], strides = [1, 1]} : vector<10x256xf32> to vector<1x256xf32>
      %119 = tpu.concatenate %117, %118 in 0 : vector<1x256xf32>, vector<1x256xf32> -> vector<2x256xf32>
      %120 = arith.truncf %119 : vector<2x256xf32> to vector<2x256xbf16>
      %c0_60 = arith.constant 0 : index
      %c0_61 = arith.constant 0 : index
      %121 = vector.load %arg21[%c0_60, %c0_61] : memref<256x256xbf16, #tpu.memory_space<vmem>>, vector<256x256xbf16>
      %cst_62 = arith.constant dense<0.000000e+00> : vector<2x256xf32>
      %122 = tpu.matmul %120, %121, %cst_62 {dimension_numbers = #tpu.dot_dimension_numbers<[1], [0], [0], [1], [0, 0, 1, 1], [], []>} : vector<2x256xbf16>, vector<256x256xbf16>, vector<2x256xf32> -> vector<2x256xf32>
      %c0_63 = arith.constant 0 : index
      %c0_64 = arith.constant 0 : index
      %123 = vector.load %arg22[%c0_63, %c0_64] : memref<1x256xf32, #tpu.memory_space<vmem>>, vector<1x256xf32>
      %124 = vector.broadcast %123 : vector<1x256xf32> to vector<2x256xf32>
      %125 = arith.addf %122, %124 : vector<2x256xf32>
      %126 = math.tanh %125 : vector<2x256xf32>
      %127 = arith.truncf %126 : vector<2x256xf32> to vector<2x256xbf16>
      %c0_65 = arith.constant 0 : index
      %c0_66 = arith.constant 0 : index
      %128 = vector.load %arg23[%c0_65, %c0_66] : memref<256x128xbf16, #tpu.memory_space<vmem>>, vector<256x128xbf16>
      %cst_67 = arith.constant dense<0.000000e+00> : vector<2x128xf32>
      %129 = tpu.matmul %127, %128, %cst_67 {dimension_numbers = #tpu.dot_dimension_numbers<[1], [0], [0], [1], [0, 0, 1, 1], [], []>} : vector<2x256xbf16>, vector<256x128xbf16>, vector<2x128xf32> -> vector<2x128xf32>
      %c0_68 = arith.constant 0 : index
      %c0_69 = arith.constant 0 : index
      %130 = vector.load %arg24[%c0_68, %c0_69] : memref<1x128xf32, #tpu.memory_space<vmem>>, vector<1x128xf32>
      %131 = vector.broadcast %130 : vector<1x128xf32> to vector<2x128xf32>
      %132 = arith.addf %129, %131 : vector<2x128xf32>
      %c0_70 = arith.constant 0 : index
      %c0_71 = arith.constant 0 : index
      %133 = vector.load %arg26[%c0_70, %c0_71] : memref<2x128xf32, #tpu.memory_space<vmem>>, vector<2x128xf32>
      tpu.vector_store %arg26[%c0_70, %c0_71], %132 {strides = array<i32>} : memref<2x128xf32, #tpu.memory_space<vmem>>, vector<2x128xf32>,
    } else {
    }
    return
  }
  func.func @transform_0(%arg0: i32) -> (i32, i32) {
    %c0_i32 = arith.constant 0 : i32
    %c0_i32_0 = arith.constant 0 : i32
    %c0_i32_1 = arith.constant 0 : i32
    return %c0_i32, %c0_i32_0 : i32, i32
  }
  func.func @transform_1(%arg0: i32) -> (i32, i32) {
    %c0_i32 = arith.constant 0 : i32
    %c0_i32_0 = arith.constant 0 : i32
    %c0_i32_1 = arith.constant 0 : i32
    return %c0_i32, %c0_i32_0 : i32, i32
  }
  func.func @transform_2(%arg0: i32) -> (i32, i32) {
    %c0_i32 = arith.constant 0 : i32
    %c0_i32_0 = arith.constant 0 : i32
    %c0_i32_1 = arith.constant 0 : i32
    return %c0_i32, %c0_i32_0 : i32, i32
  }
  func.func @transform_3(%arg0: i32) -> (i32, i32) {
    %c0_i32 = arith.constant 0 : i32
    %c0_i32_0 = arith.constant 0 : i32
    %c0_i32_1 = arith.constant 0 : i32
    return %c0_i32, %c0_i32_0 : i32, i32
  }
  func.func @transform_4(%arg0: i32) -> (i32, i32) {
    %c0_i32 = arith.constant 0 : i32
    %c0_i32_0 = arith.constant 0 : i32
    %c0_i32_1 = arith.constant 0 : i32
    return %c0_i32, %c0_i32_0 : i32, i32
  }
  func.func @transform_5(%arg0: i32) -> (i32, i32) {
    %c0_i32 = arith.constant 0 : i32
    %c0_i32_0 = arith.constant 0 : i32
    %c0_i32_1 = arith.constant 0 : i32
    return %c0_i32, %c0_i32_0 : i32, i32
  }
  func.func @transform_6(%arg0: i32) -> (i32, i32) {
    %c0_i32 = arith.constant 0 : i32
    %c0_i32_0 = arith.constant 0 : i32
    %c0_i32_1 = arith.constant 0 : i32
    return %c0_i32, %c0_i32_0 : i32, i32
  }
  func.func @transform_7(%arg0: i32) -> (i32, i32) {
    %c0_i32 = arith.constant 0 : i32
    %c0_i32_0 = arith.constant 0 : i32
    %c0_i32_1 = arith.constant 0 : i32
    return %c0_i32, %c0_i32_0 : i32, i32
  }
  func.func @transform_8(%arg0: i32) -> (i32, i32) {
    %c0_i32 = arith.constant 0 : i32
    %c0_i32_0 = arith.constant 0 : i32
    %c0_i32_1 = arith.constant 0 : i32
    return %c0_i32, %c0_i32_0 : i32, i32
  }
  func.func @transform_9(%arg0: i32) -> (i32, i32) {
    %c0_i32 = arith.constant 0 : i32
    %c0_i32_0 = arith.constant 0 : i32
    %c0_i32_1 = arith.constant 0 : i32
    return %c0_i32, %c0_i32_0 : i32, i32
  }
  func.func @transform_10(%arg0: i32) -> (i32, i32, i32) {
    %c0_i32 = arith.constant 0 : i32
    %c0_i32_0 = arith.constant 0 : i32
    %c0_i32_1 = arith.constant 0 : i32
    return %arg0, %c0_i32, %c0_i32_0 : i32, i32, i32
  }
  func.func @transform_11(%arg0: i32) -> (i32, i32, i32) {
    %c0_i32 = arith.constant 0 : i32
    %c0_i32_0 = arith.constant 0 : i32
    %c0_i32_1 = arith.constant 0 : i32
    return %arg0, %c0_i32, %c0_i32_0 : i32, i32, i32
  }
  func.func @transform_12(%arg0: i32) -> (i32, i32, i32) {
    %c0_i32 = arith.constant 0 : i32
    %c0_i32_0 = arith.constant 0 : i32
    %c0_i32_1 = arith.constant 0 : i32
    return %arg0, %c0_i32, %c0_i32_0 : i32, i32, i32
  }
  func.func @transform_13(%arg0: i32) -> (i32, i32, i32) {
    %c0_i32 = arith.constant 0 : i32
    %c0_i32_0 = arith.constant 0 : i32
    %c0_i32_1 = arith.constant 0 : i32
    return %arg0, %c0_i32, %c0_i32_0 : i32, i32, i32
  }
  func.func @transform_14(%arg0: i32) -> (i32, i32, i32) {
    %c0_i32 = arith.constant 0 : i32
    %c0_i32_0 = arith.constant 0 : i32
    %c0_i32_1 = arith.constant 0 : i32
    return %arg0, %c0_i32, %c0_i32_0 : i32, i32, i32
  }
  func.func @transform_15(%arg0: i32) -> (i32, i32, i32) {
    %c0_i32 = arith.constant 0 : i32
    %c0_i32_0 = arith.constant 0 : i32
    %c0_i32_1 = arith.constant 0 : i32
    return %arg0, %c0_i32, %c0_i32_0 : i32, i32, i32
  }
  func.func @transform_16(%arg0: i32) -> (i32, i32, i32) {
    %c0_i32 = arith.constant 0 : i32
    %c0_i32_0 = arith.constant 0 : i32
    %c0_i32_1 = arith.constant 0 : i32
    return %arg0, %c0_i32, %c0_i32_0 : i32, i32, i32
  }
  func.func @transform_17(%arg0: i32) -> (i32, i32, i32) {
    %c0_i32 = arith.constant 0 : i32
    %c0_i32_0 = arith.constant 0 : i32
    %c0_i32_1 = arith.constant 0 : i32
    return %arg0, %c0_i32, %c0_i32_0 : i32, i32, i32
  }
  func.func @transform_18(%arg0: i32) -> (i32, i32, i32) {
    %c0_i32 = arith.constant 0 : i32
    %c0_i32_0 = arith.constant 0 : i32
    %c0_i32_1 = arith.constant 0 : i32
    return %arg0, %c0_i32, %c0_i32_0 : i32, i32, i32
  }
  func.func @transform_19(%arg0: i32) -> (i32, i32, i32) {
    %c0_i32 = arith.constant 0 : i32
    %c0_i32_0 = arith.constant 0 : i32
    %c0_i32_1 = arith.constant 0 : i32
    return %arg0, %c0_i32, %c0_i32_0 : i32, i32, i32
  }
  func.func @transform_20(%arg0: i32) -> (i32, i32) {
    %c0_i32 = arith.constant 0 : i32
    %c0_i32_0 = arith.constant 0 : i32
    %c0_i32_1 = arith.constant 0 : i32
    return %c0_i32, %c0_i32_0 : i32, i32
  }
  func.func @transform_21(%arg0: i32) -> (i32, i32) {
    %c0_i32 = arith.constant 0 : i32
    %c0_i32_0 = arith.constant 0 : i32
    %c0_i32_1 = arith.constant 0 : i32
    return %c0_i32, %c0_i32_0 : i32, i32
  }
  func.func @transform_22(%arg0: i32) -> (i32, i32) {
    %c0_i32 = arith.constant 0 : i32
    %c0_i32_0 = arith.constant 0 : i32
    %c0_i32_1 = arith.constant 0 : i32
    return %c0_i32, %c0_i32_0 : i32, i32
  }
  func.func @transform_23(%arg0: i32) -> (i32, i32) {
    %c0_i32 = arith.constant 0 : i32
    %c0_i32_0 = arith.constant 0 : i32
    %c0_i32_1 = arith.constant 0 : i32
    return %c0_i32, %c0_i32_0 : i32, i32
  }
  func.func @transform_24(%arg0: i32) -> (i32, i32) {
    %c0_i32 = arith.constant 0 : i32
    %c0_i32_0 = arith.constant 0 : i32
    %c0_i32_1 = arith.constant 0 : i32
    return %c0_i32, %c0_i32_0 : i32, i32
  }
  func.func @transform_25(%arg0: i32) -> (i32, i32) {
    %c0_i32 = arith.constant 0 : i32
    %c0_i32_0 = arith.constant 0 : i32
    %c0_i32_1 = arith.constant 0 : i32
    return %c0_i32, %c0_i32_0 : i32, i32
  }
}

</mosaic_0001>

<llo_original>
// kernel: tile.9
$region0: #{tile.9}
  %s0 = inlined_call_operand.vmem [shape: f32[2,5,256], index: 0, kind: input, shape index: {}]
  %s1 = inlined_call_operand.vmem [shape: f32[10,256], index: 1, kind: output, shape index: {}]
  %v2 = vld [vmem:[%s0] sm:$0x1f]
  %3 = vst [vmem:[%s1] sm:$0x1f] %v2
  %s4 = scalar_lea.vmem %s0, 8
  %v5 = vld [vmem:[%s4] sm:$0x1f]
  %s6 = scalar_lea.vmem %s1, 8
  %7 = vst [vmem:[%s6] sm:$0x1f] %v5
  %s8 = scalar_lea.vmem %s0, 16
  %v9 = vld [vmem:[%s8] sm:$0x1f]
  %s10 = scalar_lea.vmem %s1, 5
  %11 = vst [vmem:[%s10] sm:$0x7] %v9
  %s12 = scalar_lea.vmem %s1, 13
  %13 = vst [vmem:[%s12] sm:$0x18] %v9
  %s14 = scalar_lea.vmem %s0, 24
  %v15 = vld [vmem:[%s14] sm:$0x1f]
  %s16 = scalar_lea.vmem %s1, 13
  %17 = vst [vmem:[%s16] sm:$0x7] %v15
  %s18 = scalar_lea.vmem %s1, 21
  %19 = vst [vmem:[%s18] sm:$0x18] %v15

// kernel: vl_encoders_forward.1
$region0: #{vl_encoders_forward.1}
  #allocation0 [shape = 'u32[]', space=smem, size = 0x4, offset = 0x4, fixed_abs, tag = 'smem constant byte address 0x4 - core index']
  #allocation1 [shape = 'u32[144,128]{1,0:T(1,128)}', space=vmem, size = 0x12000, scoped, tag = 'internal scratch']
  #allocation2 [shape = 'bf16[16,256]{1,0:T(8,128)(2,1)}', space=vmem, size = 0x2000, scoped, tag = 'scratch operand']
  %s0 = inlined_call_operand.vmem [shape: f32[10,192], index: 0, kind: input, shape index: {}]
  %s1 = inlined_call_operand.vmem [shape: f32[10,256], index: 1, kind: input, shape index: {}]
  %s2 = inlined_call_operand.vmem [shape: f32[16,128], index: 2, kind: input, shape index: {}]
  %s3 = inlined_call_operand.vmem [shape: f32[10,16], index: 3, kind: input, shape index: {}]
  %s4 = inlined_call_operand.hbm [shape: bf16[192,256], index: 4, kind: input, shape index: {}]
  %s5 = inlined_call_operand.vmem [shape: f32[1,256], index: 5, kind: input, shape index: {}]
  %s6 = inlined_call_operand.hbm [shape: f32[1,256], index: 6, kind: input, shape index: {}]
  %s7 = inlined_call_operand.hbm [shape: f32[1,128], index: 7, kind: input, shape index: {}]
  %s8 = inlined_call_operand.hbm [shape: f32[1,128], index: 8, kind: input, shape index: {}]
  %s9 = inlined_call_operand.vmem [shape: bf16[128,256], index: 9, kind: input, shape index: {}]
  %s10 = inlined_call_operand.hbm [shape: bf16[2,256,256], index: 10, kind: input, shape index: {}]
  %s11 = inlined_call_operand.hbm [shape: f32[2,1,256], index: 11, kind: input, shape index: {}]
  %s12 = inlined_call_operand.vmem [shape: bf16[2,256,512], index: 12, kind: input, shape index: {}]
  %s13 = inlined_call_operand.vmem [shape: f32[2,1,512], index: 13, kind: input, shape index: {}]
  %s14 = inlined_call_operand.hbm [shape: bf16[2,256,256], index: 14, kind: input, shape index: {}]
  %s15 = inlined_call_operand.hbm [shape: f32[2,1,256], index: 15, kind: input, shape index: {}]
  %s16 = inlined_call_operand.hbm [shape: bf16[2,256,512], index: 16, kind: input, shape index: {}]
  %s17 = inlined_call_operand.hbm [shape: bf16[2,512,256], index: 17, kind: input, shape index: {}]
  %s18 = inlined_call_operand.hbm [shape: f32[2,1,256], index: 18, kind: input, shape index: {}]
  %s19 = inlined_call_operand.hbm [shape: f32[2,1,256], index: 19, kind: input, shape index: {}]
  %s20 = inlined_call_operand.vmem [shape: bf16[256,256], index: 20, kind: input, shape index: {}]
  %s21 = inlined_call_operand.hbm [shape: f32[1,256], index: 21, kind: input, shape index: {}]
  %s22 = inlined_call_operand.hbm [shape: bf16[256,128], index: 22, kind: input, shape index: {}]
  %s23 = inlined_call_operand.hbm [shape: f32[1,128], index: 23, kind: input, shape index: {}]
  %s24 = inlined_call_operand.vmem [shape: f32[10,256], index: 24, kind: output, shape index: {0}]
  %s25 = inlined_call_operand.hbm [shape: f32[2,128], index: 25, kind: output, shape index: {1}]
  %26 = xla_tuple %s24, %s25
  %s27 = sld [smem:[#allocation0]]
  $region205: #{vl_encoders_forward.1} parent=0
    _
  %s29 = ssub.s32 1, %s27
  %s30 = scalar_select 0, %s29, %s27
  $region1: #{vl_encoders_forward.1} parent=0
    #allocation3 [shape = 'u8[98304]{0}', space=vmem, size = 0x18000, scoped, tag = 'input window, operand 4, single buffered']
    #allocation4 [shape = 's32[2]{0}', space=sflag, size = 0x8, scoped, tag = 'scoped memory for vl_encoders_forward.1']
    #allocation5 [shape = 's32[2]{0}', space=sflag, size = 0x8, scoped, tag = 'scoped memory for vl_encoders_forward.1']
    #allocation6 [shape = 'u8[1024]{0}', space=vmem, size = 0x400, scoped, tag = 'input window, operand 6, single buffered']
    #allocation7 [shape = 's32[1]{0}', space=sflag, size = 0x4, scoped, tag = 'scoped memory for vl_encoders_forward.1']
    #allocation8 [shape = 'u8[512]{0}', space=vmem, size = 0x400, scoped, tag = 'input window, operand 7, single buffered']
    #allocation9 [shape = 'u8[512]{0}', space=vmem, size = 0x400, scoped, tag = 'input window, operand 8, single buffered']
    #allocation10 [shape = 's32[1]{0}', space=sflag, size = 0x4, scoped, tag = 'scoped memory for vl_encoders_forward.1']
    #allocation11 [shape = 'u8[262144]{0}', space=vmem, size = 0x40000, scoped, tag = 'input window, operand 10']
    #allocation12 [shape = 'u8[2048]{0}', space=vmem, size = 0x800, scoped, tag = 'input window, operand 11']
    #allocation13 [shape = 'u8[262144]{0}', space=vmem, size = 0x40000, scoped, tag = 'input window, operand 14']
    #allocation14 [shape = 'u8[2048]{0}', space=vmem, size = 0x800, scoped, tag = 'input window, operand 15']
    #allocation15 [shape = 'u8[524288]{0}', space=vmem, size = 0x80000, scoped, tag = 'input window, operand 16']
    #allocation16 [shape = 'u8[524288]{0}', space=vmem, size = 0x80000, scoped, tag = 'input window, operand 17']
    #allocation17 [shape = 'u8[2048]{0}', space=vmem, size = 0x800, scoped, tag = 'input window, operand 18']
    #allocation18 [shape = 'u8[2048]{0}', space=vmem, size = 0x800, scoped, tag = 'input window, operand 19']
    #allocation19 [shape = 'u8[1024]{0}', space=vmem, size = 0x400, scoped, tag = 'input window, operand 21, single buffered']
    #allocation20 [shape = 'u8[65536]{0}', space=vmem, size = 0x10000, scoped, tag = 'input window, operand 22, single buffered']
    #allocation21 [shape = 'u8[512]{0}', space=vmem, size = 0x400, scoped, tag = 'input window, operand 23, single buffered']
    #allocation22 [shape = 's32[1]{0}', space=sflag, size = 0x4, scoped, tag = 'scoped memory for vl_encoders_forward.1']
    #allocation23 [shape = 'u8[1024]{0}', space=vmem, size = 0x400, scoped, tag = 'output window, operand 1, single buffered']
    %31 = vsyncpa [#allocation4], 0
    %32 = vsyncpa [#allocation7], 0
    %33 = vsyncpa [#allocation10], 0
    %34 = vsyncpa [#allocation22], 0
    %35 = vsyncpa [#allocation5], 0
    loop: start=0, step=1, limit=4
    $region2: #{vl_encoders_forward.1} parent=1 // loop_pre_header
      _
    $region3: #{vl_encoders_forward.1} parent=1 // loop_header
      %s37 = sphi 0, %s41
      %p38 = scmp.ge.s32.totalorder %s37, 4
      %s45 = sphi 0, %s45
      %s47 = sphi 0, %s45
      %s48 = sphi 0, %s47
      %s62 = sphi 0, %s48
      %s66 = sphi 0, %s66
      %s68 = sphi 0, %s66
      %s69 = sphi 0, %s68
      %s83 = sphi 0, %s69
      %s87 = sphi 0, %s87
      %s89 = sphi 0, %s87
      %s90 = sphi 0, %s89
      %s104 = sphi 0, %s90
      %s108 = sphi 0, %s108
      %s110 = sphi 0, %s108
      %s111 = sphi 0, %s110
      %s125 = sphi 0, %s111
      %s129 = sphi 0, %s129
      %s131 = sphi 0, %s129
      %s132 = sphi 0, %s131
      %s146 = sphi 0, %s132
      %s150 = sphi 0, %s150
      %s152 = sphi 0, %s150
      %s153 = sphi 0, %s152
      %s167 = sphi 0, %s153
      %s171 = sphi 0, %s171
      %s173 = sphi 0, %s171
      %s174 = sphi 0, %s173
      %s188 = sphi 0, %s174
      %s192 = sphi 0, %s192
      %s194 = sphi 0, %s192
      %s195 = sphi 0, %s194
      %s209 = sphi 0, %s195
      %s213 = sphi 0, %s213
      %s215 = sphi 0, %s213
      %s216 = sphi 0, %s215
      %s230 = sphi 0, %s216
      %s234 = sphi 0, %s234
      %s236 = sphi 0, %s234
      %s237 = sphi 0, %s236
      %s251 = sphi 0, %s237
      %s257 = sphi 0, %s259
      %s260 = sphi 0, %s257
      %s261 = sphi 0, %s260
      %s277 = sphi 0, %s261
      %s283 = sphi 0, %s285
      %s286 = sphi 0, %s283
      %s287 = sphi 0, %s286
      %s303 = sphi 0, %s287
      %s309 = sphi 0, %s311
      %s312 = sphi 0, %s309
      %s313 = sphi 0, %s312
      %s329 = sphi 0, %s313
      %s335 = sphi 0, %s337
      %s338 = sphi 0, %s335
      %s339 = sphi 0, %s338
      %s355 = sphi 0, %s339
      %s361 = sphi 0, %s363
      %s364 = sphi 0, %s361
      %s365 = sphi 0, %s364
      %s381 = sphi 0, %s365
      %s387 = sphi 0, %s389
      %s390 = sphi 0, %s387
      %s391 = sphi 0, %s390
      %s407 = sphi 0, %s391
      %s413 = sphi 0, %s415
      %s416 = sphi 0, %s413
      %s417 = sphi 0, %s416
      %s433 = sphi 0, %s417
      %s439 = sphi 0, %s441
      %s442 = sphi 0, %s439
      %s443 = sphi 0, %s442
      %s459 = sphi 0, %s443
      %s465 = sphi 0, %s467
      %s468 = sphi 0, %s465
      %s469 = sphi 0, %s468
      %s485 = sphi 0, %s469
      %s491 = sphi 0, %s493
      %s494 = sphi 0, %s491
      %s495 = sphi 0, %s494
      %s511 = sphi 0, %s495
      %s515 = sphi 0, %s515
      %s517 = sphi 0, %s515
      %s518 = sphi 0, %s517
      %s532 = sphi 0, %s518
      %s536 = sphi 0, %s536
      %s538 = sphi 0, %s536
      %s539 = sphi 0, %s538
      %s553 = sphi 0, %s539
      %s557 = sphi 0, %s557
      %s559 = sphi 0, %s557
      %s560 = sphi 0, %s559
      %s574 = sphi 0, %s560
      %s578 = sphi 0, %s578
      %s580 = sphi 0, %s578
      %s581 = sphi 0, %s580
      %s595 = sphi 0, %s581
      %s599 = sphi 0, %s599
      %s601 = sphi 0, %s599
      %s602 = sphi 0, %s601
      %s616 = sphi 0, %s602
      %s620 = sphi 0, %s620
      %s622 = sphi 0, %s620
      %s623 = sphi 0, %s622
      %s637 = sphi 0, %s623
    $region4: #{vl_encoders_forward.1} parent=1 // loop_header_branch
      %40 = sbr.rel (%p38) target = $region8
    $region5: #{vl_encoders_forward.1} parent=1 // loop_body
      %s42 = ssub.s32 %s37, 1
      %s43 = ssub.s32 %s37, 2
      %s44 = sadd.s32 %s37, 1
      %s46 = sadd.s32 %s45, 1
      %p49 = scmp.eq.s32.totalorder %s37, 1
      %p50 = scmp.ne.s32.totalorder %s45, %s47
      %p51 = scmp.eq.s32.totalorder %s37, 0
      %p52 = por %p50, %p51
      %p53 = scmp.ne.s32.totalorder %s45, %s47
      %p54 = scmp.eq.s32.totalorder %s42, 1
      %p55 = por %p53, %p54
      %p56 = scmp.ne.s32.totalorder %s47, %s48
      %p57 = scmp.eq.s32.totalorder %s42, 0
      %p58 = por %p56, %p57
      %p59 = scmp.ne.s32.totalorder %s47, %s48
      %p60 = scmp.eq.s32.totalorder %s43, 1
      %p61 = por %p59, %p60
      %p63 = scmp.ne.s32.totalorder %s48, %s62
      %p64 = scmp.eq.s32.totalorder %s43, 0
      %p65 = por %p63, %p64
      %s67 = sadd.s32 %s66, 1
      %p70 = scmp.eq.s32.totalorder %s37, 1
      %p71 = scmp.ne.s32.totalorder %s66, %s68
      %p72 = scmp.eq.s32.totalorder %s37, 0
      %p73 = por %p71, %p72
      %p74 = scmp.ne.s32.totalorder %s66, %s68
      %p75 = scmp.eq.s32.totalorder %s42, 1
      %p76 = por %p74, %p75
      %p77 = scmp.ne.s32.totalorder %s68, %s69
      %p78 = scmp.eq.s32.totalorder %s42, 0
      %p79 = por %p77, %p78
      %p80 = scmp.ne.s32.totalorder %s68, %s69
      %p81 = scmp.eq.s32.totalorder %s43, 1
      %p82 = por %p80, %p81
      %p84 = scmp.ne.s32.totalorder %s69, %s83
      %p85 = scmp.eq.s32.totalorder %s43, 0
      %p86 = por %p84, %p85
      %s88 = sadd.s32 %s87, 1
      %p91 = scmp.eq.s32.totalorder %s37, 1
      %p92 = scmp.ne.s32.totalorder %s87, %s89
      %p93 = scmp.eq.s32.totalorder %s37, 0
      %p94 = por %p92, %p93
      %p95 = scmp.ne.s32.totalorder %s87, %s89
      %p96 = scmp.eq.s32.totalorder %s42, 1
      %p97 = por %p95, %p96
      %p98 = scmp.ne.s32.totalorder %s89, %s90
      %p99 = scmp.eq.s32.totalorder %s42, 0
      %p100 = por %p98, %p99
      %p101 = scmp.ne.s32.totalorder %s89, %s90
      %p102 = scmp.eq.s32.totalorder %s43, 1
      %p103 = por %p101, %p102
      %p105 = scmp.ne.s32.totalorder %s90, %s104
      %p106 = scmp.eq.s32.totalorder %s43, 0
      %p107 = por %p105, %p106
      %s109 = sadd.s32 %s108, 1
      %p112 = scmp.eq.s32.totalorder %s37, 1
      %p113 = scmp.ne.s32.totalorder %s108, %s110
      %p114 = scmp.eq.s32.totalorder %s37, 0
      %p115 = por %p113, %p114
      %p116 = scmp.ne.s32.totalorder %s108, %s110
      %p117 = scmp.eq.s32.totalorder %s42, 1
      %p118 = por %p116, %p117
      %p119 = scmp.ne.s32.totalorder %s110, %s111
      %p120 = scmp.eq.s32.totalorder %s42, 0
      %p121 = por %p119, %p120
      %p122 = scmp.ne.s32.totalorder %s110, %s111
      %p123 = scmp.eq.s32.totalorder %s43, 1
      %p124 = por %p122, %p123
      %p126 = scmp.ne.s32.totalorder %s111, %s125
      %p127 = scmp.eq.s32.totalorder %s43, 0
      %p128 = por %p126, %p127
      %s130 = sadd.s32 %s129, 1
      %p133 = scmp.eq.s32.totalorder %s37, 1
      %p134 = scmp.ne.s32.totalorder %s129, %s131
      %p135 = scmp.eq.s32.totalorder %s37, 0
      %p136 = por %p134, %p135
      %p137 = scmp.ne.s32.totalorder %s129, %s131
      %p138 = scmp.eq.s32.totalorder %s42, 1
      %p139 = por %p137, %p138
      %p140 = scmp.ne.s32.totalorder %s131, %s132
      %p141 = scmp.eq.s32.totalorder %s42, 0
      %p142 = por %p140, %p141
      %p143 = scmp.ne.s32.totalorder %s131, %s132
      %p144 = scmp.eq.s32.totalorder %s43, 1
      %p145 = por %p143, %p144
      %p147 = scmp.ne.s32.totalorder %s132, %s146
      %p148 = scmp.eq.s32.totalorder %s43, 0
      %p149 = por %p147, %p148
      %s151 = sadd.s32 %s150, 1
      %p154 = scmp.eq.s32.totalorder %s37, 1
      %p155 = scmp.ne.s32.totalorder %s150, %s152
      %p156 = scmp.eq.s32.totalorder %s37, 0
      %p157 = por %p155, %p156
      %p158 = scmp.ne.s32.totalorder %s150, %s152
      %p159 = scmp.eq.s32.totalorder %s42, 1
      %p160 = por %p158, %p159
      %p161 = scmp.ne.s32.totalorder %s152, %s153
      %p162 = scmp.eq.s32.totalorder %s42, 0
      %p163 = por %p161, %p162
      %p164 = scmp.ne.s32.totalorder %s152, %s153
      %p165 = scmp.eq.s32.totalorder %s43, 1
      %p166 = por %p164, %p165
      %p168 = scmp.ne.s32.totalorder %s153, %s167
      %p169 = scmp.eq.s32.totalorder %s43, 0
      %p170 = por %p168, %p169
      %s172 = sadd.s32 %s171, 1
      %p175 = scmp.eq.s32.totalorder %s37, 1
      %p176 = scmp.ne.s32.totalorder %s171, %s173
      %p177 = scmp.eq.s32.totalorder %s37, 0
      %p178 = por %p176, %p177
      %p179 = scmp.ne.s32.totalorder %s171, %s173
      %p180 = scmp.eq.s32.totalorder %s42, 1
      %p181 = por %p179, %p180
      %p182 = scmp.ne.s32.totalorder %s173, %s174
      %p183 = scmp.eq.s32.totalorder %s42, 0
      %p184 = por %p182, %p183
      %p185 = scmp.ne.s32.totalorder %s173, %s174
      %p186 = scmp.eq.s32.totalorder %s43, 1
      %p187 = por %p185, %p186
      %p189 = scmp.ne.s32.totalorder %s174, %s188
      %p190 = scmp.eq.s32.totalorder %s43, 0
      %p191 = por %p189, %p190
      %s193 = sadd.s32 %s192, 1
      %p196 = scmp.eq.s32.totalorder %s37, 1
      %p197 = scmp.ne.s32.totalorder %s192, %s194
      %p198 = scmp.eq.s32.totalorder %s37, 0
      %p199 = por %p197, %p198
      %p200 = scmp.ne.s32.totalorder %s192, %s194
      %p201 = scmp.eq.s32.totalorder %s42, 1
      %p202 = por %p200, %p201
      %p203 = scmp.ne.s32.totalorder %s194, %s195
      %p204 = scmp.eq.s32.totalorder %s42, 0
      %p205 = por %p203, %p204
      %p206 = scmp.ne.s32.totalorder %s194, %s195
      %p207 = scmp.eq.s32.totalorder %s43, 1
      %p208 = por %p206, %p207
      %p210 = scmp.ne.s32.totalorder %s195, %s209
      %p211 = scmp.eq.s32.totalorder %s43, 0
      %p212 = por %p210, %p211
      %s214 = sadd.s32 %s213, 1
      %p217 = scmp.eq.s32.totalorder %s37, 1
      %p218 = scmp.ne.s32.totalorder %s213, %s215
      %p219 = scmp.eq.s32.totalorder %s37, 0
      %p220 = por %p218, %p219
      %p221 = scmp.ne.s32.totalorder %s213, %s215
      %p222 = scmp.eq.s32.totalorder %s42, 1
      %p223 = por %p221, %p222
      %p224 = scmp.ne.s32.totalorder %s215, %s216
      %p225 = scmp.eq.s32.totalorder %s42, 0
      %p226 = por %p224, %p225
      %p227 = scmp.ne.s32.totalorder %s215, %s216
      %p228 = scmp.eq.s32.totalorder %s43, 1
      %p229 = por %p227, %p228
      %p231 = scmp.ne.s32.totalorder %s216, %s230
      %p232 = scmp.eq.s32.totalorder %s43, 0
      %p233 = por %p231, %p232
      %s235 = sadd.s32 %s234, 1
      %p238 = scmp.eq.s32.totalorder %s37, 1
      %p239 = scmp.ne.s32.totalorder %s234, %s236
      %p240 = scmp.eq.s32.totalorder %s37, 0
      %p241 = por %p239, %p240
      %p242 = scmp.ne.s32.totalorder %s234, %s236
      %p243 = scmp.eq.s32.totalorder %s42, 1
      %p244 = por %p242, %p243
      %p245 = scmp.ne.s32.totalorder %s236, %s237
      %p246 = scmp.eq.s32.totalorder %s42, 0
      %p247 = por %p245, %p246
      %p248 = scmp.ne.s32.totalorder %s236, %s237
      %p249 = scmp.eq.s32.totalorder %s43, 1
      %p250 = por %p248, %p249
      %p252 = scmp.ne.s32.totalorder %s237, %s251
      %p253 = scmp.eq.s32.totalorder %s43, 0
      %p254 = por %p252, %p253
      %s255 = ssub.s32 %s37, %s44
      %p256 = scmp.eq.s32.totalorder %s255, 0
      %s258 = sadd.s32 %s257, 1
      %s259 = scalar_select %p256, %s257, %s258
      %p262 = pneg %p256
      %p263 = scmp.eq.s32.totalorder %s37, 1
      %p264 = por %p262, %p263
      %p265 = scmp.ne.s32.totalorder %s257, %s260
      %p266 = scmp.eq.s32.totalorder %s37, 0
      %p267 = por %p265, %p266
      %p268 = scmp.ne.s32.totalorder %s257, %s260
      %p269 = scmp.eq.s32.totalorder %s42, 1
      %p270 = por %p268, %p269
      %p271 = scmp.ne.s32.totalorder %s260, %s261
      %p272 = scmp.eq.s32.totalorder %s42, 0
      %p273 = por %p271, %p272
      %p274 = scmp.ne.s32.totalorder %s260, %s261
      %p275 = scmp.eq.s32.totalorder %s43, 1
      %p276 = por %p274, %p275
      %p278 = scmp.ne.s32.totalorder %s261, %s277
      %p279 = scmp.eq.s32.totalorder %s43, 0
      %p280 = por %p278, %p279
      %s281 = ssub.s32 %s37, %s44
      %p282 = scmp.eq.s32.totalorder %s281, 0
      %s284 = sadd.s32 %s283, 1
      %s285 = scalar_select %p282, %s283, %s284
      %p288 = pneg %p282
      %p289 = scmp.eq.s32.totalorder %s37, 1
      %p290 = por %p288, %p289
      %p291 = scmp.ne.s32.totalorder %s283, %s286
      %p292 = scmp.eq.s32.totalorder %s37, 0
      %p293 = por %p291, %p292
      %p294 = scmp.ne.s32.totalorder %s283, %s286
      %p295 = scmp.eq.s32.totalorder %s42, 1
      %p296 = por %p294, %p295
      %p297 = scmp.ne.s32.totalorder %s286, %s287
      %p298 = scmp.eq.s32.totalorder %s42, 0
      %p299 = por %p297, %p298
      %p300 = scmp.ne.s32.totalorder %s286, %s287
      %p301 = scmp.eq.s32.totalorder %s43, 1
      %p302 = por %p300, %p301
      %p304 = scmp.ne.s32.totalorder %s287, %s303
      %p305 = scmp.eq.s32.totalorder %s43, 0
      %p306 = por %p304, %p305
      %s307 = ssub.s32 %s37, %s44
      %p308 = scmp.eq.s32.totalorder %s307, 0
      %s310 = sadd.s32 %s309, 1
      %s311 = scalar_select %p308, %s309, %s310
      %p314 = pneg %p308
      %p315 = scmp.eq.s32.totalorder %s37, 1
      %p316 = por %p314, %p315
      %p317 = scmp.ne.s32.totalorder %s309, %s312
      %p318 = scmp.eq.s32.totalorder %s37, 0
      %p319 = por %p317, %p318
      %p320 = scmp.ne.s32.totalorder %s309, %s312
      %p321 = scmp.eq.s32.totalorder %s42, 1
      %p322 = por %p320, %p321
      %p323 = scmp.ne.s32.totalorder %s312, %s313
      %p324 = scmp.eq.s32.totalorder %s42, 0
      %p325 = por %p323, %p324
      %p326 = scmp.ne.s32.totalorder %s312, %s313
      %p327 = scmp.eq.s32.totalorder %s43, 1
      %p328 = por %p326, %p327
      %p330 = scmp.ne.s32.totalorder %s313, %s329
      %p331 = scmp.eq.s32.totalorder %s43, 0
      %p332 = por %p330, %p331
      %s333 = ssub.s32 %s37, %s44
      %p334 = scmp.eq.s32.totalorder %s333, 0
      %s336 = sadd.s32 %s335, 1
      %s337 = scalar_select %p334, %s335, %s336
      %p340 = pneg %p334
      %p341 = scmp.eq.s32.totalorder %s37, 1
      %p342 = por %p340, %p341
      %p343 = scmp.ne.s32.totalorder %s335, %s338
      %p344 = scmp.eq.s32.totalorder %s37, 0
      %p345 = por %p343, %p344
      %p346 = scmp.ne.s32.totalorder %s335, %s338
      %p347 = scmp.eq.s32.totalorder %s42, 1
      %p348 = por %p346, %p347
      %p349 = scmp.ne.s32.totalorder %s338, %s339
      %p350 = scmp.eq.s32.totalorder %s42, 0
      %p351 = por %p349, %p350
      %p352 = scmp.ne.s32.totalorder %s338, %s339
      %p353 = scmp.eq.s32.totalorder %s43, 1
      %p354 = por %p352, %p353
      %p356 = scmp.ne.s32.totalorder %s339, %s355
      %p357 = scmp.eq.s32.totalorder %s43, 0
      %p358 = por %p356, %p357
      %s359 = ssub.s32 %s37, %s44
      %p360 = scmp.eq.s32.totalorder %s359, 0
      %s362 = sadd.s32 %s361, 1
      %s363 = scalar_select %p360, %s361, %s362
      %p366 = pneg %p360
      %p367 = scmp.eq.s32.totalorder %s37, 1
      %p368 = por %p366, %p367
      %p369 = scmp.ne.s32.totalorder %s361, %s364
      %p370 = scmp.eq.s32.totalorder %s37, 0
      %p371 = por %p369, %p370
      %p372 = scmp.ne.s32.totalorder %s361, %s364
      %p373 = scmp.eq.s32.totalorder %s42, 1
      %p374 = por %p372, %p373
      %p375 = scmp.ne.s32.totalorder %s364, %s365
      %p376 = scmp.eq.s32.totalorder %s42, 0
      %p377 = por %p375, %p376
      %p378 = scmp.ne.s32.totalorder %s364, %s365
      %p379 = scmp.eq.s32.totalorder %s43, 1
      %p380 = por %p378, %p379
      %p382 = scmp.ne.s32.totalorder %s365, %s381
      %p383 = scmp.eq.s32.totalorder %s43, 0
      %p384 = por %p382, %p383
      %s385 = ssub.s32 %s37, %s44
      %p386 = scmp.eq.s32.totalorder %s385, 0
      %s388 = sadd.s32 %s387, 1
      %s389 = scalar_select %p386, %s387, %s388
      %p392 = pneg %p386
      %p393 = scmp.eq.s32.totalorder %s37, 1
      %p394 = por %p392, %p393
      %p395 = scmp.ne.s32.totalorder %s387, %s390
      %p396 = scmp.eq.s32.totalorder %s37, 0
      %p397 = por %p395, %p396
      %p398 = scmp.ne.s32.totalorder %s387, %s390
      %p399 = scmp.eq.s32.totalorder %s42, 1
      %p400 = por %p398, %p399
      %p401 = scmp.ne.s32.totalorder %s390, %s391
      %p402 = scmp.eq.s32.totalorder %s42, 0
      %p403 = por %p401, %p402
      %p404 = scmp.ne.s32.totalorder %s390, %s391
      %p405 = scmp.eq.s32.totalorder %s43, 1
      %p406 = por %p404, %p405
      %p408 = scmp.ne.s32.totalorder %s391, %s407
      %p409 = scmp.eq.s32.totalorder %s43, 0
      %p410 = por %p408, %p409
      %s411 = ssub.s32 %s37, %s44
      %p412 = scmp.eq.s32.totalorder %s411, 0
      %s414 = sadd.s32 %s413, 1
      %s415 = scalar_select %p412, %s413, %s414
      %p418 = pneg %p412
      %p419 = scmp.eq.s32.totalorder %s37, 1
      %p420 = por %p418, %p419
      %p421 = scmp.ne.s32.totalorder %s413, %s416
      %p422 = scmp.eq.s32.totalorder %s37, 0
      %p423 = por %p421, %p422
      %p424 = scmp.ne.s32.totalorder %s413, %s416
      %p425 = scmp.eq.s32.totalorder %s42, 1
      %p426 = por %p424, %p425
      %p427 = scmp.ne.s32.totalorder %s416, %s417
      %p428 = scmp.eq.s32.totalorder %s42, 0
      %p429 = por %p427, %p428
      %p430 = scmp.ne.s32.totalorder %s416, %s417
      %p431 = scmp.eq.s32.totalorder %s43, 1
      %p432 = por %p430, %p431
      %p434 = scmp.ne.s32.totalorder %s417, %s433
      %p435 = scmp.eq.s32.totalorder %s43, 0
      %p436 = por %p434, %p435
      %s437 = ssub.s32 %s37, %s44
      %p438 = scmp.eq.s32.totalorder %s437, 0
      %s440 = sadd.s32 %s439, 1
      %s441 = scalar_select %p438, %s439, %s440
      %p444 = pneg %p438
      %p445 = scmp.eq.s32.totalorder %s37, 1
      %p446 = por %p444, %p445
      %p447 = scmp.ne.s32.totalorder %s439, %s442
      %p448 = scmp.eq.s32.totalorder %s37, 0
      %p449 = por %p447, %p448
      %p450 = scmp.ne.s32.totalorder %s439, %s442
      %p451 = scmp.eq.s32.totalorder %s42, 1
      %p452 = por %p450, %p451
      %p453 = scmp.ne.s32.totalorder %s442, %s443
      %p454 = scmp.eq.s32.totalorder %s42, 0
      %p455 = por %p453, %p454
      %p456 = scmp.ne.s32.totalorder %s442, %s443
      %p457 = scmp.eq.s32.totalorder %s43, 1
      %p458 = por %p456, %p457
      %p460 = scmp.ne.s32.totalorder %s443, %s459
      %p461 = scmp.eq.s32.totalorder %s43, 0
      %p462 = por %p460, %p461
      %s463 = ssub.s32 %s37, %s44
      %p464 = scmp.eq.s32.totalorder %s463, 0
      %s466 = sadd.s32 %s465, 1
      %s467 = scalar_select %p464, %s465, %s466
      %p470 = pneg %p464
      %p471 = scmp.eq.s32.totalorder %s37, 1
      %p472 = por %p470, %p471
      %p473 = scmp.ne.s32.totalorder %s465, %s468
      %p474 = scmp.eq.s32.totalorder %s37, 0
      %p475 = por %p473, %p474
      %p476 = scmp.ne.s32.totalorder %s465, %s468
      %p477 = scmp.eq.s32.totalorder %s42, 1
      %p478 = por %p476, %p477
      %p479 = scmp.ne.s32.totalorder %s468, %s469
      %p480 = scmp.eq.s32.totalorder %s42, 0
      %p481 = por %p479, %p480
      %p482 = scmp.ne.s32.totalorder %s468, %s469
      %p483 = scmp.eq.s32.totalorder %s43, 1
      %p484 = por %p482, %p483
      %p486 = scmp.ne.s32.totalorder %s469, %s485
      %p487 = scmp.eq.s32.totalorder %s43, 0
      %p488 = por %p486, %p487
      %s489 = ssub.s32 %s37, %s44
      %p490 = scmp.eq.s32.totalorder %s489, 0
      %s492 = sadd.s32 %s491, 1
      %s493 = scalar_select %p490, %s491, %s492
      %p496 = pneg %p490
      %p497 = scmp.eq.s32.totalorder %s37, 1
      %p498 = por %p496, %p497
      %p499 = scmp.ne.s32.totalorder %s491, %s494
      %p500 = scmp.eq.s32.totalorder %s37, 0
      %p501 = por %p499, %p500
      %p502 = scmp.ne.s32.totalorder %s491, %s494
      %p503 = scmp.eq.s32.totalorder %s42, 1
      %p504 = por %p502, %p503
      %p505 = scmp.ne.s32.totalorder %s494, %s495
      %p506 = scmp.eq.s32.totalorder %s42, 0
      %p507 = por %p505, %p506
      %p508 = scmp.ne.s32.totalorder %s494, %s495
      %p509 = scmp.eq.s32.totalorder %s43, 1
      %p510 = por %p508, %p509
      %p512 = scmp.ne.s32.totalorder %s495, %s511
      %p513 = scmp.eq.s32.totalorder %s43, 0
      %p514 = por %p512, %p513
      %s516 = sadd.s32 %s515, 1
      %p519 = scmp.eq.s32.totalorder %s37, 1
      %p520 = scmp.ne.s32.totalorder %s515, %s517
      %p521 = scmp.eq.s32.totalorder %s37, 0
      %p522 = por %p520, %p521
      %p523 = scmp.ne.s32.totalorder %s515, %s517
      %p524 = scmp.eq.s32.totalorder %s42, 1
      %p525 = por %p523, %p524
      %p526 = scmp.ne.s32.totalorder %s517, %s518
      %p527 = scmp.eq.s32.totalorder %s42, 0
      %p528 = por %p526, %p527
      %p529 = scmp.ne.s32.totalorder %s517, %s518
      %p530 = scmp.eq.s32.totalorder %s43, 1
      %p531 = por %p529, %p530
      %p533 = scmp.ne.s32.totalorder %s518, %s532
      %p534 = scmp.eq.s32.totalorder %s43, 0
      %p535 = por %p533, %p534
      %s537 = sadd.s32 %s536, 1
      %p540 = scmp.eq.s32.totalorder %s37, 1
      %p541 = scmp.ne.s32.totalorder %s536, %s538
      %p542 = scmp.eq.s32.totalorder %s37, 0
      %p543 = por %p541, %p542
      %p544 = scmp.ne.s32.totalorder %s536, %s538
      %p545 = scmp.eq.s32.totalorder %s42, 1
      %p546 = por %p544, %p545
      %p547 = scmp.ne.s32.totalorder %s538, %s539
      %p548 = scmp.eq.s32.totalorder %s42, 0
      %p549 = por %p547, %p548
      %p550 = scmp.ne.s32.totalorder %s538, %s539
      %p551 = scmp.eq.s32.totalorder %s43, 1
      %p552 = por %p550, %p551
      %p554 = scmp.ne.s32.totalorder %s539, %s553
      %p555 = scmp.eq.s32.totalorder %s43, 0
      %p556 = por %p554, %p555
      %s558 = sadd.s32 %s557, 1
      %p561 = scmp.eq.s32.totalorder %s37, 1
      %p562 = scmp.ne.s32.totalorder %s557, %s559
      %p563 = scmp.eq.s32.totalorder %s37, 0
      %p564 = por %p562, %p563
      %p565 = scmp.ne.s32.totalorder %s557, %s559
      %p566 = scmp.eq.s32.totalorder %s42, 1
      %p567 = por %p565, %p566
      %p568 = scmp.ne.s32.totalorder %s559, %s560
      %p569 = scmp.eq.s32.totalorder %s42, 0
      %p570 = por %p568, %p569
      %p571 = scmp.ne.s32.totalorder %s559, %s560
      %p572 = scmp.eq.s32.totalorder %s43, 1
      %p573 = por %p571, %p572
      %p575 = scmp.ne.s32.totalorder %s560, %s574
      %p576 = scmp.eq.s32.totalorder %s43, 0
      %p577 = por %p575, %p576
      %s579 = sadd.s32 %s578, 1
      %p582 = scmp.eq.s32.totalorder %s37, 1
      %p583 = scmp.ne.s32.totalorder %s578, %s580
      %p584 = scmp.eq.s32.totalorder %s37, 0
      %p585 = por %p583, %p584
      %p586 = scmp.ne.s32.totalorder %s578, %s580
      %p587 = scmp.eq.s32.totalorder %s42, 1
      %p588 = por %p586, %p587
      %p589 = scmp.ne.s32.totalorder %s580, %s581
      %p590 = scmp.eq.s32.totalorder %s42, 0
      %p591 = por %p589, %p590
      %p592 = scmp.ne.s32.totalorder %s580, %s581
      %p593 = scmp.eq.s32.totalorder %s43, 1
      %p594 = por %p592, %p593
      %p596 = scmp.ne.s32.totalorder %s581, %s595
      %p597 = scmp.eq.s32.totalorder %s43, 0
      %p598 = por %p596, %p597
      %s600 = sadd.s32 %s599, 1
      %p603 = scmp.eq.s32.totalorder %s37, 1
      %p604 = scmp.ne.s32.totalorder %s599, %s601
      %p605 = scmp.eq.s32.totalorder %s37, 0
      %p606 = por %p604, %p605
      %p607 = scmp.ne.s32.totalorder %s599, %s601
      %p608 = scmp.eq.s32.totalorder %s42, 1
      %p609 = por %p607, %p608
      %p610 = scmp.ne.s32.totalorder %s601, %s602
      %p611 = scmp.eq.s32.totalorder %s42, 0
      %p612 = por %p610, %p611
      %p613 = scmp.ne.s32.totalorder %s601, %s602
      %p614 = scmp.eq.s32.totalorder %s43, 1
      %p615 = por %p613, %p614
      %p617 = scmp.ne.s32.totalorder %s602, %s616
      %p618 = scmp.eq.s32.totalorder %s43, 0
      %p619 = por %p617, %p618
      %s621 = sadd.s32 %s620, 1
      %p624 = scmp.eq.s32.totalorder %s37, 1
      %p625 = scmp.ne.s32.totalorder %s620, %s622
      %p626 = scmp.eq.s32.totalorder %s37, 0
      %p627 = por %p625, %p626
      %p628 = scmp.ne.s32.totalorder %s620, %s622
      %p629 = scmp.eq.s32.totalorder %s42, 1
      %p630 = por %p628, %p629
      %p631 = scmp.ne.s32.totalorder %s622, %s623
      %p632 = scmp.eq.s32.totalorder %s42, 0
      %p633 = por %p631, %p632
      %p634 = scmp.ne.s32.totalorder %s622, %s623
      %p635 = scmp.eq.s32.totalorder %s43, 1
      %p636 = por %p634, %p635
      %p638 = scmp.ne.s32.totalorder %s623, %s637
      %p639 = scmp.eq.s32.totalorder %s43, 0
      %p640 = por %p638, %p639
      %p641 = scmp.le.s32.totalorder 1, %s37
      %p642 = scmp.lt.s32.totalorder %s37, 3
      %p643 = pnand %p641, %p642
      %p644 = pneg %p643
      // Predicated region
      $region9: #{vl_encoders_forward.1} parent=5 // pred_check
        _
      $region10: #{vl_encoders_forward.1} parent=5 // pred_check_branch
        %646 = sbr.rel (%p643) target = $region12
      $region11: #{vl_encoders_forward.1} parent=5 // pred_region
        %s647 = ssub.s32 %s37, 1
        // Predicated region
        $region13: #{vl_encoders_forward.1} parent=11 // pred_check
          %p648 = pneg %p58
        $region14: #{vl_encoders_forward.1} parent=11 // pred_check_branch
          %650 = sbr.rel (%p648) target = $region16
        $region15: #{vl_encoders_forward.1} parent=11 // pred_region
          _
        $region16: #{vl_encoders_forward.1} parent=11 // pred_fallthru
          _
        // Predicated region
        $region17: #{vl_encoders_forward.1} parent=11 // pred_check
          %p651 = pneg %p79
        $region18: #{vl_encoders_forward.1} parent=11 // pred_check_branch
          %653 = sbr.rel (%p651) target = $region20
        $region19: #{vl_encoders_forward.1} parent=11 // pred_region
          _
        $region20: #{vl_encoders_forward.1} parent=11 // pred_fallthru
          _
        // Predicated region
        $region21: #{vl_encoders_forward.1} parent=11 // pred_check
          %p654 = pneg %p100
        $region22: #{vl_encoders_forward.1} parent=11 // pred_check_branch
          %656 = sbr.rel (%p654) target = $region24
        $region23: #{vl_encoders_forward.1} parent=11 // pred_region
          _
        $region24: #{vl_encoders_forward.1} parent=11 // pred_fallthru
          _
        // Predicated region
        $region25: #{vl_encoders_forward.1} parent=11 // pred_check
          %p657 = pneg %p121
        $region26: #{vl_encoders_forward.1} parent=11 // pred_check_branch
          %659 = sbr.rel (%p657) target = $region28
        $region27: #{vl_encoders_forward.1} parent=11 // pred_region
          _
        $region28: #{vl_encoders_forward.1} parent=11 // pred_fallthru
          _
        // Predicated region
        $region29: #{vl_encoders_forward.1} parent=11 // pred_check
          %p660 = pneg %p142
        $region30: #{vl_encoders_forward.1} parent=11 // pred_check_branch
          %662 = sbr.rel (%p660) target = $region32
        $region31: #{vl_encoders_forward.1} parent=11 // pred_region
          %s664 = ssub.s32 3072, 3072
          %665 = vsyncadd [#allocation4], %s664
          %s666 = sshll.u32 [#allocation3], 4
          %s667 = int_to_ptr.vmem [resolvable:$true] %s666
          %672 = dma.hbm_to_vmem [thread:$0]  %s4, 3072, %s667, [#allocation4], 128, 128, 8
        $region32: #{vl_encoders_forward.1} parent=11 // pred_fallthru
          _
        // Predicated region
        $region33: #{vl_encoders_forward.1} parent=11 // pred_check
          %p673 = pneg %p163
        $region34: #{vl_encoders_forward.1} parent=11 // pred_check_branch
          %675 = sbr.rel (%p673) target = $region36
        $region35: #{vl_encoders_forward.1} parent=11 // pred_region
          _
        $region36: #{vl_encoders_forward.1} parent=11 // pred_fallthru
          _
        // Predicated region
        $region37: #{vl_encoders_forward.1} parent=11 // pred_check
          %p676 = pneg %p184
        $region38: #{vl_encoders_forward.1} parent=11 // pred_check_branch
          %678 = sbr.rel (%p676) target = $region40
        $region39: #{vl_encoders_forward.1} parent=11 // pred_region
          %s680 = ssub.s32 32, 32
          %681 = vsyncadd [#allocation7], %s680
          %s683 = sshll.u32 [#allocation6], 4
          %s684 = int_to_ptr.vmem [resolvable:$true] %s683
          %686 = dma.hbm_to_vmem [thread:$0]  %s6, 32, %s684, [#allocation7]
        $region40: #{vl_encoders_forward.1} parent=11 // pred_fallthru
          _
        // Predicated region
        $region41: #{vl_encoders_forward.1} parent=11 // pred_check
          %p687 = pneg %p205
        $region42: #{vl_encoders_forward.1} parent=11 // pred_check_branch
          %689 = sbr.rel (%p687) target = $region44
        $region43: #{vl_encoders_forward.1} parent=11 // pred_region
          %s691 = ssub.s32 16, 16
          %692 = vsyncadd [#allocation7], %s691
          %s694 = sshll.u32 [#allocation8], 4
          %s695 = int_to_ptr.vmem [resolvable:$true] %s694
          %697 = dma.hbm_to_vmem [thread:$0]  %s7, 16, %s695, [#allocation7]
        $region44: #{vl_encoders_forward.1} parent=11 // pred_fallthru
          _
        // Predicated region
        $region45: #{vl_encoders_forward.1} parent=11 // pred_check
          %p698 = pneg %p226
        $region46: #{vl_encoders_forward.1} parent=11 // pred_check_branch
          %700 = sbr.rel (%p698) target = $region48
        $region47: #{vl_encoders_forward.1} parent=11 // pred_region
          %s702 = ssub.s32 16, 16
          %703 = vsyncadd [#allocation10], %s702
          %s705 = sshll.u32 [#allocation9], 4
          %s706 = int_to_ptr.vmem [resolvable:$true] %s705
          %708 = dma.hbm_to_vmem [thread:$0]  %s8, 16, %s706, [#allocation10]
        $region48: #{vl_encoders_forward.1} parent=11 // pred_fallthru
          _
        // Predicated region
        $region49: #{vl_encoders_forward.1} parent=11 // pred_check
          %p709 = pneg %p247
        $region50: #{vl_encoders_forward.1} parent=11 // pred_check_branch
          %711 = sbr.rel (%p709) target = $region52
        $region51: #{vl_encoders_forward.1} parent=11 // pred_region
          _
        $region52: #{vl_encoders_forward.1} parent=11 // pred_fallthru
          _
        // Predicated region
        $region53: #{vl_encoders_forward.1} parent=11 // pred_check
          %p712 = pneg %p528
        $region54: #{vl_encoders_forward.1} parent=11 // pred_check_branch
          %714 = sbr.rel (%p712) target = $region56
        $region55: #{vl_encoders_forward.1} parent=11 // pred_region
          _
        $region56: #{vl_encoders_forward.1} parent=11 // pred_fallthru
          _
        // Predicated region
        $region57: #{vl_encoders_forward.1} parent=11 // pred_check
          %p715 = pneg %p549
        $region58: #{vl_encoders_forward.1} parent=11 // pred_check_branch
          %717 = sbr.rel (%p715) target = $region60
        $region59: #{vl_encoders_forward.1} parent=11 // pred_region
          %s719 = ssub.s32 32, 32
          %720 = vsyncadd [#allocation7], %s719
          %s722 = sshll.u32 [#allocation19], 4
          %s723 = int_to_ptr.vmem [resolvable:$true] %s722
          %725 = dma.hbm_to_vmem [thread:$0]  %s21, 32, %s723, [#allocation7]
        $region60: #{vl_encoders_forward.1} parent=11 // pred_fallthru
          _
        // Predicated region
        $region61: #{vl_encoders_forward.1} parent=11 // pred_check
          %p726 = pneg %p570
        $region62: #{vl_encoders_forward.1} parent=11 // pred_check_branch
          %728 = sbr.rel (%p726) target = $region64
        $region63: #{vl_encoders_forward.1} parent=11 // pred_region
          %s730 = ssub.s32 2048, 2048
          %731 = vsyncadd [#allocation10], %s730
          %s732 = sshll.u32 [#allocation20], 4
          %s733 = int_to_ptr.vmem [resolvable:$true] %s732
          %738 = dma.hbm_to_vmem [thread:$0]  %s22, 2048, %s733, [#allocation10], 64, 64, 4
        $region64: #{vl_encoders_forward.1} parent=11 // pred_fallthru
          _
        // Predicated region
        $region65: #{vl_encoders_forward.1} parent=11 // pred_check
          %p739 = pneg %p591
        $region66: #{vl_encoders_forward.1} parent=11 // pred_check_branch
          %741 = sbr.rel (%p739) target = $region68
        $region67: #{vl_encoders_forward.1} parent=11 // pred_region
          %s743 = ssub.s32 16, 16
          %744 = vsyncadd [#allocation22], %s743
          %s746 = sshll.u32 [#allocation21], 4
          %s747 = int_to_ptr.vmem [resolvable:$true] %s746
          %749 = dma.hbm_to_vmem [thread:$0]  %s23, 16, %s747, [#allocation22]
        $region68: #{vl_encoders_forward.1} parent=11 // pred_fallthru
          _
      $region12: #{vl_encoders_forward.1} parent=5 // pred_fallthru
        _
      %p750 = scmp.lt.s32.totalorder %s37, 2
      // Predicated region
      $region69: #{vl_encoders_forward.1} parent=5 // pred_check
        %p751 = pneg %p750
      $region70: #{vl_encoders_forward.1} parent=5 // pred_check_branch
        %753 = sbr.rel (%p751) target = $region72
      $region71: #{vl_encoders_forward.1} parent=5 // pred_region
        // Predicated region
        $region73: #{vl_encoders_forward.1} parent=71 // pred_check
          %p754 = pneg %p267
        $region74: #{vl_encoders_forward.1} parent=71 // pred_check_branch
          %756 = sbr.rel (%p754) target = $region76
        $region75: #{vl_encoders_forward.1} parent=71 // pred_region
          %s757 = sand.u32 %s37, 1
          %s758 = scalar_lea.sflag [#allocation4], %s757
          %s759 = sand.u32 %s257, 1
          %s760 = smul.addr %s759, 256
          %s761 = scalar_lea.vmem [#allocation11], %s760
          %s763 = ssub.s32 4096, 4096
          %764 = vsyncadd %s758, %s763
          %s765 = smul.addr %s37, 64
          %s766 = smul.addr %s765, 64
          %s767 = scalar_lea.hbm %s10, %s766
          %s768 = sshll.u32 %s761, 4
          %s769 = int_to_ptr.vmem [resolvable:$true] %s768
          %774 = dma.hbm_to_vmem [thread:$0]  %s767, 4096, %s769, %s758, 128, 128, 8
        $region76: #{vl_encoders_forward.1} parent=71 // pred_fallthru
          _
        // Predicated region
        $region77: #{vl_encoders_forward.1} parent=71 // pred_check
          %p775 = pneg %p293
        $region78: #{vl_encoders_forward.1} parent=71 // pred_check_branch
          %777 = sbr.rel (%p775) target = $region80
        $region79: #{vl_encoders_forward.1} parent=71 // pred_region
          %s778 = sand.u32 %s37, 1
          %s779 = scalar_lea.sflag [#allocation4], %s778
          %s780 = sand.u32 %s283, 1
          %s781 = smul.addr %s780, 2
          %s782 = scalar_lea.vmem [#allocation12], %s781
          %s784 = ssub.s32 32, 32
          %785 = vsyncadd %s779, %s784
          %s786 = smul.addr %s37, 2
          %s787 = smul.addr %s786, 16
          %s788 = scalar_lea.hbm %s11, %s787
          %s790 = sshll.u32 %s782, 4
          %s791 = int_to_ptr.vmem [resolvable:$true] %s790
          %793 = dma.hbm_to_vmem [thread:$0]  %s788, 32, %s791, %s779
        $region80: #{vl_encoders_forward.1} parent=71 // pred_fallthru
          _
        // Predicated region
        $region81: #{vl_encoders_forward.1} parent=71 // pred_check
          %p794 = pneg %p319
        $region82: #{vl_encoders_forward.1} parent=71 // pred_check_branch
          %796 = sbr.rel (%p794) target = $region84
        $region83: #{vl_encoders_forward.1} parent=71 // pred_region
          %p797 = scmp.lt.s32.totalorder %s37, 1
          %s798 = scalar_select %p797, %s37, 1
          %s799 = smul.addr %s798, 128
          %s800 = smul.addr %s799, 4
          %s801 = scalar_lea.vmem %s12, %s800
        $region84: #{vl_encoders_forward.1} parent=71 // pred_fallthru
          _
        // Predicated region
        $region85: #{vl_encoders_forward.1} parent=71 // pred_check
          %p802 = pneg %p345
        $region86: #{vl_encoders_forward.1} parent=71 // pred_check_branch
          %804 = sbr.rel (%p802) target = $region88
        $region87: #{vl_encoders_forward.1} parent=71 // pred_region
          %p805 = scmp.lt.s32.totalorder %s37, 1
          %s806 = scalar_select %p805, %s37, 1
          %s807 = smul.addr %s806, 4
          %s808 = scalar_lea.vmem %s13, %s807
        $region88: #{vl_encoders_forward.1} parent=71 // pred_fallthru
          _
        // Predicated region
        $region89: #{vl_encoders_forward.1} parent=71 // pred_check
          %p809 = pneg %p371
        $region90: #{vl_encoders_forward.1} parent=71 // pred_check_branch
          %811 = sbr.rel (%p809) target = $region92
        $region91: #{vl_encoders_forward.1} parent=71 // pred_region
          %s812 = sand.u32 %s37, 1
          %s813 = scalar_lea.sflag [#allocation4], %s812
          %s814 = sand.u32 %s361, 1
          %s815 = smul.addr %s814, 256
          %s816 = scalar_lea.vmem [#allocation13], %s815
          %s818 = ssub.s32 4096, 4096
          %819 = vsyncadd %s813, %s818
          %s820 = smul.addr %s37, 64
          %s821 = smul.addr %s820, 64
          %s822 = scalar_lea.hbm %s14, %s821
          %s823 = sshll.u32 %s816, 4
          %s824 = int_to_ptr.vmem [resolvable:$true] %s823
          %829 = dma.hbm_to_vmem [thread:$0]  %s822, 4096, %s824, %s813, 128, 128, 8
        $region92: #{vl_encoders_forward.1} parent=71 // pred_fallthru
          _
        // Predicated region
        $region93: #{vl_encoders_forward.1} parent=71 // pred_check
          %p830 = pneg %p397
        $region94: #{vl_encoders_forward.1} parent=71 // pred_check_branch
          %832 = sbr.rel (%p830) target = $region96
        $region95: #{vl_encoders_forward.1} parent=71 // pred_region
          %s833 = sand.u32 %s37, 1
          %s834 = scalar_lea.sflag [#allocation4], %s833
          %s835 = sand.u32 %s387, 1
          %s836 = smul.addr %s835, 2
          %s837 = scalar_lea.vmem [#allocation14], %s836
          %s839 = ssub.s32 32, 32
          %840 = vsyncadd %s834, %s839
          %s841 = smul.addr %s37, 2
          %s842 = smul.addr %s841, 16
          %s843 = scalar_lea.hbm %s15, %s842
          %s845 = sshll.u32 %s837, 4
          %s846 = int_to_ptr.vmem [resolvable:$true] %s845
          %848 = dma.hbm_to_vmem [thread:$0]  %s843, 32, %s846, %s834
        $region96: #{vl_encoders_forward.1} parent=71 // pred_fallthru
          _
        // Predicated region
        $region97: #{vl_encoders_forward.1} parent=71 // pred_check
          %p849 = pneg %p423
        $region98: #{vl_encoders_forward.1} parent=71 // pred_check_branch
          %851 = sbr.rel (%p849) target = $region100
        $region99: #{vl_encoders_forward.1} parent=71 // pred_region
          %s852 = sand.u32 %s37, 1
          %s853 = scalar_lea.sflag [#allocation4], %s852
          %s854 = sand.u32 %s413, 1
          %s855 = smul.addr %s854, 512
          %s856 = scalar_lea.vmem [#allocation15], %s855
          %s858 = ssub.s32 8192, 8192
          %859 = vsyncadd %s853, %s858
          %s860 = smul.addr %s37, 128
          %s861 = smul.addr %s860, 64
          %s862 = scalar_lea.hbm %s16, %s861
          %s863 = sshll.u32 %s856, 4
          %s864 = int_to_ptr.vmem [resolvable:$true] %s863
          %869 = dma.hbm_to_vmem [thread:$0]  %s862, 8192, %s864, %s853, 256, 256, 16
        $region100: #{vl_encoders_forward.1} parent=71 // pred_fallthru
          _
        // Predicated region
        $region101: #{vl_encoders_forward.1} parent=71 // pred_check
          %p870 = pneg %p449
        $region102: #{vl_encoders_forward.1} parent=71 // pred_check_branch
          %872 = sbr.rel (%p870) target = $region104
        $region103: #{vl_encoders_forward.1} parent=71 // pred_region
          %s873 = sand.u32 %s37, 1
          %s874 = scalar_lea.sflag [#allocation4], %s873
          %s875 = sand.u32 %s439, 1
          %s876 = smul.addr %s875, 512
          %s877 = scalar_lea.vmem [#allocation16], %s876
          %s879 = ssub.s32 8192, 8192
          %880 = vsyncadd %s874, %s879
          %s881 = smul.addr %s37, 128
          %s882 = smul.addr %s881, 64
          %s883 = scalar_lea.hbm %s17, %s882
          %s884 = sshll.u32 %s877, 4
          %s885 = int_to_ptr.vmem [resolvable:$true] %s884
          %890 = dma.hbm_to_vmem [thread:$0]  %s883, 8192, %s885, %s874, 128, 128, 8
        $region104: #{vl_encoders_forward.1} parent=71 // pred_fallthru
          _
        // Predicated region
        $region105: #{vl_encoders_forward.1} parent=71 // pred_check
          %p891 = pneg %p475
        $region106: #{vl_encoders_forward.1} parent=71 // pred_check_branch
          %893 = sbr.rel (%p891) target = $region108
        $region107: #{vl_encoders_forward.1} parent=71 // pred_region
          %s894 = sand.u32 %s37, 1
          %s895 = scalar_lea.sflag [#allocation4], %s894
          %s896 = sand.u32 %s465, 1
          %s897 = smul.addr %s896, 2
          %s898 = scalar_lea.vmem [#allocation17], %s897
          %s900 = ssub.s32 32, 32
          %901 = vsyncadd %s895, %s900
          %s902 = smul.addr %s37, 2
          %s903 = smul.addr %s902, 16
          %s904 = scalar_lea.hbm %s18, %s903
          %s906 = sshll.u32 %s898, 4
          %s907 = int_to_ptr.vmem [resolvable:$true] %s906
          %909 = dma.hbm_to_vmem [thread:$0]  %s904, 32, %s907, %s895
        $region108: #{vl_encoders_forward.1} parent=71 // pred_fallthru
          _
        // Predicated region
        $region109: #{vl_encoders_forward.1} parent=71 // pred_check
          %p910 = pneg %p501
        $region110: #{vl_encoders_forward.1} parent=71 // pred_check_branch
          %912 = sbr.rel (%p910) target = $region112
        $region111: #{vl_encoders_forward.1} parent=71 // pred_region
          %s913 = sand.u32 %s37, 1
          %s914 = scalar_lea.sflag [#allocation4], %s913
          %s915 = sand.u32 %s491, 1
          %s916 = smul.addr %s915, 2
          %s917 = scalar_lea.vmem [#allocation18], %s916
          %s919 = ssub.s32 32, 32
          %920 = vsyncadd %s914, %s919
          %s921 = smul.addr %s37, 2
          %s922 = smul.addr %s921, 16
          %s923 = scalar_lea.hbm %s19, %s922
          %s925 = sshll.u32 %s917, 4
          %s926 = int_to_ptr.vmem [resolvable:$true] %s925
          %928 = dma.hbm_to_vmem [thread:$0]  %s923, 32, %s926, %s914
        $region112: #{vl_encoders_forward.1} parent=71 // pred_fallthru
          _
      $region72: #{vl_encoders_forward.1} parent=5 // pred_fallthru
        _
      %p929 = scmp.le.s32.totalorder 1, %s37
      %p930 = scmp.lt.s32.totalorder %s37, 3
      %p931 = pnand %p929, %p930
      %p932 = pneg %p931
      // Predicated region
      $region113: #{vl_encoders_forward.1} parent=5 // pred_check
        _
      $region114: #{vl_encoders_forward.1} parent=5 // pred_check_branch
        %934 = sbr.rel (%p931) target = $region116
      $region115: #{vl_encoders_forward.1} parent=5 // pred_region
        %s935 = ssub.s32 %s37, 1
        // Predicated region
        $region117: #{vl_encoders_forward.1} parent=115 // pred_check
          %p936 = pneg %p142
        $region118: #{vl_encoders_forward.1} parent=115 // pred_check_branch
          %938 = sbr.rel (%p936) target = $region120
        $region119: #{vl_encoders_forward.1} parent=115 // pred_region
          %939 = dma.done [#allocation4], 3072
        $region120: #{vl_encoders_forward.1} parent=115 // pred_fallthru
          _
        // Predicated region
        $region121: #{vl_encoders_forward.1} parent=115 // pred_check
          %p940 = pneg %p184
        $region122: #{vl_encoders_forward.1} parent=115 // pred_check_branch
          %942 = sbr.rel (%p940) target = $region124
        $region123: #{vl_encoders_forward.1} parent=115 // pred_region
          %943 = dma.done [#allocation7], 32
        $region124: #{vl_encoders_forward.1} parent=115 // pred_fallthru
          _
        // Predicated region
        $region125: #{vl_encoders_forward.1} parent=115 // pred_check
          %p944 = pneg %p205
        $region126: #{vl_encoders_forward.1} parent=115 // pred_check_branch
          %946 = sbr.rel (%p944) target = $region128
        $region127: #{vl_encoders_forward.1} parent=115 // pred_region
          %947 = dma.done [#allocation7], 16
        $region128: #{vl_encoders_forward.1} parent=115 // pred_fallthru
          _
        // Predicated region
        $region129: #{vl_encoders_forward.1} parent=115 // pred_check
          %p948 = pneg %p226
        $region130: #{vl_encoders_forward.1} parent=115 // pred_check_branch
          %950 = sbr.rel (%p948) target = $region132
        $region131: #{vl_encoders_forward.1} parent=115 // pred_region
          %951 = dma.done [#allocation10], 16
        $region132: #{vl_encoders_forward.1} parent=115 // pred_fallthru
          _
        %s952 = sand.u32 %s42, 1
        %s953 = scalar_lea.sflag [#allocation4], %s952
        %s954 = sand.u32 %s260, 1
        %s955 = smul.addr %s954, 256
        %s956 = scalar_lea.vmem [#allocation11], %s955
        // Predicated region
        $region133: #{vl_encoders_forward.1} parent=115 // pred_check
          %p957 = pneg %p273
        $region134: #{vl_encoders_forward.1} parent=115 // pred_check_branch
          %959 = sbr.rel (%p957) target = $region136
        $region135: #{vl_encoders_forward.1} parent=115 // pred_region
          %960 = dma.done %s953, 4096
        $region136: #{vl_encoders_forward.1} parent=115 // pred_fallthru
          _
        %s961 = sand.u32 %s42, 1
        %s962 = scalar_lea.sflag [#allocation4], %s961
        %s963 = sand.u32 %s286, 1
        %s964 = smul.addr %s963, 2
        %s965 = scalar_lea.vmem [#allocation12], %s964
        // Predicated region
        $region137: #{vl_encoders_forward.1} parent=115 // pred_check
          %p966 = pneg %p299
        $region138: #{vl_encoders_forward.1} parent=115 // pred_check_branch
          %968 = sbr.rel (%p966) target = $region140
        $region139: #{vl_encoders_forward.1} parent=115 // pred_region
          %969 = dma.done %s962, 32
        $region140: #{vl_encoders_forward.1} parent=115 // pred_fallthru
          _
        %s970 = sand.u32 %s42, 1
        %s971 = scalar_lea.sflag [#allocation4], %s970
        %s972 = sand.u32 %s364, 1
        %s973 = smul.addr %s972, 256
        %s974 = scalar_lea.vmem [#allocation13], %s973
        // Predicated region
        $region141: #{vl_encoders_forward.1} parent=115 // pred_check
          %p975 = pneg %p377
        $region142: #{vl_encoders_forward.1} parent=115 // pred_check_branch
          %977 = sbr.rel (%p975) target = $region144
        $region143: #{vl_encoders_forward.1} parent=115 // pred_region
          %978 = dma.done %s971, 4096
        $region144: #{vl_encoders_forward.1} parent=115 // pred_fallthru
          _
        %s979 = sand.u32 %s42, 1
        %s980 = scalar_lea.sflag [#allocation4], %s979
        %s981 = sand.u32 %s390, 1
        %s982 = smul.addr %s981, 2
        %s983 = scalar_lea.vmem [#allocation14], %s982
        // Predicated region
        $region145: #{vl_encoders_forward.1} parent=115 // pred_check
          %p984 = pneg %p403
        $region146: #{vl_encoders_forward.1} parent=115 // pred_check_branch
          %986 = sbr.rel (%p984) target = $region148
        $region147: #{vl_encoders_forward.1} parent=115 // pred_region
          %987 = dma.done %s980, 32
        $region148: #{vl_encoders_forward.1} parent=115 // pred_fallthru
          _
        %s988 = sand.u32 %s42, 1
        %s989 = scalar_lea.sflag [#allocation4], %s988
        %s990 = sand.u32 %s416, 1
        %s991 = smul.addr %s990, 512
        %s992 = scalar_lea.vmem [#allocation15], %s991
        // Predicated region
        $region149: #{vl_encoders_forward.1} parent=115 // pred_check
          %p993 = pneg %p429
        $region150: #{vl_encoders_forward.1} parent=115 // pred_check_branch
          %995 = sbr.rel (%p993) target = $region152
        $region151: #{vl_encoders_forward.1} parent=115 // pred_region
          %996 = dma.done %s989, 8192
        $region152: #{vl_encoders_forward.1} parent=115 // pred_fallthru
          _
        %s997 = sand.u32 %s42, 1
        %s998 = scalar_lea.sflag [#allocation4], %s997
        %s999 = sand.u32 %s442, 1
        %s1000 = smul.addr %s999, 512
        %s1001 = scalar_lea.vmem [#allocation16], %s1000
        // Predicated region
        $region153: #{vl_encoders_forward.1} parent=115 // pred_check
          %p1002 = pneg %p455
        $region154: #{vl_encoders_forward.1} parent=115 // pred_check_branch
          %1004 = sbr.rel (%p1002) target = $region156
        $region155: #{vl_encoders_forward.1} parent=115 // pred_region
          %1005 = dma.done %s998, 8192
        $region156: #{vl_encoders_forward.1} parent=115 // pred_fallthru
          _
        %s1006 = sand.u32 %s42, 1
        %s1007 = scalar_lea.sflag [#allocation4], %s1006
        %s1008 = sand.u32 %s468, 1
        %s1009 = smul.addr %s1008, 2
        %s1010 = scalar_lea.vmem [#allocation17], %s1009
        // Predicated region
        $region157: #{vl_encoders_forward.1} parent=115 // pred_check
          %p1011 = pneg %p481
        $region158: #{vl_encoders_forward.1} parent=115 // pred_check_branch
          %1013 = sbr.rel (%p1011) target = $region160
        $region159: #{vl_encoders_forward.1} parent=115 // pred_region
          %1014 = dma.done %s1007, 32
        $region160: #{vl_encoders_forward.1} parent=115 // pred_fallthru
          _
        %s1015 = sand.u32 %s42, 1
        %s1016 = scalar_lea.sflag [#allocation4], %s1015
        %s1017 = sand.u32 %s494, 1
        %s1018 = smul.addr %s1017, 2
        %s1019 = scalar_lea.vmem [#allocation18], %s1018
        // Predicated region
        $region161: #{vl_encoders_forward.1} parent=115 // pred_check
          %p1020 = pneg %p507
        $region162: #{vl_encoders_forward.1} parent=115 // pred_check_branch
          %1022 = sbr.rel (%p1020) target = $region164
        $region163: #{vl_encoders_forward.1} parent=115 // pred_region
          %1023 = dma.done %s1016, 32
        $region164: #{vl_encoders_forward.1} parent=115 // pred_fallthru
          _
        // Predicated region
        $region165: #{vl_encoders_forward.1} parent=115 // pred_check
          %p1024 = pneg %p549
        $region166: #{vl_encoders_forward.1} parent=115 // pred_check_branch
          %1026 = sbr.rel (%p1024) target = $region168
        $region167: #{vl_encoders_forward.1} parent=115 // pred_region
          %1027 = dma.done [#allocation7], 32
        $region168: #{vl_encoders_forward.1} parent=115 // pred_fallthru
          _
        // Predicated region
        $region169: #{vl_encoders_forward.1} parent=115 // pred_check
          %p1028 = pneg %p570
        $region170: #{vl_encoders_forward.1} parent=115 // pred_check_branch
          %1030 = sbr.rel (%p1028) target = $region172
        $region171: #{vl_encoders_forward.1} parent=115 // pred_region
          %1031 = dma.done [#allocation10], 2048
        $region172: #{vl_encoders_forward.1} parent=115 // pred_fallthru
          _
        // Predicated region
        $region173: #{vl_encoders_forward.1} parent=115 // pred_check
          %p1032 = pneg %p591
        $region174: #{vl_encoders_forward.1} parent=115 // pred_check_branch
          %1034 = sbr.rel (%p1032) target = $region176
        $region175: #{vl_encoders_forward.1} parent=115 // pred_region
          %1035 = dma.done [#allocation22], 16
        $region176: #{vl_encoders_forward.1} parent=115 // pred_fallthru
          _
        %p1036 = pneg %p58
        %p1037 = pneg %p55
        %p1038 = pneg %p79
        %p1039 = pneg %p76
        %p1040 = pneg %p100
        %p1041 = pneg %p97
        %p1042 = pneg %p121
        %p1043 = pneg %p118
        %p1044 = pneg %p142
        %p1045 = pneg %p139
        %p1046 = pneg %p163
        %p1047 = pneg %p160
        %p1048 = pneg %p184
        %p1049 = pneg %p181
        %p1050 = pneg %p205
        %p1051 = pneg %p202
        %p1052 = pneg %p226
        %p1053 = pneg %p223
        %p1054 = pneg %p247
        %p1055 = pneg %p244
        %s1056 = sand.u32 %s42, 1
        %s1057 = scalar_lea.sflag [#allocation4], %s1056
        %s1058 = sand.u32 %s260, 1
        %s1059 = smul.addr %s1058, 256
        %s1060 = scalar_lea.vmem [#allocation11], %s1059
        %p1061 = pneg %p273
        %p1062 = pneg %p270
        %s1063 = sand.u32 %s42, 1
        %s1064 = scalar_lea.sflag [#allocation4], %s1063
        %s1065 = sand.u32 %s286, 1
        %s1066 = smul.addr %s1065, 2
        %s1067 = scalar_lea.vmem [#allocation12], %s1066
        %p1068 = pneg %p299
        %p1069 = pneg %p296
        %p1070 = scmp.lt.s32.totalorder %s42, 1
        %s1071 = scalar_select %p1070, %s42, 1
        %s1072 = smul.addr %s1071, 128
        %s1073 = smul.addr %s1072, 4
        %s1074 = scalar_lea.vmem %s12, %s1073
        %p1075 = pneg %p325
        %p1076 = pneg %p322
        %p1077 = scmp.lt.s32.totalorder %s42, 1
        %s1078 = scalar_select %p1077, %s42, 1
        %s1079 = smul.addr %s1078, 4
        %s1080 = scalar_lea.vmem %s13, %s1079
        %p1081 = pneg %p351
        %p1082 = pneg %p348
        %s1083 = sand.u32 %s42, 1
        %s1084 = scalar_lea.sflag [#allocation4], %s1083
        %s1085 = sand.u32 %s364, 1
        %s1086 = smul.addr %s1085, 256
        %s1087 = scalar_lea.vmem [#allocation13], %s1086
        %p1088 = pneg %p377
        %p1089 = pneg %p374
        %s1090 = sand.u32 %s42, 1
        %s1091 = scalar_lea.sflag [#allocation4], %s1090
        %s1092 = sand.u32 %s390, 1
        %s1093 = smul.addr %s1092, 2
        %s1094 = scalar_lea.vmem [#allocation14], %s1093
        %p1095 = pneg %p403
        %p1096 = pneg %p400
        %s1097 = sand.u32 %s42, 1
        %s1098 = scalar_lea.sflag [#allocation4], %s1097
        %s1099 = sand.u32 %s416, 1
        %s1100 = smul.addr %s1099, 512
        %s1101 = scalar_lea.vmem [#allocation15], %s1100
        %p1102 = pneg %p429
        %p1103 = pneg %p426
        %s1104 = sand.u32 %s42, 1
        %s1105 = scalar_lea.sflag [#allocation4], %s1104
        %s1106 = sand.u32 %s442, 1
        %s1107 = smul.addr %s1106, 512
        %s1108 = scalar_lea.vmem [#allocation16], %s1107
        %p1109 = pneg %p455
        %p1110 = pneg %p452
        %s1111 = sand.u32 %s42, 1
        %s1112 = scalar_lea.sflag [#allocation4], %s1111
        %s1113 = sand.u32 %s468, 1
        %s1114 = smul.addr %s1113, 2
        %s1115 = scalar_lea.vmem [#allocation17], %s1114
        %p1116 = pneg %p481
        %p1117 = pneg %p478
        %s1118 = sand.u32 %s42, 1
        %s1119 = scalar_lea.sflag [#allocation4], %s1118
        %s1120 = sand.u32 %s494, 1
        %s1121 = smul.addr %s1120, 2
        %s1122 = scalar_lea.vmem [#allocation18], %s1121
        %p1123 = pneg %p507
        %p1124 = pneg %p504
        %p1125 = pneg %p528
        %p1126 = pneg %p525
        %p1127 = pneg %p549
        %p1128 = pneg %p546
        %p1129 = pneg %p570
        %p1130 = pneg %p567
        %p1131 = pneg %p591
        %p1132 = pneg %p588
        %p1133 = pneg %p612
        %p1134 = pneg %p609
        %p1135 = pneg %p633
        %p1136 = pneg %p630
        %p1137 = scmp.lt.s32.totalorder %s42, 1
        %s1138 = scalar_select %p1137, %s42, 1
        %s1139 = smul.addr %s1138, 128
        %s1140 = smul.addr %s1139, 4
        %s1141 = scalar_lea.vmem %s12, %s1140
        %p1142 = scmp.lt.s32.totalorder %s42, 1
        %s1143 = scalar_select %p1142, %s42, 1
        %s1144 = smul.addr %s1143, 4
        %s1145 = scalar_lea.vmem %s13, %s1144
        %p1147 = scmp.eq.s32.totalorder %s42, 0
        // Predicated region
        $region177: #{vl_encoders_forward.1} parent=115 // pred_check
          %p1148 = pneg %p1147
        $region178: #{vl_encoders_forward.1} parent=115 // pred_check_branch
          %1150 = sbr.rel (%p1148) target = $region180
        $region179: #{vl_encoders_forward.1} parent=115 // pred_region
          %v1151 = vld [vmem:[%s0] sm:$0xff]
          %v1152 = vld [vmem:[%s0 + $0x8] sm:$0xff]
          %v1153 = vld [vmem:[%s0 + $0x10] sm:$0x3]
          %v1154 = vld [vmem:[%s0 + $0x18] sm:$0x3]
          %v1155 = vpack.c.bf16 %v1153, %v1151
          %v1156 = vpack.c.bf16 %v1154, %v1152
          %v1157 = vld [vmem:[#allocation3] sm:$0xff]
          %v1158 = vld [vmem:[#allocation3 + $0x8] sm:$0xff]
          %v1159 = vld [vmem:[#allocation3 + $0x10] sm:$0xff]
          %v1160 = vld [vmem:[#allocation3 + $0x18] sm:$0xff]
          %v1161 = vld [vmem:[#allocation3 + $0x20] sm:$0xff]
          %v1162 = vld [vmem:[#allocation3 + $0x28] sm:$0xff]
          %v1163 = vld [vmem:[#allocation3 + $0x30] sm:$0xff]
          %v1164 = vld [vmem:[#allocation3 + $0x38] sm:$0xff]
          %v1165 = vld [vmem:[#allocation3 + $0x40] sm:$0xff]
          %v1166 = vld [vmem:[#allocation3 + $0x48] sm:$0xff]
          %v1167 = vld [vmem:[#allocation3 + $0x50] sm:$0xff]
          %v1168 = vld [vmem:[#allocation3 + $0x58] sm:$0xff]
          %v1169 = vld [vmem:[#allocation3 + $0x60] sm:$0xff]
          %v1170 = vld [vmem:[#allocation3 + $0x68] sm:$0xff]
          %v1171 = vld [vmem:[#allocation3 + $0x70] sm:$0xff]
          %v1172 = vld [vmem:[#allocation3 + $0x78] sm:$0xff]
          %v1173 = vld [vmem:[#allocation3 + $0x80] sm:$0xff]
          %v1174 = vld [vmem:[#allocation3 + $0x88] sm:$0xff]
          %v1175 = vld [vmem:[#allocation3 + $0x90] sm:$0xff]
          %v1176 = vld [vmem:[#allocation3 + $0x98] sm:$0xff]
          %v1177 = vld [vmem:[#allocation3 + $0xa0] sm:$0xff]
          %v1178 = vld [vmem:[#allocation3 + $0xa8] sm:$0xff]
          %v1179 = vld [vmem:[#allocation3 + $0xb0] sm:$0xff]
          %v1180 = vld [vmem:[#allocation3 + $0xb8] sm:$0xff]
          %v1181 = vld [vmem:[%s1] sm:$0xff]
          %v1182 = vld [vmem:[%s1 + $0x8] sm:$0xff]
          %v1183 = vld [vmem:[%s1 + $0x10] sm:$0x3]
          %v1184 = vld [vmem:[%s1 + $0x18] sm:$0x3]
          %v1209 = vunpack.c.l.b16 %v1157
          %v1210 = vunpack.c.h.b16 %v1157
          %v1211 = vunpack.c.l.b16 %v1158
          %v1212 = vunpack.c.h.b16 %v1158
          %v1213 = vunpack.c.l.b16 %v1159
          %v1214 = vunpack.c.h.b16 %v1159
          %v1215 = vunpack.c.l.b16 %v1160
          %v1216 = vunpack.c.h.b16 %v1160
          %v1217 = vunpack.c.l.b16 %v1161
          %v1218 = vunpack.c.h.b16 %v1161
          %v1219 = vunpack.c.l.b16 %v1162
          %v1220 = vunpack.c.h.b16 %v1162
          %v1221 = vunpack.c.l.b16 %v1163
          %v1222 = vunpack.c.h.b16 %v1163
          %v1223 = vunpack.c.l.b16 %v1164
          %v1224 = vunpack.c.h.b16 %v1164
          %v1225 = vunpack.c.l.b16 %v1165
          %v1226 = vunpack.c.h.b16 %v1165
          %v1227 = vunpack.c.l.b16 %v1166
          %v1228 = vunpack.c.h.b16 %v1166
          %v1229 = vunpack.c.l.b16 %v1167
          %v1230 = vunpack.c.h.b16 %v1167
          %v1231 = vunpack.c.l.b16 %v1168
          %v1232 = vunpack.c.h.b16 %v1168
          %v1233 = vunpack.c.l.b16 %v1169
          %v1234 = vunpack.c.h.b16 %v1169
          %v1235 = vunpack.c.l.b16 %v1170
          %v1236 = vunpack.c.h.b16 %v1170
          %v1237 = vunpack.c.l.b16 %v1171
          %v1238 = vunpack.c.h.b16 %v1171
          %v1239 = vunpack.c.l.b16 %v1172
          %v1240 = vunpack.c.h.b16 %v1172
          %v1241 = vunpack.c.l.b16 %v1173
          %v1242 = vunpack.c.h.b16 %v1173
          %v1243 = vunpack.c.l.b16 %v1174
          %v1244 = vunpack.c.h.b16 %v1174
          %v1245 = vunpack.c.l.b16 %v1175
          %v1246 = vunpack.c.h.b16 %v1175
          %v1247 = vunpack.c.l.b16 %v1176
          %v1248 = vunpack.c.h.b16 %v1176
          %v1249 = vunpack.c.l.b16 %v1177
          %v1250 = vunpack.c.h.b16 %v1177
          %v1251 = vunpack.c.l.b16 %v1178
          %v1252 = vunpack.c.h.b16 %v1178
          %v1253 = vunpack.c.l.b16 %v1179
          %v1254 = vunpack.c.h.b16 %v1179
          %v1255 = vunpack.c.l.b16 %v1180
          %v1256 = vunpack.c.h.b16 %v1180
          %v1257 = vpack.c.b16 %v1211, %v1209
          %v1258 = vpack.c.b16 %v1212, %v1210
          %v1259 = vpack.c.b16 %v1215, %v1213
          %v1260 = vpack.c.b16 %v1216, %v1214
          %v1261 = vpack.c.b16 %v1219, %v1217
          %v1262 = vpack.c.b16 %v1220, %v1218
          %v1263 = vpack.c.b16 %v1223, %v1221
          %v1264 = vpack.c.b16 %v1224, %v1222
          %v1265 = vpack.c.b16 %v1227, %v1225
          %v1266 = vpack.c.b16 %v1228, %v1226
          %v1267 = vpack.c.b16 %v1231, %v1229
          %v1268 = vpack.c.b16 %v1232, %v1230
          %v1269 = vpack.c.b16 %v1235, %v1233
          %v1270 = vpack.c.b16 %v1236, %v1234
          %v1271 = vpack.c.b16 %v1239, %v1237
          %v1272 = vpack.c.b16 %v1240, %v1238
          %v1273 = vpack.c.b16 %v1243, %v1241
          %v1274 = vpack.c.b16 %v1244, %v1242
          %v1275 = vpack.c.b16 %v1247, %v1245
          %v1276 = vpack.c.b16 %v1248, %v1246
          %v1277 = vpack.c.b16 %v1251, %v1249
          %v1278 = vpack.c.b16 %v1252, %v1250
          %v1279 = vpack.c.b16 %v1255, %v1253
          %v1280 = vpack.c.b16 %v1256, %v1254
          %vm1305 = vcmask 523264
          %v1307 = vsel %vm1305, %v1156, 0
          %1309 = vmatprep.subr.bf16.mxu0 %v1272
          %1310 = vmatpush1.bf16.msra.mxu0 %v1271
          %1311 = vmatprep.subr.bf16.mxu0 %v1270
          %1312 = vmatpush1.bf16.msra.mxu0 %v1269
          %1313 = vmatprep.subr.bf16.mxu0 %v1268
          %1314 = vmatpush1.bf16.msra.mxu0 %v1267
          %1315 = vmatprep.subr.bf16.mxu0 %v1266
          %1316 = vmatpush1.bf16.msra.mxu0 %v1265
          %1317 = vmatprep.subr.bf16.mxu0 %v1264
          %1318 = vmatpush1.bf16.msra.mxu0 %v1263
          %1319 = vmatprep.subr.bf16.mxu0 %v1262
          %1320 = vmatpush1.bf16.msra.mxu0 %v1261
          %1321 = vmatprep.subr.bf16.mxu0 %v1260
          %1322 = vmatpush1.bf16.msra.mxu0 %v1259
          %1323 = vmatprep.subr.bf16.mxu0 %v1258
          %1324 = vmatpush1.bf16.msra.mxu0 %v1257
          %1325 = vmatprep.subr.bf16.mxu0 0
          %1326 = vmatpush2.bf16.msra.mxu0 0
          %1327 = vmatprep.subr.bf16.mxu0 0
          %1328 = vmatpush2.bf16.msra.mxu0 0
          %1329 = vmatprep.subr.bf16.mxu0 0
          %1330 = vmatpush2.bf16.msra.mxu0 0
          %1331 = vmatprep.subr.bf16.mxu0 0
          %1332 = vmatpush2.bf16.msra.mxu0 0
          %1333 = vmatprep.subr.bf16.mxu0 %v1280
          %1334 = vmatpush2.bf16.msra.mxu0 %v1279
          %1335 = vmatprep.subr.bf16.mxu0 %v1278
          %1336 = vmatpush2.bf16.msra.mxu0 %v1277
          %1337 = vmatprep.subr.bf16.mxu0 %v1276
          %1338 = vmatpush2.bf16.msra.mxu0 %v1275
          %1339 = vmatprep.subr.bf16.mxu0 %v1274
          %1340 = vmatpush2.bf16.msra.mxu0 %v1273
          %1341 = vmatprep.mubr.bf16.mxu0 %v1307
          %1342 = vmatmul.mubr.bf16.gmra.mxu0 %v1155
          %v1343 = vpop.f32.mrf.mxu0
          %v1344 = vadd.f32 %v1181, %v1343
          %v1345 = vpop.f32.mrf.mxu0
          %v1346 = vadd.f32 %v1182, %v1345
          %v1347 = vpop.f32.mrf.mxu0
          %v1348 = vadd.f32 %v1183, %v1347
          %v1349 = vpop.f32.mrf.mxu0
          %v1350 = vadd.f32 %v1184, %v1349
          %1351 = vdwg.mxu0
          %v1352 = vld [vmem:[%s5] sm:$0x3]
          %v1353 = vld [vmem:[#allocation6] sm:$0x3]
          %v1354 = vadd.f32 %v1344, %v1346
          %1355 = vadd.xlane.f32.xlu0 %v1354
          %v1356 = vpop.xlane.xlu0 %1355
          %vm1357 = vcmask 1041408
          %v1358 = vsel %vm1357, %v1348, 0.0
          %v1359 = vsel %vm1357, %v1350, 0.0
          %v1360 = vadd.f32 %v1358, %v1359
          %1361 = vadd.xlane.f32.xlu0 %v1360
          %v1362 = vpop.xlane.xlu0 %1361
          %v1363 = vrcp.pop 256.0
          %v1364 = vmul.f32 %v1356, %v1363
          %v1365 = vmul.f32 %v1362, %v1363
          %v1366 = vsub.f32 %v1344, %v1364
          %v1367 = vsub.f32 %v1346, %v1364
          %v1368 = vsub.f32 %v1348, %v1365
          %v1369 = vsub.f32 %v1350, %v1365
          %v1370 = vmul.f32 %v1366, %v1366
          %v1371 = vmul.f32 %v1367, %v1367
          %v1372 = vmul.f32 %v1368, %v1368
          %v1373 = vmul.f32 %v1369, %v1369
          %v1374 = vadd.f32 %v1370, %v1371
          %1375 = vadd.xlane.f32.xlu0 %v1374
          %v1376 = vpop.xlane.xlu0 %1375
          %v1377 = vsel %vm1357, %v1372, 0.0
          %v1378 = vsel %vm1357, %v1373, 0.0
          %v1379 = vadd.f32 %v1377, %v1378
          %1380 = vadd.xlane.f32.xlu0 %v1379
          %v1381 = vpop.xlane.xlu0 %1380
          %v1382 = vmul.f32 %v1376, %v1363
          %v1383 = vmul.f32 %v1381, %v1363
          %v1384 = vadd.f32 %v1382, 1e-05
          %v1385 = vadd.f32 %v1383, 1e-05
          %v1386 = vrsqrt.pop %v1384
          %v1387 = vrsqrt.pop %v1385
          %v1388 = vmul.f32 %v1366, %v1386
          %v1389 = vmul.f32 %v1367, %v1386
          %v1390 = vmul.f32 %v1368, %v1387
          %v1391 = vmul.f32 %v1369, %v1387
          %v1393 = vlaneseq
          %v1394 = vshrl.u32 %v1393, 7
          %v1395 = vsub.s32 0, %v1394
          %v1396 = vrot.slane %v1352, %v1395
          %v1397 = vlaneseq
          %v1398 = vshrl.u32 %v1397, 7
          %v1399 = vsub.s32 1, %v1398
          %v1400 = vrot.slane %v1352, %v1399
          %v1403 = vmul.f32 %v1388, %v1396
          %v1404 = vmul.f32 %v1389, %v1400
          %v1405 = vmul.f32 %v1390, %v1396
          %v1406 = vmul.f32 %v1391, %v1400
          %v1408 = vlaneseq
          %v1409 = vshrl.u32 %v1408, 7
          %v1410 = vsub.s32 0, %v1409
          %v1411 = vrot.slane %v1353, %v1410
          %v1412 = vlaneseq
          %v1413 = vshrl.u32 %v1412, 7
          %v1414 = vsub.s32 1, %v1413
          %v1415 = vrot.slane %v1353, %v1414
          %v1418 = vadd.f32 %v1403, %v1411
          %v1419 = vadd.f32 %v1404, %v1415
          %v1420 = vadd.f32 %v1405, %v1411
          %v1421 = vadd.f32 %v1406, %v1415
          %1422 = vst [vmem:[%s24] sm:$0xff] %v1418
          %1423 = vst [vmem:[%s24 + $0x8] sm:$0xff] %v1419
          %1424 = vst [vmem:[%s24 + $0x10] sm:$0x3] %v1420
          %1425 = vst [vmem:[%s24 + $0x18] sm:$0x3] %v1421
          %v1426 = vld [vmem:[%s2] sm:$0xff]
          %v1427 = vld [vmem:[%s2 + $0x8] sm:$0xff]
          %v1428 = vld [vmem:[#allocation8] sm:$0x1]
          %v1429 = vld [vmem:[#allocation9] sm:$0x1]
          %1430 = vadd.xlane.f32.xlu0 %v1426
          %v1431 = vpop.xlane.xlu0 %1430
          %1432 = vadd.xlane.f32.xlu0 %v1427
          %v1433 = vpop.xlane.xlu0 %1432
          %v1434 = vrcp.pop 128.0
          %v1435 = vmul.f32 %v1431, %v1434
          %v1436 = vmul.f32 %v1433, %v1434
          %v1437 = vsub.f32 %v1426, %v1435
          %v1438 = vsub.f32 %v1427, %v1436
          %v1439 = vmul.f32 %v1437, %v1437
          %v1440 = vmul.f32 %v1438, %v1438
          %1441 = vadd.xlane.f32.xlu0 %v1439
          %v1442 = vpop.xlane.xlu0 %1441
          %1443 = vadd.xlane.f32.xlu0 %v1440
          %v1444 = vpop.xlane.xlu0 %1443
          %v1445 = vmul.f32 %v1442, %v1434
          %v1446 = vmul.f32 %v1444, %v1434
          %v1447 = vadd.f32 %v1445, 1e-12
          %v1448 = vadd.f32 %v1446, 1e-12
          %v1449 = vrsqrt.pop %v1447
          %v1450 = vrsqrt.pop %v1448
          %v1451 = vmul.f32 %v1437, %v1449
          %v1452 = vmul.f32 %v1438, %v1450
          %v1454 = vlaneseq
          %v1455 = vshrl.u32 %v1454, 7
          %v1456 = vsub.s32 0, %v1455
          %v1457 = vrot.slane %v1428, %v1456
          %v1459 = vmul.f32 %v1451, %v1457
          %v1460 = vmul.f32 %v1452, %v1457
          %v1462 = vlaneseq
          %v1463 = vshrl.u32 %v1462, 7
          %v1464 = vsub.s32 0, %v1463
          %v1465 = vrot.slane %v1429, %v1464
          %v1467 = vadd.f32 %v1459, %v1465
          %v1468 = vadd.f32 %v1460, %v1465
          %v1469 = vpack.c.bf16 %v1468, %v1467
          %v1470 = vld [vmem:[%s9] sm:$0xff]
          %v1471 = vld [vmem:[%s9 + $0x8] sm:$0xff]
          %v1472 = vld [vmem:[%s9 + $0x10] sm:$0xff]
          %v1473 = vld [vmem:[%s9 + $0x18] sm:$0xff]
          %v1474 = vld [vmem:[%s9 + $0x20] sm:$0xff]
          %v1475 = vld [vmem:[%s9 + $0x28] sm:$0xff]
          %v1476 = vld [vmem:[%s9 + $0x30] sm:$0xff]
          %v1477 = vld [vmem:[%s9 + $0x38] sm:$0xff]
          %v1478 = vld [vmem:[%s9 + $0x40] sm:$0xff]
          %v1479 = vld [vmem:[%s9 + $0x48] sm:$0xff]
          %v1480 = vld [vmem:[%s9 + $0x50] sm:$0xff]
          %v1481 = vld [vmem:[%s9 + $0x58] sm:$0xff]
          %v1482 = vld [vmem:[%s9 + $0x60] sm:$0xff]
          %v1483 = vld [vmem:[%s9 + $0x68] sm:$0xff]
          %v1484 = vld [vmem:[%s9 + $0x70] sm:$0xff]
          %v1485 = vld [vmem:[%s9 + $0x78] sm:$0xff]
          %v1502 = vunpack.c.l.b16 %v1470
          %v1503 = vunpack.c.h.b16 %v1470
          %v1504 = vunpack.c.l.b16 %v1471
          %v1505 = vunpack.c.h.b16 %v1471
          %v1506 = vunpack.c.l.b16 %v1472
          %v1507 = vunpack.c.h.b16 %v1472
          %v1508 = vunpack.c.l.b16 %v1473
          %v1509 = vunpack.c.h.b16 %v1473
          %v1510 = vunpack.c.l.b16 %v1474
          %v1511 = vunpack.c.h.b16 %v1474
          %v1512 = vunpack.c.l.b16 %v1475
          %v1513 = vunpack.c.h.b16 %v1475
          %v1514 = vunpack.c.l.b16 %v1476
          %v1515 = vunpack.c.h.b16 %v1476
          %v1516 = vunpack.c.l.b16 %v1477
          %v1517 = vunpack.c.h.b16 %v1477
          %v1518 = vunpack.c.l.b16 %v1478
          %v1519 = vunpack.c.h.b16 %v1478
          %v1520 = vunpack.c.l.b16 %v1479
          %v1521 = vunpack.c.h.b16 %v1479
          %v1522 = vunpack.c.l.b16 %v1480
          %v1523 = vunpack.c.h.b16 %v1480
          %v1524 = vunpack.c.l.b16 %v1481
          %v1525 = vunpack.c.h.b16 %v1481
          %v1526 = vunpack.c.l.b16 %v1482
          %v1527 = vunpack.c.h.b16 %v1482
          %v1528 = vunpack.c.l.b16 %v1483
          %v1529 = vunpack.c.h.b16 %v1483
          %v1530 = vunpack.c.l.b16 %v1484
          %v1531 = vunpack.c.h.b16 %v1484
          %v1532 = vunpack.c.l.b16 %v1485
          %v1533 = vunpack.c.h.b16 %v1485
          %v1534 = vpack.c.b16 %v1504, %v1502
          %v1535 = vpack.c.b16 %v1505, %v1503
          %v1536 = vpack.c.b16 %v1508, %v1506
          %v1537 = vpack.c.b16 %v1509, %v1507
          %v1538 = vpack.c.b16 %v1512, %v1510
          %v1539 = vpack.c.b16 %v1513, %v1511
          %v1540 = vpack.c.b16 %v1516, %v1514
          %v1541 = vpack.c.b16 %v1517, %v1515
          %v1542 = vpack.c.b16 %v1520, %v1518
          %v1543 = vpack.c.b16 %v1521, %v1519
          %v1544 = vpack.c.b16 %v1524, %v1522
          %v1545 = vpack.c.b16 %v1525, %v1523
          %v1546 = vpack.c.b16 %v1528, %v1526
          %v1547 = vpack.c.b16 %v1529, %v1527
          %v1548 = vpack.c.b16 %v1532, %v1530
          %v1549 = vpack.c.b16 %v1533, %v1531
          %1566 = vmatprep.subr.bf16.mxu0 %v1549
          %1567 = vmatpush1.bf16.msra.mxu0 %v1548
          %1568 = vmatprep.subr.bf16.mxu0 %v1547
          %1569 = vmatpush1.bf16.msra.mxu0 %v1546
          %1570 = vmatprep.subr.bf16.mxu0 %v1545
          %1571 = vmatpush1.bf16.msra.mxu0 %v1544
          %1572 = vmatprep.subr.bf16.mxu0 %v1543
          %1573 = vmatpush1.bf16.msra.mxu0 %v1542
          %1574 = vmatprep.subr.bf16.mxu0 %v1541
          %1575 = vmatpush1.bf16.msra.mxu0 %v1540
          %1576 = vmatprep.subr.bf16.mxu0 %v1539
          %1577 = vmatpush1.bf16.msra.mxu0 %v1538
          %1578 = vmatprep.subr.bf16.mxu0 %v1537
          %1579 = vmatpush1.bf16.msra.mxu0 %v1536
          %1580 = vmatprep.subr.bf16.mxu0 %v1535
          %1581 = vmatpush1.bf16.msra.mxu0 %v1534
          %1582 = vmatprep.subr.bf16.mxu0 0
          %1583 = vmatpush2.bf16.msra.mxu0 0
          %1584 = vmatprep.subr.bf16.mxu0 0
          %1585 = vmatpush2.bf16.msra.mxu0 0
          %1586 = vmatprep.subr.bf16.mxu0 0
          %1587 = vmatpush2.bf16.msra.mxu0 0
          %1588 = vmatprep.subr.bf16.mxu0 0
          %1589 = vmatpush2.bf16.msra.mxu0 0
          %1590 = vmatprep.subr.bf16.mxu0 0
          %1591 = vmatpush2.bf16.msra.mxu0 0
          %1592 = vmatprep.subr.bf16.mxu0 0
          %1593 = vmatpush2.bf16.msra.mxu0 0
          %1594 = vmatprep.subr.bf16.mxu0 0
          %1595 = vmatpush2.bf16.msra.mxu0 0
          %1596 = vmatprep.subr.bf16.mxu0 0
          %1597 = vmatpush2.bf16.msra.mxu0 0
          %1598 = vmatprep.mubr.bf16.mxu0 0
          %1599 = vmatmul.mubr.bf16.gmra.mxu0 %v1469
          %v1600 = vpop.f32.mrf.mxu0
          %v1601 = vadd.f32 0.0, %v1600
          %v1602 = vpop.f32.mrf.mxu0
          %v1603 = vadd.f32 0.0, %v1602
          %v1604 = vpop.f32.mrf.mxu0
          %v1605 = vadd.f32 0.0, %v1604
          %v1606 = vpop.f32.mrf.mxu0
          %v1607 = vadd.f32 0.0, %v1606
          %1608 = vdwg.mxu0
          %v1609 = vpack.c.bf16 %v1605, %v1601
          %v1610 = vpack.c.bf16 %v1607, %v1603
          %v1613 = vunpack.c.l.b16 %v1609
          %v1614 = vunpack.c.l.b16 %v1610
          %v1615 = vunpack.c.h.b16 %v1609
          %v1616 = vunpack.c.h.b16 %v1610
          %v1617 = vpack.c.b16 %v1614, %v1613
          %v1618 = vpack.c.b16 %v1616, %v1615
          %1621 = vst [vmem:[#allocation2] sm:$0xff] %v1617
          %1622 = vst [vmem:[#allocation2 + $0x8] sm:$0xff] %v1618
        $region180: #{vl_encoders_forward.1} parent=115 // pred_fallthru
          _
        %v1623 = vld [vmem:[%s24] sm:$0xff]
        %v1624 = vld [vmem:[%s24 + $0x8] sm:$0xff]
        %v1625 = vld [vmem:[%s24 + $0x10] sm:$0x3]
        %v1626 = vld [vmem:[%s24 + $0x18] sm:$0x3]
        %v1627 = vpack.c.bf16 %v1625, %v1623
        %v1628 = vpack.c.bf16 %v1626, %v1624
        %v1629 = vld [vmem:[#allocation2] sm:$0xff]
        %v1630 = vld [vmem:[#allocation2 + $0x8] sm:$0xff]
        %v1631 = vld [vmem:[%s956] sm:$0xff]
        %v1632 = vld [vmem:[%s956 + $0x8] sm:$0xff]
        %v1633 = vld [vmem:[%s956 + $0x10] sm:$0xff]
        %v1634 = vld [vmem:[%s956 + $0x18] sm:$0xff]
        %v1635 = vld [vmem:[%s956 + $0x20] sm:$0xff]
        %v1636 = vld [vmem:[%s956 + $0x28] sm:$0xff]
        %v1637 = vld [vmem:[%s956 + $0x30] sm:$0xff]
        %v1638 = vld [vmem:[%s956 + $0x38] sm:$0xff]
        %v1639 = vld [vmem:[%s956 + $0x40] sm:$0xff]
        %v1640 = vld [vmem:[%s956 + $0x48] sm:$0xff]
        %v1641 = vld [vmem:[%s956 + $0x50] sm:$0xff]
        %v1642 = vld [vmem:[%s956 + $0x58] sm:$0xff]
        %v1643 = vld [vmem:[%s956 + $0x60] sm:$0xff]
        %v1644 = vld [vmem:[%s956 + $0x68] sm:$0xff]
        %v1645 = vld [vmem:[%s956 + $0x70] sm:$0xff]
        %v1646 = vld [vmem:[%s956 + $0x78] sm:$0xff]
        %v1647 = vld [vmem:[%s956 + $0x80] sm:$0xff]
        %v1648 = vld [vmem:[%s956 + $0x88] sm:$0xff]
        %v1649 = vld [vmem:[%s956 + $0x90] sm:$0xff]
        %v1650 = vld [vmem:[%s956 + $0x98] sm:$0xff]
        %v1651 = vld [vmem:[%s956 + $0xa0] sm:$0xff]
        %v1652 = vld [vmem:[%s956 + $0xa8] sm:$0xff]
        %v1653 = vld [vmem:[%s956 + $0xb0] sm:$0xff]
        %v1654 = vld [vmem:[%s956 + $0xb8] sm:$0xff]
        %v1655 = vld [vmem:[%s956 + $0xc0] sm:$0xff]
        %v1656 = vld [vmem:[%s956 + $0xc8] sm:$0xff]
        %v1657 = vld [vmem:[%s956 + $0xd0] sm:$0xff]
        %v1658 = vld [vmem:[%s956 + $0xd8] sm:$0xff]
        %v1659 = vld [vmem:[%s956 + $0xe0] sm:$0xff]
        %v1660 = vld [vmem:[%s956 + $0xe8] sm:$0xff]
        %v1661 = vld [vmem:[%s956 + $0xf0] sm:$0xff]
        %v1662 = vld [vmem:[%s956 + $0xf8] sm:$0xff]
        %v1663 = vld [vmem:[%s965] sm:$0x3]
        %v1665 = vlaneseq
        %v1666 = vshrl.u32 %v1665, 7
        %v1667 = vsub.s32 0, %v1666
        %v1668 = vrot.slane %v1663, %v1667
        %v1669 = vlaneseq
        %v1670 = vshrl.u32 %v1669, 7
        %v1671 = vsub.s32 1, %v1670
        %v1672 = vrot.slane %v1663, %v1671
        %v1707 = vunpack.c.l.b16 %v1631
        %v1708 = vunpack.c.h.b16 %v1631
        %v1709 = vunpack.c.l.b16 %v1632
        %v1710 = vunpack.c.h.b16 %v1632
        %v1711 = vunpack.c.l.b16 %v1633
        %v1712 = vunpack.c.h.b16 %v1633
        %v1713 = vunpack.c.l.b16 %v1634
        %v1714 = vunpack.c.h.b16 %v1634
        %v1715 = vunpack.c.l.b16 %v1635
        %v1716 = vunpack.c.h.b16 %v1635
        %v1717 = vunpack.c.l.b16 %v1636
        %v1718 = vunpack.c.h.b16 %v1636
        %v1719 = vunpack.c.l.b16 %v1637
        %v1720 = vunpack.c.h.b16 %v1637
        %v1721 = vunpack.c.l.b16 %v1638
        %v1722 = vunpack.c.h.b16 %v1638
        %v1723 = vunpack.c.l.b16 %v1639
        %v1724 = vunpack.c.h.b16 %v1639
        %v1725 = vunpack.c.l.b16 %v1640
        %v1726 = vunpack.c.h.b16 %v1640
        %v1727 = vunpack.c.l.b16 %v1641
        %v1728 = vunpack.c.h.b16 %v1641
        %v1729 = vunpack.c.l.b16 %v1642
        %v1730 = vunpack.c.h.b16 %v1642
        %v1731 = vunpack.c.l.b16 %v1643
        %v1732 = vunpack.c.h.b16 %v1643
        %v1733 = vunpack.c.l.b16 %v1644
        %v1734 = vunpack.c.h.b16 %v1644
        %v1735 = vunpack.c.l.b16 %v1645
        %v1736 = vunpack.c.h.b16 %v1645
        %v1737 = vunpack.c.l.b16 %v1646
        %v1738 = vunpack.c.h.b16 %v1646
        %v1739 = vunpack.c.l.b16 %v1647
        %v1740 = vunpack.c.h.b16 %v1647
        %v1741 = vunpack.c.l.b16 %v1648
        %v1742 = vunpack.c.h.b16 %v1648
        %v1743 = vunpack.c.l.b16 %v1649
        %v1744 = vunpack.c.h.b16 %v1649
        %v1745 = vunpack.c.l.b16 %v1650
        %v1746 = vunpack.c.h.b16 %v1650
        %v1747 = vunpack.c.l.b16 %v1651
        %v1748 = vunpack.c.h.b16 %v1651
        %v1749 = vunpack.c.l.b16 %v1652
        %v1750 = vunpack.c.h.b16 %v1652
        %v1751 = vunpack.c.l.b16 %v1653
        %v1752 = vunpack.c.h.b16 %v1653
        %v1753 = vunpack.c.l.b16 %v1654
        %v1754 = vunpack.c.h.b16 %v1654
        %v1755 = vunpack.c.l.b16 %v1655
        %v1756 = vunpack.c.h.b16 %v1655
        %v1757 = vunpack.c.l.b16 %v1656
        %v1758 = vunpack.c.h.b16 %v1656
        %v1759 = vunpack.c.l.b16 %v1657
        %v1760 = vunpack.c.h.b16 %v1657
        %v1761 = vunpack.c.l.b16 %v1658
        %v1762 = vunpack.c.h.b16 %v1658
        %v1763 = vunpack.c.l.b16 %v1659
        %v1764 = vunpack.c.h.b16 %v1659
        %v1765 = vunpack.c.l.b16 %v1660
        %v1766 = vunpack.c.h.b16 %v1660
        %v1767 = vunpack.c.l.b16 %v1661
        %v1768 = vunpack.c.h.b16 %v1661
        %v1769 = vunpack.c.l.b16 %v1662
        %v1770 = vunpack.c.h.b16 %v1662
        %v1771 = vpack.c.b16 %v1709, %v1707
        %v1772 = vpack.c.b16 %v1710, %v1708
        %v1773 = vpack.c.b16 %v1713, %v1711
        %v1774 = vpack.c.b16 %v1714, %v1712
        %v1775 = vpack.c.b16 %v1717, %v1715
        %v1776 = vpack.c.b16 %v1718, %v1716
        %v1777 = vpack.c.b16 %v1721, %v1719
        %v1778 = vpack.c.b16 %v1722, %v1720
        %v1779 = vpack.c.b16 %v1725, %v1723
        %v1780 = vpack.c.b16 %v1726, %v1724
        %v1781 = vpack.c.b16 %v1729, %v1727
        %v1782 = vpack.c.b16 %v1730, %v1728
        %v1783 = vpack.c.b16 %v1733, %v1731
        %v1784 = vpack.c.b16 %v1734, %v1732
        %v1785 = vpack.c.b16 %v1737, %v1735
        %v1786 = vpack.c.b16 %v1738, %v1736
        %v1787 = vpack.c.b16 %v1741, %v1739
        %v1788 = vpack.c.b16 %v1742, %v1740
        %v1789 = vpack.c.b16 %v1745, %v1743
        %v1790 = vpack.c.b16 %v1746, %v1744
        %v1791 = vpack.c.b16 %v1749, %v1747
        %v1792 = vpack.c.b16 %v1750, %v1748
        %v1793 = vpack.c.b16 %v1753, %v1751
        %v1794 = vpack.c.b16 %v1754, %v1752
        %v1795 = vpack.c.b16 %v1757, %v1755
        %v1796 = vpack.c.b16 %v1758, %v1756
        %v1797 = vpack.c.b16 %v1761, %v1759
        %v1798 = vpack.c.b16 %v1762, %v1760
        %v1799 = vpack.c.b16 %v1765, %v1763
        %v1800 = vpack.c.b16 %v1766, %v1764
        %v1801 = vpack.c.b16 %v1769, %v1767
        %v1802 = vpack.c.b16 %v1770, %v1768
        %1835 = vmatprep.subr.bf16.mxu0 %v1786
        %1836 = vmatpush1.bf16.msra.mxu0 %v1785
        %1837 = vmatprep.subr.bf16.mxu0 %v1784
        %1838 = vmatpush1.bf16.msra.mxu0 %v1783
        %1839 = vmatprep.subr.bf16.mxu0 %v1782
        %1840 = vmatpush1.bf16.msra.mxu0 %v1781
        %1841 = vmatprep.subr.bf16.mxu0 %v1780
        %1842 = vmatpush1.bf16.msra.mxu0 %v1779
        %1843 = vmatprep.subr.bf16.mxu0 %v1778
        %1844 = vmatpush1.bf16.msra.mxu0 %v1777
        %1845 = vmatprep.subr.bf16.mxu0 %v1776
        %1846 = vmatpush1.bf16.msra.mxu0 %v1775
        %1847 = vmatprep.subr.bf16.mxu0 %v1774
        %1848 = vmatpush1.bf16.msra.mxu0 %v1773
        %1849 = vmatprep.subr.bf16.mxu0 %v1772
        %1850 = vmatpush1.bf16.msra.mxu0 %v1771
        %1851 = vmatprep.subr.bf16.mxu0 %v1802
        %1852 = vmatpush2.bf16.msra.mxu0 %v1801
        %1853 = vmatprep.subr.bf16.mxu0 %v1800
        %1854 = vmatpush2.bf16.msra.mxu0 %v1799
        %1855 = vmatprep.subr.bf16.mxu0 %v1798
        %1856 = vmatpush2.bf16.msra.mxu0 %v1797
        %1857 = vmatprep.subr.bf16.mxu0 %v1796
        %1858 = vmatpush2.bf16.msra.mxu0 %v1795
        %1859 = vmatprep.subr.bf16.mxu0 %v1794
        %1860 = vmatpush2.bf16.msra.mxu0 %v1793
        %1861 = vmatprep.subr.bf16.mxu0 %v1792
        %1862 = vmatpush2.bf16.msra.mxu0 %v1791
        %1863 = vmatprep.subr.bf16.mxu0 %v1790
        %1864 = vmatpush2.bf16.msra.mxu0 %v1789
        %1865 = vmatprep.subr.bf16.mxu0 %v1788
        %1866 = vmatpush2.bf16.msra.mxu0 %v1787
        %1867 = vmatprep.mubr.bf16.mxu0 %v1628
        %1868 = vmatmul.mubr.bf16.gmra.mxu0 %v1627
        %v1869 = vpop.f32.mrf.mxu0
        %v1870 = vadd.f32 %v1668, %v1869
        %v1871 = vpop.f32.mrf.mxu0
        %v1872 = vadd.f32 %v1672, %v1871
        %v1873 = vpop.f32.mrf.mxu0
        %v1874 = vadd.f32 %v1668, %v1873
        %v1875 = vpop.f32.mrf.mxu0
        %v1876 = vadd.f32 %v1672, %v1875
        %1877 = vdwg.mxu0
        %v1878 = vld [vmem:[%s1141] sm:$0xff]
        %v1879 = vld [vmem:[%s1141 + $0x8] sm:$0xff]
        %v1880 = vld [vmem:[%s1141 + $0x10] sm:$0xff]
        %v1881 = vld [vmem:[%s1141 + $0x18] sm:$0xff]
        %v1882 = vld [vmem:[%s1141 + $0x20] sm:$0xff]
        %v1883 = vld [vmem:[%s1141 + $0x28] sm:$0xff]
        %v1884 = vld [vmem:[%s1141 + $0x30] sm:$0xff]
        %v1885 = vld [vmem:[%s1141 + $0x38] sm:$0xff]
        %v1886 = vld [vmem:[%s1141 + $0x40] sm:$0xff]
        %v1887 = vld [vmem:[%s1141 + $0x48] sm:$0xff]
        %v1888 = vld [vmem:[%s1141 + $0x50] sm:$0xff]
        %v1889 = vld [vmem:[%s1141 + $0x58] sm:$0xff]
        %v1890 = vld [vmem:[%s1141 + $0x60] sm:$0xff]
        %v1891 = vld [vmem:[%s1141 + $0x68] sm:$0xff]
        %v1892 = vld [vmem:[%s1141 + $0x70] sm:$0xff]
        %v1893 = vld [vmem:[%s1141 + $0x78] sm:$0xff]
        %v1894 = vld [vmem:[%s1141 + $0x80] sm:$0xff]
        %v1895 = vld [vmem:[%s1141 + $0x88] sm:$0xff]
        %v1896 = vld [vmem:[%s1141 + $0x90] sm:$0xff]
        %v1897 = vld [vmem:[%s1141 + $0x98] sm:$0xff]
        %v1898 = vld [vmem:[%s1141 + $0xa0] sm:$0xff]
        %v1899 = vld [vmem:[%s1141 + $0xa8] sm:$0xff]
        %v1900 = vld [vmem:[%s1141 + $0xb0] sm:$0xff]
        %v1901 = vld [vmem:[%s1141 + $0xb8] sm:$0xff]
        %v1902 = vld [vmem:[%s1141 + $0xc0] sm:$0xff]
        %v1903 = vld [vmem:[%s1141 + $0xc8] sm:$0xff]
        %v1904 = vld [vmem:[%s1141 + $0xd0] sm:$0xff]
        %v1905 = vld [vmem:[%s1141 + $0xd8] sm:$0xff]
        %v1906 = vld [vmem:[%s1141 + $0xe0] sm:$0xff]
        %v1907 = vld [vmem:[%s1141 + $0xe8] sm:$0xff]
        %v1908 = vld [vmem:[%s1141 + $0xf0] sm:$0xff]
        %v1909 = vld [vmem:[%s1141 + $0xf8] sm:$0xff]
        %v1910 = vld [vmem:[%s1141 + $0x100] sm:$0xff]
        %v1911 = vld [vmem:[%s1141 + $0x108] sm:$0xff]
        %v1912 = vld [vmem:[%s1141 + $0x110] sm:$0xff]
        %v1913 = vld [vmem:[%s1141 + $0x118] sm:$0xff]
        %v1914 = vld [vmem:[%s1141 + $0x120] sm:$0xff]
        %v1915 = vld [vmem:[%s1141 + $0x128] sm:$0xff]
        %v1916 = vld [vmem:[%s1141 + $0x130] sm:$0xff]
        %v1917 = vld [vmem:[%s1141 + $0x138] sm:$0xff]
        %v1918 = vld [vmem:[%s1141 + $0x140] sm:$0xff]
        %v1919 = vld [vmem:[%s1141 + $0x148] sm:$0xff]
        %v1920 = vld [vmem:[%s1141 + $0x150] sm:$0xff]
        %v1921 = vld [vmem:[%s1141 + $0x158] sm:$0xff]
        %v1922 = vld [vmem:[%s1141 + $0x160] sm:$0xff]
        %v1923 = vld [vmem:[%s1141 + $0x168] sm:$0xff]
        %v1924 = vld [vmem:[%s1141 + $0x170] sm:$0xff]
        %v1925 = vld [vmem:[%s1141 + $0x178] sm:$0xff]
        %v1926 = vld [vmem:[%s1141 + $0x180] sm:$0xff]
        %v1927 = vld [vmem:[%s1141 + $0x188] sm:$0xff]
        %v1928 = vld [vmem:[%s1141 + $0x190] sm:$0xff]
        %v1929 = vld [vmem:[%s1141 + $0x198] sm:$0xff]
        %v1930 = vld [vmem:[%s1141 + $0x1a0] sm:$0xff]
        %v1931 = vld [vmem:[%s1141 + $0x1a8] sm:$0xff]
        %v1932 = vld [vmem:[%s1141 + $0x1b0] sm:$0xff]
        %v1933 = vld [vmem:[%s1141 + $0x1b8] sm:$0xff]
        %v1934 = vld [vmem:[%s1141 + $0x1c0] sm:$0xff]
        %v1935 = vld [vmem:[%s1141 + $0x1c8] sm:$0xff]
        %v1936 = vld [vmem:[%s1141 + $0x1d0] sm:$0xff]
        %v1937 = vld [vmem:[%s1141 + $0x1d8] sm:$0xff]
        %v1938 = vld [vmem:[%s1141 + $0x1e0] sm:$0xff]
        %v1939 = vld [vmem:[%s1141 + $0x1e8] sm:$0xff]
        %v1940 = vld [vmem:[%s1141 + $0x1f0] sm:$0xff]
        %v1941 = vld [vmem:[%s1141 + $0x1f8] sm:$0xff]
        %v1942 = vld [vmem:[%s1145] sm:$0xf]
        %v1944 = vlaneseq
        %v1945 = vshrl.u32 %v1944, 7
        %v1946 = vsub.s32 0, %v1945
        %v1947 = vrot.slane %v1942, %v1946
        %v1948 = vlaneseq
        %v1949 = vshrl.u32 %v1948, 7
        %v1950 = vsub.s32 1, %v1949
        %v1951 = vrot.slane %v1942, %v1950
        %v1952 = vlaneseq
        %v1953 = vshrl.u32 %v1952, 7
        %v1954 = vsub.s32 2, %v1953
        %v1955 = vrot.slane %v1942, %v1954
        %v1956 = vlaneseq
        %v1957 = vshrl.u32 %v1956, 7
        %v1958 = vsub.s32 3, %v1957
        %v1959 = vrot.slane %v1942, %v1958
        %v1966 = vunpack.c.l.b16 %v1629
        %v1967 = vunpack.c.h.b16 %v1629
        %v1968 = vunpack.c.l.b16 %v1630
        %v1969 = vunpack.c.h.b16 %v1630
        %v1970 = vpack.c.b16 %v1968, %v1966
        %v1971 = vpack.c.b16 %v1969, %v1967
        %v2038 = vunpack.c.l.b16 %v1878
        %v2039 = vunpack.c.h.b16 %v1878
        %v2040 = vunpack.c.l.b16 %v1879
        %v2041 = vunpack.c.h.b16 %v1879
        %v2042 = vunpack.c.l.b16 %v1880
        %v2043 = vunpack.c.h.b16 %v1880
        %v2044 = vunpack.c.l.b16 %v1881
        %v2045 = vunpack.c.h.b16 %v1881
        %v2046 = vunpack.c.l.b16 %v1882
        %v2047 = vunpack.c.h.b16 %v1882
        %v2048 = vunpack.c.l.b16 %v1883
        %v2049 = vunpack.c.h.b16 %v1883
        %v2050 = vunpack.c.l.b16 %v1884
        %v2051 = vunpack.c.h.b16 %v1884
        %v2052 = vunpack.c.l.b16 %v1885
        %v2053 = vunpack.c.h.b16 %v1885
        %v2054 = vunpack.c.l.b16 %v1886
        %v2055 = vunpack.c.h.b16 %v1886
        %v2056 = vunpack.c.l.b16 %v1887
        %v2057 = vunpack.c.h.b16 %v1887
        %v2058 = vunpack.c.l.b16 %v1888
        %v2059 = vunpack.c.h.b16 %v1888
        %v2060 = vunpack.c.l.b16 %v1889
        %v2061 = vunpack.c.h.b16 %v1889
        %v2062 = vunpack.c.l.b16 %v1890
        %v2063 = vunpack.c.h.b16 %v1890
        %v2064 = vunpack.c.l.b16 %v1891
        %v2065 = vunpack.c.h.b16 %v1891
        %v2066 = vunpack.c.l.b16 %v1892
        %v2067 = vunpack.c.h.b16 %v1892
        %v2068 = vunpack.c.l.b16 %v1893
        %v2069 = vunpack.c.h.b16 %v1893
        %v2070 = vunpack.c.l.b16 %v1894
        %v2071 = vunpack.c.h.b16 %v1894
        %v2072 = vunpack.c.l.b16 %v1895
        %v2073 = vunpack.c.h.b16 %v1895
        %v2074 = vunpack.c.l.b16 %v1896
        %v2075 = vunpack.c.h.b16 %v1896
        %v2076 = vunpack.c.l.b16 %v1897
        %v2077 = vunpack.c.h.b16 %v1897
        %v2078 = vunpack.c.l.b16 %v1898
        %v2079 = vunpack.c.h.b16 %v1898
        %v2080 = vunpack.c.l.b16 %v1899
        %v2081 = vunpack.c.h.b16 %v1899
        %v2082 = vunpack.c.l.b16 %v1900
        %v2083 = vunpack.c.h.b16 %v1900
        %v2084 = vunpack.c.l.b16 %v1901
        %v2085 = vunpack.c.h.b16 %v1901
        %v2086 = vunpack.c.l.b16 %v1902
        %v2087 = vunpack.c.h.b16 %v1902
        %v2088 = vunpack.c.l.b16 %v1903
        %v2089 = vunpack.c.h.b16 %v1903
        %v2090 = vunpack.c.l.b16 %v1904
        %v2091 = vunpack.c.h.b16 %v1904
        %v2092 = vunpack.c.l.b16 %v1905
        %v2093 = vunpack.c.h.b16 %v1905
        %v2094 = vunpack.c.l.b16 %v1906
        %v2095 = vunpack.c.h.b16 %v1906
        %v2096 = vunpack.c.l.b16 %v1907
        %v2097 = vunpack.c.h.b16 %v1907
        %v2098 = vunpack.c.l.b16 %v1908
        %v2099 = vunpack.c.h.b16 %v1908
        %v2100 = vunpack.c.l.b16 %v1909
        %v2101 = vunpack.c.h.b16 %v1909
        %v2102 = vunpack.c.l.b16 %v1910
        %v2103 = vunpack.c.h.b16 %v1910
        %v2104 = vunpack.c.l.b16 %v1911
        %v2105 = vunpack.c.h.b16 %v1911
        %v2106 = vunpack.c.l.b16 %v1912
        %v2107 = vunpack.c.h.b16 %v1912
        %v2108 = vunpack.c.l.b16 %v1913
        %v2109 = vunpack.c.h.b16 %v1913
        %v2110 = vunpack.c.l.b16 %v1914
        %v2111 = vunpack.c.h.b16 %v1914
        %v2112 = vunpack.c.l.b16 %v1915
        %v2113 = vunpack.c.h.b16 %v1915
        %v2114 = vunpack.c.l.b16 %v1916
        %v2115 = vunpack.c.h.b16 %v1916
        %v2116 = vunpack.c.l.b16 %v1917
        %v2117 = vunpack.c.h.b16 %v1917
        %v2118 = vunpack.c.l.b16 %v1918
        %v2119 = vunpack.c.h.b16 %v1918
        %v2120 = vunpack.c.l.b16 %v1919
        %v2121 = vunpack.c.h.b16 %v1919
        %v2122 = vunpack.c.l.b16 %v1920
        %v2123 = vunpack.c.h.b16 %v1920
        %v2124 = vunpack.c.l.b16 %v1921
        %v2125 = vunpack.c.h.b16 %v1921
        %v2126 = vunpack.c.l.b16 %v1922
        %v2127 = vunpack.c.h.b16 %v1922
        %v2128 = vunpack.c.l.b16 %v1923
        %v2129 = vunpack.c.h.b16 %v1923
        %v2130 = vunpack.c.l.b16 %v1924
        %v2131 = vunpack.c.h.b16 %v1924
        %v2132 = vunpack.c.l.b16 %v1925
        %v2133 = vunpack.c.h.b16 %v1925
        %v2134 = vunpack.c.l.b16 %v1926
        %v2135 = vunpack.c.h.b16 %v1926
        %v2136 = vunpack.c.l.b16 %v1927
        %v2137 = vunpack.c.h.b16 %v1927
        %v2138 = vunpack.c.l.b16 %v1928
        %v2139 = vunpack.c.h.b16 %v1928
        %v2140 = vunpack.c.l.b16 %v1929
        %v2141 = vunpack.c.h.b16 %v1929
        %v2142 = vunpack.c.l.b16 %v1930
        %v2143 = vunpack.c.h.b16 %v1930
        %v2144 = vunpack.c.l.b16 %v1931
        %v2145 = vunpack.c.h.b16 %v1931
        %v2146 = vunpack.c.l.b16 %v1932
        %v2147 = vunpack.c.h.b16 %v1932
        %v2148 = vunpack.c.l.b16 %v1933
        %v2149 = vunpack.c.h.b16 %v1933
        %v2150 = vunpack.c.l.b16 %v1934
        %v2151 = vunpack.c.h.b16 %v1934
        %v2152 = vunpack.c.l.b16 %v1935
        %v2153 = vunpack.c.h.b16 %v1935
        %v2154 = vunpack.c.l.b16 %v1936
        %v2155 = vunpack.c.h.b16 %v1936
        %v2156 = vunpack.c.l.b16 %v1937
        %v2157 = vunpack.c.h.b16 %v1937
        %v2158 = vunpack.c.l.b16 %v1938
        %v2159 = vunpack.c.h.b16 %v1938
        %v2160 = vunpack.c.l.b16 %v1939
        %v2161 = vunpack.c.h.b16 %v1939
        %v2162 = vunpack.c.l.b16 %v1940
        %v2163 = vunpack.c.h.b16 %v1940
        %v2164 = vunpack.c.l.b16 %v1941
        %v2165 = vunpack.c.h.b16 %v1941
        %v2166 = vpack.c.b16 %v2042, %v2038
        %v2167 = vpack.c.b16 %v2043, %v2039
        %v2168 = vpack.c.b16 %v2044, %v2040
        %v2169 = vpack.c.b16 %v2045, %v2041
        %v2170 = vpack.c.b16 %v2050, %v2046
        %v2171 = vpack.c.b16 %v2051, %v2047
        %v2172 = vpack.c.b16 %v2052, %v2048
        %v2173 = vpack.c.b16 %v2053, %v2049
        %v2174 = vpack.c.b16 %v2058, %v2054
        %v2175 = vpack.c.b16 %v2059, %v2055
        %v2176 = vpack.c.b16 %v2060, %v2056
        %v2177 = vpack.c.b16 %v2061, %v2057
        %v2178 = vpack.c.b16 %v2066, %v2062
        %v2179 = vpack.c.b16 %v2067, %v2063
        %v2180 = vpack.c.b16 %v2068, %v2064
        %v2181 = vpack.c.b16 %v2069, %v2065
        %v2182 = vpack.c.b16 %v2074, %v2070
        %v2183 = vpack.c.b16 %v2075, %v2071
        %v2184 = vpack.c.b16 %v2076, %v2072
        %v2185 = vpack.c.b16 %v2077, %v2073
        %v2186 = vpack.c.b16 %v2082, %v2078
        %v2187 = vpack.c.b16 %v2083, %v2079
        %v2188 = vpack.c.b16 %v2084, %v2080
        %v2189 = vpack.c.b16 %v2085, %v2081
        %v2190 = vpack.c.b16 %v2090, %v2086
        %v2191 = vpack.c.b16 %v2091, %v2087
        %v2192 = vpack.c.b16 %v2092, %v2088
        %v2193 = vpack.c.b16 %v2093, %v2089
        %v2194 = vpack.c.b16 %v2098, %v2094
        %v2195 = vpack.c.b16 %v2099, %v2095
        %v2196 = vpack.c.b16 %v2100, %v2096
        %v2197 = vpack.c.b16 %v2101, %v2097
        %v2198 = vpack.c.b16 %v2106, %v2102
        %v2199 = vpack.c.b16 %v2107, %v2103
        %v2200 = vpack.c.b16 %v2108, %v2104
        %v2201 = vpack.c.b16 %v2109, %v2105
        %v2202 = vpack.c.b16 %v2114, %v2110
        %v2203 = vpack.c.b16 %v2115, %v2111
        %v2204 = vpack.c.b16 %v2116, %v2112
        %v2205 = vpack.c.b16 %v2117, %v2113
        %v2206 = vpack.c.b16 %v2122, %v2118
        %v2207 = vpack.c.b16 %v2123, %v2119
        %v2208 = vpack.c.b16 %v2124, %v2120
        %v2209 = vpack.c.b16 %v2125, %v2121
        %v2210 = vpack.c.b16 %v2130, %v2126
        %v2211 = vpack.c.b16 %v2131, %v2127
        %v2212 = vpack.c.b16 %v2132, %v2128
        %v2213 = vpack.c.b16 %v2133, %v2129
        %v2214 = vpack.c.b16 %v2138, %v2134
        %v2215 = vpack.c.b16 %v2139, %v2135
        %v2216 = vpack.c.b16 %v2140, %v2136
        %v2217 = vpack.c.b16 %v2141, %v2137
        %v2218 = vpack.c.b16 %v2146, %v2142
        %v2219 = vpack.c.b16 %v2147, %v2143
        %v2220 = vpack.c.b16 %v2148, %v2144
        %v2221 = vpack.c.b16 %v2149, %v2145
        %v2222 = vpack.c.b16 %v2154, %v2150
        %v2223 = vpack.c.b16 %v2155, %v2151
        %v2224 = vpack.c.b16 %v2156, %v2152
        %v2225 = vpack.c.b16 %v2157, %v2153
        %v2226 = vpack.c.b16 %v2162, %v2158
        %v2227 = vpack.c.b16 %v2163, %v2159
        %v2228 = vpack.c.b16 %v2164, %v2160
        %v2229 = vpack.c.b16 %v2165, %v2161
        %2294 = vmatprep.subr.bf16.mxu0 %v2195
        %2295 = vmatpush1.bf16.msra.mxu0 %v2194
        %2296 = vmatprep.subr.bf16.mxu0 %v2191
        %2297 = vmatpush1.bf16.msra.mxu0 %v2190
        %2298 = vmatprep.subr.bf16.mxu0 %v2187
        %2299 = vmatpush1.bf16.msra.mxu0 %v2186
        %2300 = vmatprep.subr.bf16.mxu0 %v2183
        %2301 = vmatpush1.bf16.msra.mxu0 %v2182
        %2302 = vmatprep.subr.bf16.mxu0 %v2179
        %2303 = vmatpush1.bf16.msra.mxu0 %v2178
        %2304 = vmatprep.subr.bf16.mxu0 %v2175
        %2305 = vmatpush1.bf16.msra.mxu0 %v2174
        %2306 = vmatprep.subr.bf16.mxu0 %v2171
        %2307 = vmatpush1.bf16.msra.mxu0 %v2170
        %2308 = vmatprep.subr.bf16.mxu0 %v2167
        %2309 = vmatpush1.bf16.msra.mxu0 %v2166
        %2310 = vmatprep.subr.bf16.mxu0 %v2227
        %2311 = vmatpush2.bf16.msra.mxu0 %v2226
        %2312 = vmatprep.subr.bf16.mxu0 %v2223
        %2313 = vmatpush2.bf16.msra.mxu0 %v2222
        %2314 = vmatprep.subr.bf16.mxu0 %v2219
        %2315 = vmatpush2.bf16.msra.mxu0 %v2218
        %2316 = vmatprep.subr.bf16.mxu0 %v2215
        %2317 = vmatpush2.bf16.msra.mxu0 %v2214
        %2318 = vmatprep.subr.bf16.mxu0 %v2211
        %2319 = vmatpush2.bf16.msra.mxu0 %v2210
        %2320 = vmatprep.subr.bf16.mxu0 %v2207
        %2321 = vmatpush2.bf16.msra.mxu0 %v2206
        %2322 = vmatprep.subr.bf16.mxu0 %v2203
        %2323 = vmatpush2.bf16.msra.mxu0 %v2202
        %2324 = vmatprep.subr.bf16.mxu0 %v2199
        %2325 = vmatpush2.bf16.msra.mxu0 %v2198
        %2326 = vmatprep.mubr.bf16.mxu0 %v1971
        %2327 = vmatmul.mubr.bf16.gmra.mxu0 %v1970
        %v2328 = vpop.f32.mrf.mxu0
        %v2329 = vadd.f32 %v1947, %v2328
        %v2330 = vpop.f32.mrf.mxu0
        %v2331 = vadd.f32 %v1951, %v2330
        %v2332 = vpop.f32.mrf.mxu0
        %v2333 = vadd.f32 %v1947, %v2332
        %v2334 = vpop.f32.mrf.mxu0
        %v2335 = vadd.f32 %v1951, %v2334
        %2336 = vdwg.mxu0
        %2337 = vmatprep.subr.bf16.mxu0 %v2197
        %2338 = vmatpush1.bf16.msra.mxu0 %v2196
        %2339 = vmatprep.subr.bf16.mxu0 %v2193
        %2340 = vmatpush1.bf16.msra.mxu0 %v2192
        %2341 = vmatprep.subr.bf16.mxu0 %v2189
        %2342 = vmatpush1.bf16.msra.mxu0 %v2188
        %2343 = vmatprep.subr.bf16.mxu0 %v2185
        %2344 = vmatpush1.bf16.msra.mxu0 %v2184
        %2345 = vmatprep.subr.bf16.mxu0 %v2181
        %2346 = vmatpush1.bf16.msra.mxu0 %v2180
        %2347 = vmatprep.subr.bf16.mxu0 %v2177
        %2348 = vmatpush1.bf16.msra.mxu0 %v2176
        %2349 = vmatprep.subr.bf16.mxu0 %v2173
        %2350 = vmatpush1.bf16.msra.mxu0 %v2172
        %2351 = vmatprep.subr.bf16.mxu0 %v2169
        %2352 = vmatpush1.bf16.msra.mxu0 %v2168
        %2353 = vmatprep.subr.bf16.mxu0 %v2229
        %2354 = vmatpush2.bf16.msra.mxu0 %v2228
        %2355 = vmatprep.subr.bf16.mxu0 %v2225
        %2356 = vmatpush2.bf16.msra.mxu0 %v2224
        %2357 = vmatprep.subr.bf16.mxu0 %v2221
        %2358 = vmatpush2.bf16.msra.mxu0 %v2220
        %2359 = vmatprep.subr.bf16.mxu0 %v2217
        %2360 = vmatpush2.bf16.msra.mxu0 %v2216
        %2361 = vmatprep.subr.bf16.mxu0 %v2213
        %2362 = vmatpush2.bf16.msra.mxu0 %v2212
        %2363 = vmatprep.subr.bf16.mxu0 %v2209
        %2364 = vmatpush2.bf16.msra.mxu0 %v2208
        %2365 = vmatprep.subr.bf16.mxu0 %v2205
        %2366 = vmatpush2.bf16.msra.mxu0 %v2204
        %2367 = vmatprep.subr.bf16.mxu0 %v2201
        %2368 = vmatpush2.bf16.msra.mxu0 %v2200
        %2369 = vmatprep.mubr.bf16.mxu0 %v1971
        %2370 = vmatmul.mubr.bf16.gmra.mxu0 %v1970
        %v2371 = vpop.f32.mrf.mxu0
        %v2372 = vadd.f32 %v1955, %v2371
        %v2373 = vpop.f32.mrf.mxu0
        %v2374 = vadd.f32 %v1959, %v2373
        %v2375 = vpop.f32.mrf.mxu0
        %v2376 = vadd.f32 %v1955, %v2375
        %v2377 = vpop.f32.mrf.mxu0
        %v2378 = vadd.f32 %v1959, %v2377
        %2379 = vdwg.mxu0
        %v2380 = vld [vmem:[%s3] sm:$0xff]
        %v2381 = vld [vmem:[%s3 + $0x8] sm:$0x3]
        %v2382 = vpack.c.bf16 %v1874, %v1870
        %v2383 = vpack.c.bf16 %v2333, %v2329
        %v2384 = vpack.c.bf16 %v2376, %v2372
        %2385 = vmatprep.subr.bf16.mxu0 0
        %2386 = vmatpush1.bf16.xpose.msra.mxu0 0
        %2387 = vmatprep.subr.bf16.mxu0 0
        %2388 = vmatpush1.bf16.xpose.msra.mxu0 0
        %2389 = vmatprep.subr.bf16.mxu0 0
        %2390 = vmatpush1.bf16.xpose.msra.mxu0 0
        %2391 = vmatprep.subr.bf16.mxu0 0
        %2392 = vmatpush1.bf16.xpose.msra.mxu0 0
        %2393 = vmatprep.subr.bf16.mxu0 0
        %2394 = vmatpush1.bf16.xpose.msra.mxu0 0
        %2395 = vmatprep.subr.bf16.mxu0 0
        %2396 = vmatpush1.bf16.xpose.msra.mxu0 0
        %2397 = vmatprep.subr.bf16.mxu0 0
        %2398 = vmatpush1.bf16.xpose.msra.mxu0 0
        %2399 = vmatprep.subr.bf16.mxu0 0
        %2400 = vmatpush1.bf16.xpose.msra.mxu0 %v2383
        %2401 = vmatprep.subr.bf16.mxu0 0
        %2402 = vmatpush2.bf16.xpose.msra.mxu0 0
        %2403 = vmatprep.subr.bf16.mxu0 0
        %2404 = vmatpush2.bf16.xpose.msra.mxu0 0
        %2405 = vmatprep.subr.bf16.mxu0 0
        %2406 = vmatpush2.bf16.xpose.msra.mxu0 0
        %2407 = vmatprep.subr.bf16.mxu0 0
        %2408 = vmatpush2.bf16.xpose.msra.mxu0 0
        %2409 = vmatprep.subr.bf16.mxu0 0
        %2410 = vmatpush2.bf16.xpose.msra.mxu0 0
        %2411 = vmatprep.subr.bf16.mxu0 0
        %2412 = vmatpush2.bf16.xpose.msra.mxu0 0
        %2413 = vmatprep.subr.bf16.mxu0 0
        %2414 = vmatpush2.bf16.xpose.msra.mxu0 0
        %2415 = vmatprep.subr.bf16.mxu0 0
        %2416 = vmatpush2.bf16.xpose.msra.mxu0 0
        %2417 = vmatprep.mubr.bf16.mxu0 0
        %2418 = vmatmul.mubr.bf16.gmra.mxu0 %v2382
        %v2419 = vpop.f32.mrf.mxu0
        %v2420 = vadd.f32 %v2380, %v2419
        %v2421 = vpop.f32.mrf.mxu0
        %v2422 = vpop.f32.mrf.mxu0
        %v2423 = vadd.f32 %v2381, %v2422
        %v2424 = vpop.f32.mrf.mxu0
        %2425 = vdwg.mxu0
        %vm2426 = vcmask 130048
        %v2427 = vsel %vm2426, %v2420, -inf
        %2428 = vmax.xlane.f32.xlu0 %v2427
        %v2429 = vpop.xlane.xlu0 %2428
        %vm2430 = vcmask 123904
        %v2431 = vsel %vm2430, %v2423, -inf
        %2432 = vmax.xlane.f32.xlu0 %v2431
        %v2433 = vpop.xlane.xlu0 %2432
        %v2434 = vsub.f32 %v2420, %v2429
        %v2435 = vsub.f32 %v2423, %v2433
        %v2436 = vmul.f32 %v2434, 1.442695
        %v2437 = vpow.pop %v2436
        %v2438 = vmul.f32 %v2435, 1.442695
        %v2439 = vpow.pop %v2438
        %v2440 = vsel %vm2426, %v2437, 0.0
        %2441 = vadd.xlane.f32.xlu0 %v2440
        %v2442 = vpop.xlane.xlu0 %2441
        %v2443 = vsel %vm2430, %v2439, 0.0
        %2444 = vadd.xlane.f32.xlu0 %v2443
        %v2445 = vpop.xlane.xlu0 %2444
        %v2446 = vrcp.pop %v2442
        %v2447 = vrcp.pop %v2445
        %v2448 = vmul.f32 %v2437, %v2446
        %v2449 = vmul.f32 %v2439, %v2447
        %v2450 = vpack.c.bf16 %v2449, %v2448
        %v2452 = vsel %vm2426, %v2450, 0
        %2454 = vmatprep.subr.bf16.mxu0 0
        %2455 = vmatpush1.bf16.msra.mxu0 0
        %2456 = vmatprep.subr.bf16.mxu0 0
        %2457 = vmatpush1.bf16.msra.mxu0 0
        %2458 = vmatprep.subr.bf16.mxu0 0
        %2459 = vmatpush1.bf16.msra.mxu0 0
        %2460 = vmatprep.subr.bf16.mxu0 0
        %2461 = vmatpush1.bf16.msra.mxu0 0
        %2462 = vmatprep.subr.bf16.mxu0 0
        %2463 = vmatpush1.bf16.msra.mxu0 0
        %2464 = vmatprep.subr.bf16.mxu0 0
        %2465 = vmatpush1.bf16.msra.mxu0 0
        %2466 = vmatprep.subr.bf16.mxu0 0
        %2467 = vmatpush1.bf16.msra.mxu0 0
        %2468 = vmatprep.subr.bf16.mxu0 0
        %2469 = vmatpush1.bf16.msra.mxu0 %v2384
        %2470 = vmatprep.subr.bf16.mxu0 0
        %2471 = vmatpush2.bf16.msra.mxu0 0
        %2472 = vmatprep.subr.bf16.mxu0 0
        %2473 = vmatpush2.bf16.msra.mxu0 0
        %2474 = vmatprep.subr.bf16.mxu0 0
        %2475 = vmatpush2.bf16.msra.mxu0 0
        %2476 = vmatprep.subr.bf16.mxu0 0
        %2477 = vmatpush2.bf16.msra.mxu0 0
        %2478 = vmatprep.subr.bf16.mxu0 0
        %2479 = vmatpush2.bf16.msra.mxu0 0
        %2480 = vmatprep.subr.bf16.mxu0 0
        %2481 = vmatpush2.bf16.msra.mxu0 0
        %2482 = vmatprep.subr.bf16.mxu0 0
        %2483 = vmatpush2.bf16.msra.mxu0 0
        %2484 = vmatprep.subr.bf16.mxu0 0
        %2485 = vmatpush2.bf16.msra.mxu0 0
        %2486 = vmatprep.mubr.bf16.mxu0 0
        %2487 = vmatmul.mubr.bf16.gmra.mxu0 %v2452
        %v2488 = vpop.f32.mrf.mxu0
        %v2489 = vadd.f32 0.0, %v2488
        %v2490 = vpop.f32.mrf.mxu0
        %v2491 = vpop.f32.mrf.mxu0
        %v2492 = vadd.f32 0.0, %v2491
        %v2493 = vpop.f32.mrf.mxu0
        %2494 = vdwg.mxu0
        %v2495 = vpack.c.bf16 %v2492, %v2489
        %v2496 = vld [vmem:[%s974] sm:$0xff]
        %v2497 = vld [vmem:[%s974 + $0x8] sm:$0xff]
        %v2498 = vld [vmem:[%s974 + $0x10] sm:$0xff]
        %v2499 = vld [vmem:[%s974 + $0x18] sm:$0xff]
        %v2500 = vld [vmem:[%s974 + $0x20] sm:$0xff]
        %v2501 = vld [vmem:[%s974 + $0x28] sm:$0xff]
        %v2502 = vld [vmem:[%s974 + $0x30] sm:$0xff]
        %v2503 = vld [vmem:[%s974 + $0x38] sm:$0xff]
        %v2504 = vld [vmem:[%s974 + $0x40] sm:$0xff]
        %v2505 = vld [vmem:[%s974 + $0x48] sm:$0xff]
        %v2506 = vld [vmem:[%s974 + $0x50] sm:$0xff]
        %v2507 = vld [vmem:[%s974 + $0x58] sm:$0xff]
        %v2508 = vld [vmem:[%s974 + $0x60] sm:$0xff]
        %v2509 = vld [vmem:[%s974 + $0x68] sm:$0xff]
        %v2510 = vld [vmem:[%s974 + $0x70] sm:$0xff]
        %v2511 = vld [vmem:[%s974 + $0x78] sm:$0xff]
        %v2512 = vpack.c.bf16 %v1876, %v1872
        %v2513 = vpack.c.bf16 %v2335, %v2331
        %v2514 = vpack.c.bf16 %v2378, %v2374
        %2515 = vmatprep.subr.bf16.mxu0 0
        %2516 = vmatpush1.bf16.xpose.msra.mxu0 0
        %2517 = vmatprep.subr.bf16.mxu0 0
        %2518 = vmatpush1.bf16.xpose.msra.mxu0 0
        %2519 = vmatprep.subr.bf16.mxu0 0
        %2520 = vmatpush1.bf16.xpose.msra.mxu0 0
        %2521 = vmatprep.subr.bf16.mxu0 0
        %2522 = vmatpush1.bf16.xpose.msra.mxu0 0
        %2523 = vmatprep.subr.bf16.mxu0 0
        %2524 = vmatpush1.bf16.xpose.msra.mxu0 0
        %2525 = vmatprep.subr.bf16.mxu0 0
        %2526 = vmatpush1.bf16.xpose.msra.mxu0 0
        %2527 = vmatprep.subr.bf16.mxu0 0
        %2528 = vmatpush1.bf16.xpose.msra.mxu0 0
        %2529 = vmatprep.subr.bf16.mxu0 0
        %2530 = vmatpush1.bf16.xpose.msra.mxu0 %v2513
        %2531 = vmatprep.subr.bf16.mxu0 0
        %2532 = vmatpush2.bf16.xpose.msra.mxu0 0
        %2533 = vmatprep.subr.bf16.mxu0 0
        %2534 = vmatpush2.bf16.xpose.msra.mxu0 0
        %2535 = vmatprep.subr.bf16.mxu0 0
        %2536 = vmatpush2.bf16.xpose.msra.mxu0 0
        %2537 = vmatprep.subr.bf16.mxu0 0
        %2538 = vmatpush2.bf16.xpose.msra.mxu0 0
        %2539 = vmatprep.subr.bf16.mxu0 0
        %2540 = vmatpush2.bf16.xpose.msra.mxu0 0
        %2541 = vmatprep.subr.bf16.mxu0 0
        %2542 = vmatpush2.bf16.xpose.msra.mxu0 0
        %2543 = vmatprep.subr.bf16.mxu0 0
        %2544 = vmatpush2.bf16.xpose.msra.mxu0 0
        %2545 = vmatprep.subr.bf16.mxu0 0
        %2546 = vmatpush2.bf16.xpose.msra.mxu0 0
        %2547 = vmatprep.mubr.bf16.mxu0 0
        %2548 = vmatmul.mubr.bf16.gmra.mxu0 %v2512
        %v2549 = vpop.f32.mrf.mxu0
        %v2550 = vadd.f32 %v2380, %v2549
        %v2551 = vpop.f32.mrf.mxu0
        %v2552 = vpop.f32.mrf.mxu0
        %v2553 = vadd.f32 %v2381, %v2552
        %v2554 = vpop.f32.mrf.mxu0
        %2555 = vdwg.mxu0
        %v2556 = vsel %vm2426, %v2550, -inf
        %2557 = vmax.xlane.f32.xlu0 %v2556
        %v2558 = vpop.xlane.xlu0 %2557
        %v2559 = vsel %vm2430, %v2553, -inf
        %2560 = vmax.xlane.f32.xlu0 %v2559
        %v2561 = vpop.xlane.xlu0 %2560
        %v2562 = vsub.f32 %v2550, %v2558
        %v2563 = vsub.f32 %v2553, %v2561
        %v2564 = vmul.f32 %v2562, 1.442695
        %v2565 = vpow.pop %v2564
        %v2566 = vmul.f32 %v2563, 1.442695
        %v2567 = vpow.pop %v2566
        %v2568 = vsel %vm2426, %v2565, 0.0
        %2569 = vadd.xlane.f32.xlu0 %v2568
        %v2570 = vpop.xlane.xlu0 %2569
        %v2571 = vsel %vm2430, %v2567, 0.0
        %2572 = vadd.xlane.f32.xlu0 %v2571
        %v2573 = vpop.xlane.xlu0 %2572
        %v2574 = vrcp.pop %v2570
        %v2575 = vrcp.pop %v2573
        %v2576 = vmul.f32 %v2565, %v2574
        %v2577 = vmul.f32 %v2567, %v2575
        %v2578 = vpack.c.bf16 %v2577, %v2576
        %v2580 = vsel %vm2426, %v2578, 0
        %2582 = vmatprep.subr.bf16.mxu0 0
        %2583 = vmatpush1.bf16.msra.mxu0 0
        %2584 = vmatprep.subr.bf16.mxu0 0
        %2585 = vmatpush1.bf16.msra.mxu0 0
        %2586 = vmatprep.subr.bf16.mxu0 0
        %2587 = vmatpush1.bf16.msra.mxu0 0
        %2588 = vmatprep.subr.bf16.mxu0 0
        %2589 = vmatpush1.bf16.msra.mxu0 0
        %2590 = vmatprep.subr.bf16.mxu0 0
        %2591 = vmatpush1.bf16.msra.mxu0 0
        %2592 = vmatprep.subr.bf16.mxu0 0
        %2593 = vmatpush1.bf16.msra.mxu0 0
        %2594 = vmatprep.subr.bf16.mxu0 0
        %2595 = vmatpush1.bf16.msra.mxu0 0
        %2596 = vmatprep.subr.bf16.mxu0 0
        %2597 = vmatpush1.bf16.msra.mxu0 %v2514
        %2598 = vmatprep.subr.bf16.mxu0 0
        %2599 = vmatpush2.bf16.msra.mxu0 0
        %2600 = vmatprep.subr.bf16.mxu0 0
        %2601 = vmatpush2.bf16.msra.mxu0 0
        %2602 = vmatprep.subr.bf16.mxu0 0
        %2603 = vmatpush2.bf16.msra.mxu0 0
        %2604 = vmatprep.subr.bf16.mxu0 0
        %2605 = vmatpush2.bf16.msra.mxu0 0
        %2606 = vmatprep.subr.bf16.mxu0 0
        %2607 = vmatpush2.bf16.msra.mxu0 0
        %2608 = vmatprep.subr.bf16.mxu0 0
        %2609 = vmatpush2.bf16.msra.mxu0 0
        %2610 = vmatprep.subr.bf16.mxu0 0
        %2611 = vmatpush2.bf16.msra.mxu0 0
        %2612 = vmatprep.subr.bf16.mxu0 0
        %2613 = vmatpush2.bf16.msra.mxu0 0
        %2614 = vmatprep.mubr.bf16.mxu0 0
        %2615 = vmatmul.mubr.bf16.gmra.mxu0 %v2580
        %v2616 = vpop.f32.mrf.mxu0
        %v2617 = vadd.f32 0.0, %v2616
        %v2618 = vpop.f32.mrf.mxu0
        %v2619 = vpop.f32.mrf.mxu0
        %v2620 = vadd.f32 0.0, %v2619
        %v2621 = vpop.f32.mrf.mxu0
        %2622 = vdwg.mxu0
        %v2623 = vpack.c.bf16 %v2620, %v2617
        %v2624 = vld [vmem:[%s974 + $0x80] sm:$0xff]
        %v2625 = vld [vmem:[%s974 + $0x88] sm:$0xff]
        %v2626 = vld [vmem:[%s974 + $0x90] sm:$0xff]
        %v2627 = vld [vmem:[%s974 + $0x98] sm:$0xff]
        %v2628 = vld [vmem:[%s974 + $0xa0] sm:$0xff]
        %v2629 = vld [vmem:[%s974 + $0xa8] sm:$0xff]
        %v2630 = vld [vmem:[%s974 + $0xb0] sm:$0xff]
        %v2631 = vld [vmem:[%s974 + $0xb8] sm:$0xff]
        %v2632 = vld [vmem:[%s974 + $0xc0] sm:$0xff]
        %v2633 = vld [vmem:[%s974 + $0xc8] sm:$0xff]
        %v2634 = vld [vmem:[%s974 + $0xd0] sm:$0xff]
        %v2635 = vld [vmem:[%s974 + $0xd8] sm:$0xff]
        %v2636 = vld [vmem:[%s974 + $0xe0] sm:$0xff]
        %v2637 = vld [vmem:[%s974 + $0xe8] sm:$0xff]
        %v2638 = vld [vmem:[%s974 + $0xf0] sm:$0xff]
        %v2639 = vld [vmem:[%s974 + $0xf8] sm:$0xff]
        %v2656 = vunpack.c.l.b16 %v2624
        %v2657 = vunpack.c.h.b16 %v2624
        %v2658 = vunpack.c.l.b16 %v2625
        %v2659 = vunpack.c.h.b16 %v2625
        %v2660 = vunpack.c.l.b16 %v2626
        %v2661 = vunpack.c.h.b16 %v2626
        %v2662 = vunpack.c.l.b16 %v2627
        %v2663 = vunpack.c.h.b16 %v2627
        %v2664 = vunpack.c.l.b16 %v2628
        %v2665 = vunpack.c.h.b16 %v2628
        %v2666 = vunpack.c.l.b16 %v2629
        %v2667 = vunpack.c.h.b16 %v2629
        %v2668 = vunpack.c.l.b16 %v2630
        %v2669 = vunpack.c.h.b16 %v2630
        %v2670 = vunpack.c.l.b16 %v2631
        %v2671 = vunpack.c.h.b16 %v2631
        %v2672 = vunpack.c.l.b16 %v2632
        %v2673 = vunpack.c.h.b16 %v2632
        %v2674 = vunpack.c.l.b16 %v2633
        %v2675 = vunpack.c.h.b16 %v2633
        %v2676 = vunpack.c.l.b16 %v2634
        %v2677 = vunpack.c.h.b16 %v2634
        %v2678 = vunpack.c.l.b16 %v2635
        %v2679 = vunpack.c.h.b16 %v2635
        %v2680 = vunpack.c.l.b16 %v2636
        %v2681 = vunpack.c.h.b16 %v2636
        %v2682 = vunpack.c.l.b16 %v2637
        %v2683 = vunpack.c.h.b16 %v2637
        %v2684 = vunpack.c.l.b16 %v2638
        %v2685 = vunpack.c.h.b16 %v2638
        %v2686 = vunpack.c.l.b16 %v2639
        %v2687 = vunpack.c.h.b16 %v2639
        %v2688 = vpack.c.b16 %v2658, %v2656
        %v2689 = vpack.c.b16 %v2659, %v2657
        %v2690 = vpack.c.b16 %v2662, %v2660
        %v2691 = vpack.c.b16 %v2663, %v2661
        %v2692 = vpack.c.b16 %v2666, %v2664
        %v2693 = vpack.c.b16 %v2667, %v2665
        %v2694 = vpack.c.b16 %v2670, %v2668
        %v2695 = vpack.c.b16 %v2671, %v2669
        %v2696 = vpack.c.b16 %v2674, %v2672
        %v2697 = vpack.c.b16 %v2675, %v2673
        %v2698 = vpack.c.b16 %v2678, %v2676
        %v2699 = vpack.c.b16 %v2679, %v2677
        %v2700 = vpack.c.b16 %v2682, %v2680
        %v2701 = vpack.c.b16 %v2683, %v2681
        %v2702 = vpack.c.b16 %v2686, %v2684
        %v2703 = vpack.c.b16 %v2687, %v2685
        %2720 = vmatprep.subr.bf16.mxu0 %v2703
        %2721 = vmatpush1.bf16.msra.mxu0 %v2702
        %2722 = vmatprep.subr.bf16.mxu0 %v2701
        %2723 = vmatpush1.bf16.msra.mxu0 %v2700
        %2724 = vmatprep.subr.bf16.mxu0 %v2699
        %2725 = vmatpush1.bf16.msra.mxu0 %v2698
        %2726 = vmatprep.subr.bf16.mxu0 %v2697
        %2727 = vmatpush1.bf16.msra.mxu0 %v2696
        %2728 = vmatprep.subr.bf16.mxu0 %v2695
        %2729 = vmatpush1.bf16.msra.mxu0 %v2694
        %2730 = vmatprep.subr.bf16.mxu0 %v2693
        %2731 = vmatpush1.bf16.msra.mxu0 %v2692
        %2732 = vmatprep.subr.bf16.mxu0 %v2691
        %2733 = vmatpush1.bf16.msra.mxu0 %v2690
        %2734 = vmatprep.subr.bf16.mxu0 %v2689
        %2735 = vmatpush1.bf16.msra.mxu0 %v2688
        %2736 = vmatprep.subr.bf16.mxu0 0
        %2737 = vmatpush2.bf16.msra.mxu0 0
        %2738 = vmatprep.subr.bf16.mxu0 0
        %2739 = vmatpush2.bf16.msra.mxu0 0
        %2740 = vmatprep.subr.bf16.mxu0 0
        %2741 = vmatpush2.bf16.msra.mxu0 0
        %2742 = vmatprep.subr.bf16.mxu0 0
        %2743 = vmatpush2.bf16.msra.mxu0 0
        %2744 = vmatprep.subr.bf16.mxu0 0
        %2745 = vmatpush2.bf16.msra.mxu0 0
        %2746 = vmatprep.subr.bf16.mxu0 0
        %2747 = vmatpush2.bf16.msra.mxu0 0
        %2748 = vmatprep.subr.bf16.mxu0 0
        %2749 = vmatpush2.bf16.msra.mxu0 0
        %2750 = vmatprep.subr.bf16.mxu0 0
        %2751 = vmatpush2.bf16.msra.mxu0 0
        %2752 = vmatprep.mubr.bf16.mxu0 0
        %2753 = vmatmul.mubr.bf16.gmra.mxu0 %v2623
        %v2754 = vpop.f32.mrf.mxu0
        %v2755 = vadd.f32 0.0, %v2754
        %v2756 = vpop.f32.mrf.mxu0
        %v2757 = vadd.f32 0.0, %v2756
        %v2758 = vpop.f32.mrf.mxu0
        %v2759 = vadd.f32 0.0, %v2758
        %v2760 = vpop.f32.mrf.mxu0
        %v2761 = vadd.f32 0.0, %v2760
        %2762 = vdwg.mxu0
        %v2779 = vunpack.c.l.b16 %v2496
        %v2780 = vunpack.c.h.b16 %v2496
        %v2781 = vunpack.c.l.b16 %v2497
        %v2782 = vunpack.c.h.b16 %v2497
        %v2783 = vunpack.c.l.b16 %v2498
        %v2784 = vunpack.c.h.b16 %v2498
        %v2785 = vunpack.c.l.b16 %v2499
        %v2786 = vunpack.c.h.b16 %v2499
        %v2787 = vunpack.c.l.b16 %v2500
        %v2788 = vunpack.c.h.b16 %v2500
        %v2789 = vunpack.c.l.b16 %v2501
        %v2790 = vunpack.c.h.b16 %v2501
        %v2791 = vunpack.c.l.b16 %v2502
        %v2792 = vunpack.c.h.b16 %v2502
        %v2793 = vunpack.c.l.b16 %v2503
        %v2794 = vunpack.c.h.b16 %v2503
        %v2795 = vunpack.c.l.b16 %v2504
        %v2796 = vunpack.c.h.b16 %v2504
        %v2797 = vunpack.c.l.b16 %v2505
        %v2798 = vunpack.c.h.b16 %v2505
        %v2799 = vunpack.c.l.b16 %v2506
        %v2800 = vunpack.c.h.b16 %v2506
        %v2801 = vunpack.c.l.b16 %v2507
        %v2802 = vunpack.c.h.b16 %v2507
        %v2803 = vunpack.c.l.b16 %v2508
        %v2804 = vunpack.c.h.b16 %v2508
        %v2805 = vunpack.c.l.b16 %v2509
        %v2806 = vunpack.c.h.b16 %v2509
        %v2807 = vunpack.c.l.b16 %v2510
        %v2808 = vunpack.c.h.b16 %v2510
        %v2809 = vunpack.c.l.b16 %v2511
        %v2810 = vunpack.c.h.b16 %v2511
        %v2811 = vpack.c.b16 %v2781, %v2779
        %v2812 = vpack.c.b16 %v2782, %v2780
        %v2813 = vpack.c.b16 %v2785, %v2783
        %v2814 = vpack.c.b16 %v2786, %v2784
        %v2815 = vpack.c.b16 %v2789, %v2787
        %v2816 = vpack.c.b16 %v2790, %v2788
        %v2817 = vpack.c.b16 %v2793, %v2791
        %v2818 = vpack.c.b16 %v2794, %v2792
        %v2819 = vpack.c.b16 %v2797, %v2795
        %v2820 = vpack.c.b16 %v2798, %v2796
        %v2821 = vpack.c.b16 %v2801, %v2799
        %v2822 = vpack.c.b16 %v2802, %v2800
        %v2823 = vpack.c.b16 %v2805, %v2803
        %v2824 = vpack.c.b16 %v2806, %v2804
        %v2825 = vpack.c.b16 %v2809, %v2807
        %v2826 = vpack.c.b16 %v2810, %v2808
        %2843 = vmatprep.subr.bf16.mxu0 %v2826
        %2844 = vmatpush1.bf16.msra.mxu0 %v2825
        %2845 = vmatprep.subr.bf16.mxu0 %v2824
        %2846 = vmatpush1.bf16.msra.mxu0 %v2823
        %2847 = vmatprep.subr.bf16.mxu0 %v2822
        %2848 = vmatpush1.bf16.msra.mxu0 %v2821
        %2849 = vmatprep.subr.bf16.mxu0 %v2820
        %2850 = vmatpush1.bf16.msra.mxu0 %v2819
        %2851 = vmatprep.subr.bf16.mxu0 %v2818
        %2852 = vmatpush1.bf16.msra.mxu0 %v2817
        %2853 = vmatprep.subr.bf16.mxu0 %v2816
        %2854 = vmatpush1.bf16.msra.mxu0 %v2815
        %2855 = vmatprep.subr.bf16.mxu0 %v2814
        %2856 = vmatpush1.bf16.msra.mxu0 %v2813
        %2857 = vmatprep.subr.bf16.mxu0 %v2812
        %2858 = vmatpush1.bf16.msra.mxu0 %v2811
        %2859 = vmatprep.subr.bf16.mxu0 0
        %2860 = vmatpush2.bf16.msra.mxu0 0
        %2861 = vmatprep.subr.bf16.mxu0 0
        %2862 = vmatpush2.bf16.msra.mxu0 0
        %2863 = vmatprep.subr.bf16.mxu0 0
        %2864 = vmatpush2.bf16.msra.mxu0 0
        %2865 = vmatprep.subr.bf16.mxu0 0
        %2866 = vmatpush2.bf16.msra.mxu0 0
        %2867 = vmatprep.subr.bf16.mxu0 0
        %2868 = vmatpush2.bf16.msra.mxu0 0
        %2869 = vmatprep.subr.bf16.mxu0 0
        %2870 = vmatpush2.bf16.msra.mxu0 0
        %2871 = vmatprep.subr.bf16.mxu0 0
        %2872 = vmatpush2.bf16.msra.mxu0 0
        %2873 = vmatprep.subr.bf16.mxu0 0
        %2874 = vmatpush2.bf16.msra.mxu0 0
        %2875 = vmatprep.mubr.bf16.mxu0 0
        %2876 = vmatmul.mubr.bf16.gmra.mxu0 %v2495
        %v2877 = vpop.f32.mrf.mxu0
        %v2878 = vadd.f32 %v2755, %v2877
        %v2879 = vpop.f32.mrf.mxu0
        %v2880 = vadd.f32 %v2757, %v2879
        %v2881 = vpop.f32.mrf.mxu0
        %v2882 = vadd.f32 %v2759, %v2881
        %v2883 = vpop.f32.mrf.mxu0
        %v2884 = vadd.f32 %v2761, %v2883
        %2885 = vdwg.mxu0
        %v2886 = vld [vmem:[%s983] sm:$0x3]
        %v2888 = vlaneseq
        %v2889 = vshrl.u32 %v2888, 7
        %v2890 = vsub.s32 0, %v2889
        %v2891 = vrot.slane %v2886, %v2890
        %v2892 = vlaneseq
        %v2893 = vshrl.u32 %v2892, 7
        %v2894 = vsub.s32 1, %v2893
        %v2895 = vrot.slane %v2886, %v2894
        %v2898 = vadd.f32 %v2878, %v2891
        %v2899 = vadd.f32 %v2880, %v2895
        %v2900 = vadd.f32 %v2882, %v2891
        %v2901 = vadd.f32 %v2884, %v2895
        %v2902 = vpack.c.bf16 %v2900, %v2898
        %v2903 = vpack.c.bf16 %v2901, %v2899
        %v2904 = vld [vmem:[%s992] sm:$0xff]
        %v2905 = vld [vmem:[%s992 + $0x8] sm:$0xff]
        %v2906 = vld [vmem:[%s992 + $0x10] sm:$0xff]
        %v2907 = vld [vmem:[%s992 + $0x18] sm:$0xff]
        %v2908 = vld [vmem:[%s992 + $0x20] sm:$0xff]
        %v2909 = vld [vmem:[%s992 + $0x28] sm:$0xff]
        %v2910 = vld [vmem:[%s992 + $0x30] sm:$0xff]
        %v2911 = vld [vmem:[%s992 + $0x38] sm:$0xff]
        %v2912 = vld [vmem:[%s992 + $0x40] sm:$0xff]
        %v2913 = vld [vmem:[%s992 + $0x48] sm:$0xff]
        %v2914 = vld [vmem:[%s992 + $0x50] sm:$0xff]
        %v2915 = vld [vmem:[%s992 + $0x58] sm:$0xff]
        %v2916 = vld [vmem:[%s992 + $0x60] sm:$0xff]
        %v2917 = vld [vmem:[%s992 + $0x68] sm:$0xff]
        %v2918 = vld [vmem:[%s992 + $0x70] sm:$0xff]
        %v2919 = vld [vmem:[%s992 + $0x78] sm:$0xff]
        %v2920 = vld [vmem:[%s992 + $0x80] sm:$0xff]
        %v2921 = vld [vmem:[%s992 + $0x88] sm:$0xff]
        %v2922 = vld [vmem:[%s992 + $0x90] sm:$0xff]
        %v2923 = vld [vmem:[%s992 + $0x98] sm:$0xff]
        %v2924 = vld [vmem:[%s992 + $0xa0] sm:$0xff]
        %v2925 = vld [vmem:[%s992 + $0xa8] sm:$0xff]
        %v2926 = vld [vmem:[%s992 + $0xb0] sm:$0xff]
        %v2927 = vld [vmem:[%s992 + $0xb8] sm:$0xff]
        %v2928 = vld [vmem:[%s992 + $0xc0] sm:$0xff]
        %v2929 = vld [vmem:[%s992 + $0xc8] sm:$0xff]
        %v2930 = vld [vmem:[%s992 + $0xd0] sm:$0xff]
        %v2931 = vld [vmem:[%s992 + $0xd8] sm:$0xff]
        %v2932 = vld [vmem:[%s992 + $0xe0] sm:$0xff]
        %v2933 = vld [vmem:[%s992 + $0xe8] sm:$0xff]
        %v2934 = vld [vmem:[%s992 + $0xf0] sm:$0xff]
        %v2935 = vld [vmem:[%s992 + $0xf8] sm:$0xff]
        %v2936 = vld [vmem:[%s992 + $0x100] sm:$0xff]
        %v2937 = vld [vmem:[%s992 + $0x108] sm:$0xff]
        %v2938 = vld [vmem:[%s992 + $0x110] sm:$0xff]
        %v2939 = vld [vmem:[%s992 + $0x118] sm:$0xff]
        %v2940 = vld [vmem:[%s992 + $0x120] sm:$0xff]
        %v2941 = vld [vmem:[%s992 + $0x128] sm:$0xff]
        %v2942 = vld [vmem:[%s992 + $0x130] sm:$0xff]
        %v2943 = vld [vmem:[%s992 + $0x138] sm:$0xff]
        %v2944 = vld [vmem:[%s992 + $0x140] sm:$0xff]
        %v2945 = vld [vmem:[%s992 + $0x148] sm:$0xff]
        %v2946 = vld [vmem:[%s992 + $0x150] sm:$0xff]
        %v2947 = vld [vmem:[%s992 + $0x158] sm:$0xff]
        %v2948 = vld [vmem:[%s992 + $0x160] sm:$0xff]
        %v2949 = vld [vmem:[%s992 + $0x168] sm:$0xff]
        %v2950 = vld [vmem:[%s992 + $0x170] sm:$0xff]
        %v2951 = vld [vmem:[%s992 + $0x178] sm:$0xff]
        %v2952 = vld [vmem:[%s992 + $0x180] sm:$0xff]
        %v2953 = vld [vmem:[%s992 + $0x188] sm:$0xff]
        %v2954 = vld [vmem:[%s992 + $0x190] sm:$0xff]
        %v2955 = vld [vmem:[%s992 + $0x198] sm:$0xff]
        %v2956 = vld [vmem:[%s992 + $0x1a0] sm:$0xff]
        %v2957 = vld [vmem:[%s992 + $0x1a8] sm:$0xff]
        %v2958 = vld [vmem:[%s992 + $0x1b0] sm:$0xff]
        %v2959 = vld [vmem:[%s992 + $0x1b8] sm:$0xff]
        %v2960 = vld [vmem:[%s992 + $0x1c0] sm:$0xff]
        %v2961 = vld [vmem:[%s992 + $0x1c8] sm:$0xff]
        %v2962 = vld [vmem:[%s992 + $0x1d0] sm:$0xff]
        %v2963 = vld [vmem:[%s992 + $0x1d8] sm:$0xff]
        %v2964 = vld [vmem:[%s992 + $0x1e0] sm:$0xff]
        %v2965 = vld [vmem:[%s992 + $0x1e8] sm:$0xff]
        %v2966 = vld [vmem:[%s992 + $0x1f0] sm:$0xff]
        %v2967 = vld [vmem:[%s992 + $0x1f8] sm:$0xff]
        %v3032 = vunpack.c.l.b16 %v2904
        %v3033 = vunpack.c.h.b16 %v2904
        %v3034 = vunpack.c.l.b16 %v2905
        %v3035 = vunpack.c.h.b16 %v2905
        %v3036 = vunpack.c.l.b16 %v2906
        %v3037 = vunpack.c.h.b16 %v2906
        %v3038 = vunpack.c.l.b16 %v2907
        %v3039 = vunpack.c.h.b16 %v2907
        %v3040 = vunpack.c.l.b16 %v2908
        %v3041 = vunpack.c.h.b16 %v2908
        %v3042 = vunpack.c.l.b16 %v2909
        %v3043 = vunpack.c.h.b16 %v2909
        %v3044 = vunpack.c.l.b16 %v2910
        %v3045 = vunpack.c.h.b16 %v2910
        %v3046 = vunpack.c.l.b16 %v2911
        %v3047 = vunpack.c.h.b16 %v2911
        %v3048 = vunpack.c.l.b16 %v2912
        %v3049 = vunpack.c.h.b16 %v2912
        %v3050 = vunpack.c.l.b16 %v2913
        %v3051 = vunpack.c.h.b16 %v2913
        %v3052 = vunpack.c.l.b16 %v2914
        %v3053 = vunpack.c.h.b16 %v2914
        %v3054 = vunpack.c.l.b16 %v2915
        %v3055 = vunpack.c.h.b16 %v2915
        %v3056 = vunpack.c.l.b16 %v2916
        %v3057 = vunpack.c.h.b16 %v2916
        %v3058 = vunpack.c.l.b16 %v2917
        %v3059 = vunpack.c.h.b16 %v2917
        %v3060 = vunpack.c.l.b16 %v2918
        %v3061 = vunpack.c.h.b16 %v2918
        %v3062 = vunpack.c.l.b16 %v2919
        %v3063 = vunpack.c.h.b16 %v2919
        %v3064 = vunpack.c.l.b16 %v2920
        %v3065 = vunpack.c.h.b16 %v2920
        %v3066 = vunpack.c.l.b16 %v2921
        %v3067 = vunpack.c.h.b16 %v2921
        %v3068 = vunpack.c.l.b16 %v2922
        %v3069 = vunpack.c.h.b16 %v2922
        %v3070 = vunpack.c.l.b16 %v2923
        %v3071 = vunpack.c.h.b16 %v2923
        %v3072 = vunpack.c.l.b16 %v2924
        %v3073 = vunpack.c.h.b16 %v2924
        %v3074 = vunpack.c.l.b16 %v2925
        %v3075 = vunpack.c.h.b16 %v2925
        %v3076 = vunpack.c.l.b16 %v2926
        %v3077 = vunpack.c.h.b16 %v2926
        %v3078 = vunpack.c.l.b16 %v2927
        %v3079 = vunpack.c.h.b16 %v2927
        %v3080 = vunpack.c.l.b16 %v2928
        %v3081 = vunpack.c.h.b16 %v2928
        %v3082 = vunpack.c.l.b16 %v2929
        %v3083 = vunpack.c.h.b16 %v2929
        %v3084 = vunpack.c.l.b16 %v2930
        %v3085 = vunpack.c.h.b16 %v2930
        %v3086 = vunpack.c.l.b16 %v2931
        %v3087 = vunpack.c.h.b16 %v2931
        %v3088 = vunpack.c.l.b16 %v2932
        %v3089 = vunpack.c.h.b16 %v2932
        %v3090 = vunpack.c.l.b16 %v2933
        %v3091 = vunpack.c.h.b16 %v2933
        %v3092 = vunpack.c.l.b16 %v2934
        %v3093 = vunpack.c.h.b16 %v2934
        %v3094 = vunpack.c.l.b16 %v2935
        %v3095 = vunpack.c.h.b16 %v2935
        %v3096 = vunpack.c.l.b16 %v2936
        %v3097 = vunpack.c.h.b16 %v2936
        %v3098 = vunpack.c.l.b16 %v2937
        %v3099 = vunpack.c.h.b16 %v2937
        %v3100 = vunpack.c.l.b16 %v2938
        %v3101 = vunpack.c.h.b16 %v2938
        %v3102 = vunpack.c.l.b16 %v2939
        %v3103 = vunpack.c.h.b16 %v2939
        %v3104 = vunpack.c.l.b16 %v2940
        %v3105 = vunpack.c.h.b16 %v2940
        %v3106 = vunpack.c.l.b16 %v2941
        %v3107 = vunpack.c.h.b16 %v2941
        %v3108 = vunpack.c.l.b16 %v2942
        %v3109 = vunpack.c.h.b16 %v2942
        %v3110 = vunpack.c.l.b16 %v2943
        %v3111 = vunpack.c.h.b16 %v2943
        %v3112 = vunpack.c.l.b16 %v2944
        %v3113 = vunpack.c.h.b16 %v2944
        %v3114 = vunpack.c.l.b16 %v2945
        %v3115 = vunpack.c.h.b16 %v2945
        %v3116 = vunpack.c.l.b16 %v2946
        %v3117 = vunpack.c.h.b16 %v2946
        %v3118 = vunpack.c.l.b16 %v2947
        %v3119 = vunpack.c.h.b16 %v2947
        %v3120 = vunpack.c.l.b16 %v2948
        %v3121 = vunpack.c.h.b16 %v2948
        %v3122 = vunpack.c.l.b16 %v2949
        %v3123 = vunpack.c.h.b16 %v2949
        %v3124 = vunpack.c.l.b16 %v2950
        %v3125 = vunpack.c.h.b16 %v2950
        %v3126 = vunpack.c.l.b16 %v2951
        %v3127 = vunpack.c.h.b16 %v2951
        %v3128 = vunpack.c.l.b16 %v2952
        %v3129 = vunpack.c.h.b16 %v2952
        %v3130 = vunpack.c.l.b16 %v2953
        %v3131 = vunpack.c.h.b16 %v2953
        %v3132 = vunpack.c.l.b16 %v2954
        %v3133 = vunpack.c.h.b16 %v2954
        %v3134 = vunpack.c.l.b16 %v2955
        %v3135 = vunpack.c.h.b16 %v2955
        %v3136 = vunpack.c.l.b16 %v2956
        %v3137 = vunpack.c.h.b16 %v2956
        %v3138 = vunpack.c.l.b16 %v2957
        %v3139 = vunpack.c.h.b16 %v2957
        %v3140 = vunpack.c.l.b16 %v2958
        %v3141 = vunpack.c.h.b16 %v2958
        %v3142 = vunpack.c.l.b16 %v2959
        %v3143 = vunpack.c.h.b16 %v2959
        %v3144 = vunpack.c.l.b16 %v2960
        %v3145 = vunpack.c.h.b16 %v2960
        %v3146 = vunpack.c.l.b16 %v2961
        %v3147 = vunpack.c.h.b16 %v2961
        %v3148 = vunpack.c.l.b16 %v2962
        %v3149 = vunpack.c.h.b16 %v2962
        %v3150 = vunpack.c.l.b16 %v2963
        %v3151 = vunpack.c.h.b16 %v2963
        %v3152 = vunpack.c.l.b16 %v2964
        %v3153 = vunpack.c.h.b16 %v2964
        %v3154 = vunpack.c.l.b16 %v2965
        %v3155 = vunpack.c.h.b16 %v2965
        %v3156 = vunpack.c.l.b16 %v2966
        %v3157 = vunpack.c.h.b16 %v2966
        %v3158 = vunpack.c.l.b16 %v2967
        %v3159 = vunpack.c.h.b16 %v2967
        %v3160 = vpack.c.b16 %v3036, %v3032
        %v3161 = vpack.c.b16 %v3037, %v3033
        %v3162 = vpack.c.b16 %v3038, %v3034
        %v3163 = vpack.c.b16 %v3039, %v3035
        %v3164 = vpack.c.b16 %v3044, %v3040
        %v3165 = vpack.c.b16 %v3045, %v3041
        %v3166 = vpack.c.b16 %v3046, %v3042
        %v3167 = vpack.c.b16 %v3047, %v3043
        %v3168 = vpack.c.b16 %v3052, %v3048
        %v3169 = vpack.c.b16 %v3053, %v3049
        %v3170 = vpack.c.b16 %v3054, %v3050
        %v3171 = vpack.c.b16 %v3055, %v3051
        %v3172 = vpack.c.b16 %v3060, %v3056
        %v3173 = vpack.c.b16 %v3061, %v3057
        %v3174 = vpack.c.b16 %v3062, %v3058
        %v3175 = vpack.c.b16 %v3063, %v3059
        %v3176 = vpack.c.b16 %v3068, %v3064
        %v3177 = vpack.c.b16 %v3069, %v3065
        %v3178 = vpack.c.b16 %v3070, %v3066
        %v3179 = vpack.c.b16 %v3071, %v3067
        %v3180 = vpack.c.b16 %v3076, %v3072
        %v3181 = vpack.c.b16 %v3077, %v3073
        %v3182 = vpack.c.b16 %v3078, %v3074
        %v3183 = vpack.c.b16 %v3079, %v3075
        %v3184 = vpack.c.b16 %v3084, %v3080
        %v3185 = vpack.c.b16 %v3085, %v3081
        %v3186 = vpack.c.b16 %v3086, %v3082
        %v3187 = vpack.c.b16 %v3087, %v3083
        %v3188 = vpack.c.b16 %v3092, %v3088
        %v3189 = vpack.c.b16 %v3093, %v3089
        %v3190 = vpack.c.b16 %v3094, %v3090
        %v3191 = vpack.c.b16 %v3095, %v3091
        %v3192 = vpack.c.b16 %v3100, %v3096
        %v3193 = vpack.c.b16 %v3101, %v3097
        %v3194 = vpack.c.b16 %v3102, %v3098
        %v3195 = vpack.c.b16 %v3103, %v3099
        %v3196 = vpack.c.b16 %v3108, %v3104
        %v3197 = vpack.c.b16 %v3109, %v3105
        %v3198 = vpack.c.b16 %v3110, %v3106
        %v3199 = vpack.c.b16 %v3111, %v3107
        %v3200 = vpack.c.b16 %v3116, %v3112
        %v3201 = vpack.c.b16 %v3117, %v3113
        %v3202 = vpack.c.b16 %v3118, %v3114
        %v3203 = vpack.c.b16 %v3119, %v3115
        %v3204 = vpack.c.b16 %v3124, %v3120
        %v3205 = vpack.c.b16 %v3125, %v3121
        %v3206 = vpack.c.b16 %v3126, %v3122
        %v3207 = vpack.c.b16 %v3127, %v3123
        %v3208 = vpack.c.b16 %v3132, %v3128
        %v3209 = vpack.c.b16 %v3133, %v3129
        %v3210 = vpack.c.b16 %v3134, %v3130
        %v3211 = vpack.c.b16 %v3135, %v3131
        %v3212 = vpack.c.b16 %v3140, %v3136
        %v3213 = vpack.c.b16 %v3141, %v3137
        %v3214 = vpack.c.b16 %v3142, %v3138
        %v3215 = vpack.c.b16 %v3143, %v3139
        %v3216 = vpack.c.b16 %v3148, %v3144
        %v3217 = vpack.c.b16 %v3149, %v3145
        %v3218 = vpack.c.b16 %v3150, %v3146
        %v3219 = vpack.c.b16 %v3151, %v3147
        %v3220 = vpack.c.b16 %v3156, %v3152
        %v3221 = vpack.c.b16 %v3157, %v3153
        %v3222 = vpack.c.b16 %v3158, %v3154
        %v3223 = vpack.c.b16 %v3159, %v3155
        %3288 = vmatprep.subr.bf16.mxu0 %v3189
        %3289 = vmatpush1.bf16.msra.mxu0 %v3188
        %3290 = vmatprep.subr.bf16.mxu0 %v3185
        %3291 = vmatpush1.bf16.msra.mxu0 %v3184
        %3292 = vmatprep.subr.bf16.mxu0 %v3181
        %3293 = vmatpush1.bf16.msra.mxu0 %v3180
        %3294 = vmatprep.subr.bf16.mxu0 %v3177
        %3295 = vmatpush1.bf16.msra.mxu0 %v3176
        %3296 = vmatprep.subr.bf16.mxu0 %v3173
        %3297 = vmatpush1.bf16.msra.mxu0 %v3172
        %3298 = vmatprep.subr.bf16.mxu0 %v3169
        %3299 = vmatpush1.bf16.msra.mxu0 %v3168
        %3300 = vmatprep.subr.bf16.mxu0 %v3165
        %3301 = vmatpush1.bf16.msra.mxu0 %v3164
        %3302 = vmatprep.subr.bf16.mxu0 %v3161
        %3303 = vmatpush1.bf16.msra.mxu0 %v3160
        %3304 = vmatprep.subr.bf16.mxu0 %v3221
        %3305 = vmatpush2.bf16.msra.mxu0 %v3220
        %3306 = vmatprep.subr.bf16.mxu0 %v3217
        %3307 = vmatpush2.bf16.msra.mxu0 %v3216
        %3308 = vmatprep.subr.bf16.mxu0 %v3213
        %3309 = vmatpush2.bf16.msra.mxu0 %v3212
        %3310 = vmatprep.subr.bf16.mxu0 %v3209
        %3311 = vmatpush2.bf16.msra.mxu0 %v3208
        %3312 = vmatprep.subr.bf16.mxu0 %v3205
        %3313 = vmatpush2.bf16.msra.mxu0 %v3204
        %3314 = vmatprep.subr.bf16.mxu0 %v3201
        %3315 = vmatpush2.bf16.msra.mxu0 %v3200
        %3316 = vmatprep.subr.bf16.mxu0 %v3197
        %3317 = vmatpush2.bf16.msra.mxu0 %v3196
        %3318 = vmatprep.subr.bf16.mxu0 %v3193
        %3319 = vmatpush2.bf16.msra.mxu0 %v3192
        %3320 = vmatprep.mubr.bf16.mxu0 %v2903
        %3321 = vmatmul.mubr.bf16.gmra.mxu0 %v2902
        %v3322 = vpop.f32.mrf.mxu0
        %v3323 = vadd.f32 0.0, %v3322
        %v3324 = vpop.f32.mrf.mxu0
        %v3325 = vadd.f32 0.0, %v3324
        %v3326 = vpop.f32.mrf.mxu0
        %v3327 = vadd.f32 0.0, %v3326
        %v3328 = vpop.f32.mrf.mxu0
        %v3329 = vadd.f32 0.0, %v3328
        %3330 = vdwg.mxu0
        %3331 = vmatprep.subr.bf16.mxu0 %v3191
        %3332 = vmatpush1.bf16.msra.mxu0 %v3190
        %3333 = vmatprep.subr.bf16.mxu0 %v3187
        %3334 = vmatpush1.bf16.msra.mxu0 %v3186
        %3335 = vmatprep.subr.bf16.mxu0 %v3183
        %3336 = vmatpush1.bf16.msra.mxu0 %v3182
        %3337 = vmatprep.subr.bf16.mxu0 %v3179
        %3338 = vmatpush1.bf16.msra.mxu0 %v3178
        %3339 = vmatprep.subr.bf16.mxu0 %v3175
        %3340 = vmatpush1.bf16.msra.mxu0 %v3174
        %3341 = vmatprep.subr.bf16.mxu0 %v3171
        %3342 = vmatpush1.bf16.msra.mxu0 %v3170
        %3343 = vmatprep.subr.bf16.mxu0 %v3167
        %3344 = vmatpush1.bf16.msra.mxu0 %v3166
        %3345 = vmatprep.subr.bf16.mxu0 %v3163
        %3346 = vmatpush1.bf16.msra.mxu0 %v3162
        %3347 = vmatprep.subr.bf16.mxu0 %v3223
        %3348 = vmatpush2.bf16.msra.mxu0 %v3222
        %3349 = vmatprep.subr.bf16.mxu0 %v3219
        %3350 = vmatpush2.bf16.msra.mxu0 %v3218
        %3351 = vmatprep.subr.bf16.mxu0 %v3215
        %3352 = vmatpush2.bf16.msra.mxu0 %v3214
        %3353 = vmatprep.subr.bf16.mxu0 %v3211
        %3354 = vmatpush2.bf16.msra.mxu0 %v3210
        %3355 = vmatprep.subr.bf16.mxu0 %v3207
        %3356 = vmatpush2.bf16.msra.mxu0 %v3206
        %3357 = vmatprep.subr.bf16.mxu0 %v3203
        %3358 = vmatpush2.bf16.msra.mxu0 %v3202
        %3359 = vmatprep.subr.bf16.mxu0 %v3199
        %3360 = vmatpush2.bf16.msra.mxu0 %v3198
        %3361 = vmatprep.subr.bf16.mxu0 %v3195
        %3362 = vmatpush2.bf16.msra.mxu0 %v3194
        %3363 = vmatprep.mubr.bf16.mxu0 %v2903
        %3364 = vmatmul.mubr.bf16.gmra.mxu0 %v2902
        %v3365 = vpop.f32.mrf.mxu0
        %v3366 = vadd.f32 0.0, %v3365
        %v3367 = vpop.f32.mrf.mxu0
        %v3368 = vadd.f32 0.0, %v3367
        %v3369 = vpop.f32.mrf.mxu0
        %v3370 = vadd.f32 0.0, %v3369
        %v3371 = vpop.f32.mrf.mxu0
        %v3372 = vadd.f32 0.0, %v3371
        %3373 = vdwg.mxu0
        %v3374 = vmax.f32 %v3323, 0.0
        %v3375 = vmax.f32 %v3325, 0.0
        %v3376 = vmax.f32 %v3366, 0.0
        %v3377 = vmax.f32 %v3368, 0.0
        %v3378 = vmax.f32 %v3327, 0.0
        %v3379 = vmax.f32 %v3329, 0.0
        %v3380 = vmax.f32 %v3370, 0.0
        %v3381 = vmax.f32 %v3372, 0.0
        %v3382 = vpack.c.bf16 %v3378, %v3374
        %v3383 = vpack.c.bf16 %v3379, %v3375
        %v3384 = vpack.c.bf16 %v3380, %v3376
        %v3385 = vpack.c.bf16 %v3381, %v3377
        %v3386 = vld [vmem:[%s1001] sm:$0xff]
        %v3387 = vld [vmem:[%s1001 + $0x8] sm:$0xff]
        %v3388 = vld [vmem:[%s1001 + $0x10] sm:$0xff]
        %v3389 = vld [vmem:[%s1001 + $0x18] sm:$0xff]
        %v3390 = vld [vmem:[%s1001 + $0x20] sm:$0xff]
        %v3391 = vld [vmem:[%s1001 + $0x28] sm:$0xff]
        %v3392 = vld [vmem:[%s1001 + $0x30] sm:$0xff]
        %v3393 = vld [vmem:[%s1001 + $0x38] sm:$0xff]
        %v3394 = vld [vmem:[%s1001 + $0x40] sm:$0xff]
        %v3395 = vld [vmem:[%s1001 + $0x48] sm:$0xff]
        %v3396 = vld [vmem:[%s1001 + $0x50] sm:$0xff]
        %v3397 = vld [vmem:[%s1001 + $0x58] sm:$0xff]
        %v3398 = vld [vmem:[%s1001 + $0x60] sm:$0xff]
        %v3399 = vld [vmem:[%s1001 + $0x68] sm:$0xff]
        %v3400 = vld [vmem:[%s1001 + $0x70] sm:$0xff]
        %v3401 = vld [vmem:[%s1001 + $0x78] sm:$0xff]
        %v3402 = vld [vmem:[%s1001 + $0x80] sm:$0xff]
        %v3403 = vld [vmem:[%s1001 + $0x88] sm:$0xff]
        %v3404 = vld [vmem:[%s1001 + $0x90] sm:$0xff]
        %v3405 = vld [vmem:[%s1001 + $0x98] sm:$0xff]
        %v3406 = vld [vmem:[%s1001 + $0xa0] sm:$0xff]
        %v3407 = vld [vmem:[%s1001 + $0xa8] sm:$0xff]
        %v3408 = vld [vmem:[%s1001 + $0xb0] sm:$0xff]
        %v3409 = vld [vmem:[%s1001 + $0xb8] sm:$0xff]
        %v3410 = vld [vmem:[%s1001 + $0xc0] sm:$0xff]
        %v3411 = vld [vmem:[%s1001 + $0xc8] sm:$0xff]
        %v3412 = vld [vmem:[%s1001 + $0xd0] sm:$0xff]
        %v3413 = vld [vmem:[%s1001 + $0xd8] sm:$0xff]
        %v3414 = vld [vmem:[%s1001 + $0xe0] sm:$0xff]
        %v3415 = vld [vmem:[%s1001 + $0xe8] sm:$0xff]
        %v3416 = vld [vmem:[%s1001 + $0xf0] sm:$0xff]
        %v3417 = vld [vmem:[%s1001 + $0xf8] sm:$0xff]
        %v3418 = vld [vmem:[%s1001 + $0x100] sm:$0xff]
        %v3419 = vld [vmem:[%s1001 + $0x108] sm:$0xff]
        %v3420 = vld [vmem:[%s1001 + $0x110] sm:$0xff]
        %v3421 = vld [vmem:[%s1001 + $0x118] sm:$0xff]
        %v3422 = vld [vmem:[%s1001 + $0x120] sm:$0xff]
        %v3423 = vld [vmem:[%s1001 + $0x128] sm:$0xff]
        %v3424 = vld [vmem:[%s1001 + $0x130] sm:$0xff]
        %v3425 = vld [vmem:[%s1001 + $0x138] sm:$0xff]
        %v3426 = vld [vmem:[%s1001 + $0x140] sm:$0xff]
        %v3427 = vld [vmem:[%s1001 + $0x148] sm:$0xff]
        %v3428 = vld [vmem:[%s1001 + $0x150] sm:$0xff]
        %v3429 = vld [vmem:[%s1001 + $0x158] sm:$0xff]
        %v3430 = vld [vmem:[%s1001 + $0x160] sm:$0xff]
        %v3431 = vld [vmem:[%s1001 + $0x168] sm:$0xff]
        %v3432 = vld [vmem:[%s1001 + $0x170] sm:$0xff]
        %v3433 = vld [vmem:[%s1001 + $0x178] sm:$0xff]
        %v3434 = vld [vmem:[%s1001 + $0x180] sm:$0xff]
        %v3435 = vld [vmem:[%s1001 + $0x188] sm:$0xff]
        %v3436 = vld [vmem:[%s1001 + $0x190] sm:$0xff]
        %v3437 = vld [vmem:[%s1001 + $0x198] sm:$0xff]
        %v3438 = vld [vmem:[%s1001 + $0x1a0] sm:$0xff]
        %v3439 = vld [vmem:[%s1001 + $0x1a8] sm:$0xff]
        %v3440 = vld [vmem:[%s1001 + $0x1b0] sm:$0xff]
        %v3441 = vld [vmem:[%s1001 + $0x1b8] sm:$0xff]
        %v3442 = vld [vmem:[%s1001 + $0x1c0] sm:$0xff]
        %v3443 = vld [vmem:[%s1001 + $0x1c8] sm:$0xff]
        %v3444 = vld [vmem:[%s1001 + $0x1d0] sm:$0xff]
        %v3445 = vld [vmem:[%s1001 + $0x1d8] sm:$0xff]
        %v3446 = vld [vmem:[%s1001 + $0x1e0] sm:$0xff]
        %v3447 = vld [vmem:[%s1001 + $0x1e8] sm:$0xff]
        %v3448 = vld [vmem:[%s1001 + $0x1f0] sm:$0xff]
        %v3449 = vld [vmem:[%s1001 + $0x1f8] sm:$0xff]
        %v3514 = vunpack.c.l.b16 %v3386
        %v3515 = vunpack.c.h.b16 %v3386
        %v3516 = vunpack.c.l.b16 %v3387
        %v3517 = vunpack.c.h.b16 %v3387
        %v3518 = vunpack.c.l.b16 %v3388
        %v3519 = vunpack.c.h.b16 %v3388
        %v3520 = vunpack.c.l.b16 %v3389
        %v3521 = vunpack.c.h.b16 %v3389
        %v3522 = vunpack.c.l.b16 %v3390
        %v3523 = vunpack.c.h.b16 %v3390
        %v3524 = vunpack.c.l.b16 %v3391
        %v3525 = vunpack.c.h.b16 %v3391
        %v3526 = vunpack.c.l.b16 %v3392
        %v3527 = vunpack.c.h.b16 %v3392
        %v3528 = vunpack.c.l.b16 %v3393
        %v3529 = vunpack.c.h.b16 %v3393
        %v3530 = vunpack.c.l.b16 %v3394
        %v3531 = vunpack.c.h.b16 %v3394
        %v3532 = vunpack.c.l.b16 %v3395
        %v3533 = vunpack.c.h.b16 %v3395
        %v3534 = vunpack.c.l.b16 %v3396
        %v3535 = vunpack.c.h.b16 %v3396
        %v3536 = vunpack.c.l.b16 %v3397
        %v3537 = vunpack.c.h.b16 %v3397
        %v3538 = vunpack.c.l.b16 %v3398
        %v3539 = vunpack.c.h.b16 %v3398
        %v3540 = vunpack.c.l.b16 %v3399
        %v3541 = vunpack.c.h.b16 %v3399
        %v3542 = vunpack.c.l.b16 %v3400
        %v3543 = vunpack.c.h.b16 %v3400
        %v3544 = vunpack.c.l.b16 %v3401
        %v3545 = vunpack.c.h.b16 %v3401
        %v3546 = vunpack.c.l.b16 %v3402
        %v3547 = vunpack.c.h.b16 %v3402
        %v3548 = vunpack.c.l.b16 %v3403
        %v3549 = vunpack.c.h.b16 %v3403
        %v3550 = vunpack.c.l.b16 %v3404
        %v3551 = vunpack.c.h.b16 %v3404
        %v3552 = vunpack.c.l.b16 %v3405
        %v3553 = vunpack.c.h.b16 %v3405
        %v3554 = vunpack.c.l.b16 %v3406
        %v3555 = vunpack.c.h.b16 %v3406
        %v3556 = vunpack.c.l.b16 %v3407
        %v3557 = vunpack.c.h.b16 %v3407
        %v3558 = vunpack.c.l.b16 %v3408
        %v3559 = vunpack.c.h.b16 %v3408
        %v3560 = vunpack.c.l.b16 %v3409
        %v3561 = vunpack.c.h.b16 %v3409
        %v3562 = vunpack.c.l.b16 %v3410
        %v3563 = vunpack.c.h.b16 %v3410
        %v3564 = vunpack.c.l.b16 %v3411
        %v3565 = vunpack.c.h.b16 %v3411
        %v3566 = vunpack.c.l.b16 %v3412
        %v3567 = vunpack.c.h.b16 %v3412
        %v3568 = vunpack.c.l.b16 %v3413
        %v3569 = vunpack.c.h.b16 %v3413
        %v3570 = vunpack.c.l.b16 %v3414
        %v3571 = vunpack.c.h.b16 %v3414
        %v3572 = vunpack.c.l.b16 %v3415
        %v3573 = vunpack.c.h.b16 %v3415
        %v3574 = vunpack.c.l.b16 %v3416
        %v3575 = vunpack.c.h.b16 %v3416
        %v3576 = vunpack.c.l.b16 %v3417
        %v3577 = vunpack.c.h.b16 %v3417
        %v3578 = vunpack.c.l.b16 %v3418
        %v3579 = vunpack.c.h.b16 %v3418
        %v3580 = vunpack.c.l.b16 %v3419
        %v3581 = vunpack.c.h.b16 %v3419
        %v3582 = vunpack.c.l.b16 %v3420
        %v3583 = vunpack.c.h.b16 %v3420
        %v3584 = vunpack.c.l.b16 %v3421
        %v3585 = vunpack.c.h.b16 %v3421
        %v3586 = vunpack.c.l.b16 %v3422
        %v3587 = vunpack.c.h.b16 %v3422
        %v3588 = vunpack.c.l.b16 %v3423
        %v3589 = vunpack.c.h.b16 %v3423
        %v3590 = vunpack.c.l.b16 %v3424
        %v3591 = vunpack.c.h.b16 %v3424
        %v3592 = vunpack.c.l.b16 %v3425
        %v3593 = vunpack.c.h.b16 %v3425
        %v3594 = vunpack.c.l.b16 %v3426
        %v3595 = vunpack.c.h.b16 %v3426
        %v3596 = vunpack.c.l.b16 %v3427
        %v3597 = vunpack.c.h.b16 %v3427
        %v3598 = vunpack.c.l.b16 %v3428
        %v3599 = vunpack.c.h.b16 %v3428
        %v3600 = vunpack.c.l.b16 %v3429
        %v3601 = vunpack.c.h.b16 %v3429
        %v3602 = vunpack.c.l.b16 %v3430
        %v3603 = vunpack.c.h.b16 %v3430
        %v3604 = vunpack.c.l.b16 %v3431
        %v3605 = vunpack.c.h.b16 %v3431
        %v3606 = vunpack.c.l.b16 %v3432
        %v3607 = vunpack.c.h.b16 %v3432
        %v3608 = vunpack.c.l.b16 %v3433
        %v3609 = vunpack.c.h.b16 %v3433
        %v3610 = vunpack.c.l.b16 %v3434
        %v3611 = vunpack.c.h.b16 %v3434
        %v3612 = vunpack.c.l.b16 %v3435
        %v3613 = vunpack.c.h.b16 %v3435
        %v3614 = vunpack.c.l.b16 %v3436
        %v3615 = vunpack.c.h.b16 %v3436
        %v3616 = vunpack.c.l.b16 %v3437
        %v3617 = vunpack.c.h.b16 %v3437
        %v3618 = vunpack.c.l.b16 %v3438
        %v3619 = vunpack.c.h.b16 %v3438
        %v3620 = vunpack.c.l.b16 %v3439
        %v3621 = vunpack.c.h.b16 %v3439
        %v3622 = vunpack.c.l.b16 %v3440
        %v3623 = vunpack.c.h.b16 %v3440
        %v3624 = vunpack.c.l.b16 %v3441
        %v3625 = vunpack.c.h.b16 %v3441
        %v3626 = vunpack.c.l.b16 %v3442
        %v3627 = vunpack.c.h.b16 %v3442
        %v3628 = vunpack.c.l.b16 %v3443
        %v3629 = vunpack.c.h.b16 %v3443
        %v3630 = vunpack.c.l.b16 %v3444
        %v3631 = vunpack.c.h.b16 %v3444
        %v3632 = vunpack.c.l.b16 %v3445
        %v3633 = vunpack.c.h.b16 %v3445
        %v3634 = vunpack.c.l.b16 %v3446
        %v3635 = vunpack.c.h.b16 %v3446
        %v3636 = vunpack.c.l.b16 %v3447
        %v3637 = vunpack.c.h.b16 %v3447
        %v3638 = vunpack.c.l.b16 %v3448
        %v3639 = vunpack.c.h.b16 %v3448
        %v3640 = vunpack.c.l.b16 %v3449
        %v3641 = vunpack.c.h.b16 %v3449
        %v3642 = vpack.c.b16 %v3516, %v3514
        %v3643 = vpack.c.b16 %v3517, %v3515
        %v3644 = vpack.c.b16 %v3520, %v3518
        %v3645 = vpack.c.b16 %v3521, %v3519
        %v3646 = vpack.c.b16 %v3524, %v3522
        %v3647 = vpack.c.b16 %v3525, %v3523
        %v3648 = vpack.c.b16 %v3528, %v3526
        %v3649 = vpack.c.b16 %v3529, %v3527
        %v3650 = vpack.c.b16 %v3532, %v3530
        %v3651 = vpack.c.b16 %v3533, %v3531
        %v3652 = vpack.c.b16 %v3536, %v3534
        %v3653 = vpack.c.b16 %v3537, %v3535
        %v3654 = vpack.c.b16 %v3540, %v3538
        %v3655 = vpack.c.b16 %v3541, %v3539
        %v3656 = vpack.c.b16 %v3544, %v3542
        %v3657 = vpack.c.b16 %v3545, %v3543
        %v3658 = vpack.c.b16 %v3548, %v3546
        %v3659 = vpack.c.b16 %v3549, %v3547
        %v3660 = vpack.c.b16 %v3552, %v3550
        %v3661 = vpack.c.b16 %v3553, %v3551
        %v3662 = vpack.c.b16 %v3556, %v3554
        %v3663 = vpack.c.b16 %v3557, %v3555
        %v3664 = vpack.c.b16 %v3560, %v3558
        %v3665 = vpack.c.b16 %v3561, %v3559
        %v3666 = vpack.c.b16 %v3564, %v3562
        %v3667 = vpack.c.b16 %v3565, %v3563
        %v3668 = vpack.c.b16 %v3568, %v3566
        %v3669 = vpack.c.b16 %v3569, %v3567
        %v3670 = vpack.c.b16 %v3572, %v3570
        %v3671 = vpack.c.b16 %v3573, %v3571
        %v3672 = vpack.c.b16 %v3576, %v3574
        %v3673 = vpack.c.b16 %v3577, %v3575
        %v3674 = vpack.c.b16 %v3580, %v3578
        %v3675 = vpack.c.b16 %v3581, %v3579
        %v3676 = vpack.c.b16 %v3584, %v3582
        %v3677 = vpack.c.b16 %v3585, %v3583
        %v3678 = vpack.c.b16 %v3588, %v3586
        %v3679 = vpack.c.b16 %v3589, %v3587
        %v3680 = vpack.c.b16 %v3592, %v3590
        %v3681 = vpack.c.b16 %v3593, %v3591
        %v3682 = vpack.c.b16 %v3596, %v3594
        %v3683 = vpack.c.b16 %v3597, %v3595
        %v3684 = vpack.c.b16 %v3600, %v3598
        %v3685 = vpack.c.b16 %v3601, %v3599
        %v3686 = vpack.c.b16 %v3604, %v3602
        %v3687 = vpack.c.b16 %v3605, %v3603
        %v3688 = vpack.c.b16 %v3608, %v3606
        %v3689 = vpack.c.b16 %v3609, %v3607
        %v3690 = vpack.c.b16 %v3612, %v3610
        %v3691 = vpack.c.b16 %v3613, %v3611
        %v3692 = vpack.c.b16 %v3616, %v3614
        %v3693 = vpack.c.b16 %v3617, %v3615
        %v3694 = vpack.c.b16 %v3620, %v3618
        %v3695 = vpack.c.b16 %v3621, %v3619
        %v3696 = vpack.c.b16 %v3624, %v3622
        %v3697 = vpack.c.b16 %v3625, %v3623
        %v3698 = vpack.c.b16 %v3628, %v3626
        %v3699 = vpack.c.b16 %v3629, %v3627
        %v3700 = vpack.c.b16 %v3632, %v3630
        %v3701 = vpack.c.b16 %v3633, %v3631
        %v3702 = vpack.c.b16 %v3636, %v3634
        %v3703 = vpack.c.b16 %v3637, %v3635
        %v3704 = vpack.c.b16 %v3640, %v3638
        %v3705 = vpack.c.b16 %v3641, %v3639
        %3770 = vmatprep.subr.bf16.mxu0 %v3657
        %3771 = vmatpush1.bf16.msra.mxu0 %v3656
        %3772 = vmatprep.subr.bf16.mxu0 %v3655
        %3773 = vmatpush1.bf16.msra.mxu0 %v3654
        %3774 = vmatprep.subr.bf16.mxu0 %v3653
        %3775 = vmatpush1.bf16.msra.mxu0 %v3652
        %3776 = vmatprep.subr.bf16.mxu0 %v3651
        %3777 = vmatpush1.bf16.msra.mxu0 %v3650
        %3778 = vmatprep.subr.bf16.mxu0 %v3649
        %3779 = vmatpush1.bf16.msra.mxu0 %v3648
        %3780 = vmatprep.subr.bf16.mxu0 %v3647
        %3781 = vmatpush1.bf16.msra.mxu0 %v3646
        %3782 = vmatprep.subr.bf16.mxu0 %v3645
        %3783 = vmatpush1.bf16.msra.mxu0 %v3644
        %3784 = vmatprep.subr.bf16.mxu0 %v3643
        %3785 = vmatpush1.bf16.msra.mxu0 %v3642
        %3786 = vmatprep.subr.bf16.mxu0 %v3673
        %3787 = vmatpush2.bf16.msra.mxu0 %v3672
        %3788 = vmatprep.subr.bf16.mxu0 %v3671
        %3789 = vmatpush2.bf16.msra.mxu0 %v3670
        %3790 = vmatprep.subr.bf16.mxu0 %v3669
        %3791 = vmatpush2.bf16.msra.mxu0 %v3668
        %3792 = vmatprep.subr.bf16.mxu0 %v3667
        %3793 = vmatpush2.bf16.msra.mxu0 %v3666
        %3794 = vmatprep.subr.bf16.mxu0 %v3665
        %3795 = vmatpush2.bf16.msra.mxu0 %v3664
        %3796 = vmatprep.subr.bf16.mxu0 %v3663
        %3797 = vmatpush2.bf16.msra.mxu0 %v3662
        %3798 = vmatprep.subr.bf16.mxu0 %v3661
        %3799 = vmatpush2.bf16.msra.mxu0 %v3660
        %3800 = vmatprep.subr.bf16.mxu0 %v3659
        %3801 = vmatpush2.bf16.msra.mxu0 %v3658
        %3802 = vmatprep.mubr.bf16.mxu0 %v3383
        %3803 = vmatmul.mubr.bf16.gmra.mxu0 %v3382
        %v3804 = vpop.f32.mrf.mxu0
        %v3805 = vadd.f32 %v2898, %v3804
        %v3806 = vpop.f32.mrf.mxu0
        %v3807 = vadd.f32 %v2899, %v3806
        %v3808 = vpop.f32.mrf.mxu0
        %v3809 = vadd.f32 %v2900, %v3808
        %v3810 = vpop.f32.mrf.mxu0
        %v3811 = vadd.f32 %v2901, %v3810
        %3812 = vdwg.mxu0
        %3813 = vmatprep.subr.bf16.mxu0 %v3689
        %3814 = vmatpush1.bf16.msra.mxu0 %v3688
        %3815 = vmatprep.subr.bf16.mxu0 %v3687
        %3816 = vmatpush1.bf16.msra.mxu0 %v3686
        %3817 = vmatprep.subr.bf16.mxu0 %v3685
        %3818 = vmatpush1.bf16.msra.mxu0 %v3684
        %3819 = vmatprep.subr.bf16.mxu0 %v3683
        %3820 = vmatpush1.bf16.msra.mxu0 %v3682
        %3821 = vmatprep.subr.bf16.mxu0 %v3681
        %3822 = vmatpush1.bf16.msra.mxu0 %v3680
        %3823 = vmatprep.subr.bf16.mxu0 %v3679
        %3824 = vmatpush1.bf16.msra.mxu0 %v3678
        %3825 = vmatprep.subr.bf16.mxu0 %v3677
        %3826 = vmatpush1.bf16.msra.mxu0 %v3676
        %3827 = vmatprep.subr.bf16.mxu0 %v3675
        %3828 = vmatpush1.bf16.msra.mxu0 %v3674
        %3829 = vmatprep.subr.bf16.mxu0 %v3705
        %3830 = vmatpush2.bf16.msra.mxu0 %v3704
        %3831 = vmatprep.subr.bf16.mxu0 %v3703
        %3832 = vmatpush2.bf16.msra.mxu0 %v3702
        %3833 = vmatprep.subr.bf16.mxu0 %v3701
        %3834 = vmatpush2.bf16.msra.mxu0 %v3700
        %3835 = vmatprep.subr.bf16.mxu0 %v3699
        %3836 = vmatpush2.bf16.msra.mxu0 %v3698
        %3837 = vmatprep.subr.bf16.mxu0 %v3697
        %3838 = vmatpush2.bf16.msra.mxu0 %v3696
        %3839 = vmatprep.subr.bf16.mxu0 %v3695
        %3840 = vmatpush2.bf16.msra.mxu0 %v3694
        %3841 = vmatprep.subr.bf16.mxu0 %v3693
        %3842 = vmatpush2.bf16.msra.mxu0 %v3692
        %3843 = vmatprep.subr.bf16.mxu0 %v3691
        %3844 = vmatpush2.bf16.msra.mxu0 %v3690
        %3845 = vmatprep.mubr.bf16.mxu0 %v3385
        %3846 = vmatmul.mubr.bf16.gmra.mxu0 %v3384
        %v3847 = vpop.f32.mrf.mxu0
        %v3848 = vadd.f32 %v3805, %v3847
        %v3849 = vpop.f32.mrf.mxu0
        %v3850 = vadd.f32 %v3807, %v3849
        %v3851 = vpop.f32.mrf.mxu0
        %v3852 = vadd.f32 %v3809, %v3851
        %v3853 = vpop.f32.mrf.mxu0
        %v3854 = vadd.f32 %v3811, %v3853
        %3855 = vdwg.mxu0
        %v3856 = vld [vmem:[%s1010] sm:$0x3]
        %v3857 = vld [vmem:[%s1019] sm:$0x3]
        %v3858 = vadd.f32 %v3848, %v3850
        %3859 = vadd.xlane.f32.xlu0 %v3858
        %v3860 = vpop.xlane.xlu0 %3859
        %vm3861 = vcmask 1041408
        %v3862 = vsel %vm3861, %v3852, 0.0
        %v3863 = vsel %vm3861, %v3854, 0.0
        %v3864 = vadd.f32 %v3862, %v3863
        %3865 = vadd.xlane.f32.xlu0 %v3864
        %v3866 = vpop.xlane.xlu0 %3865
        %v3867 = vrcp.pop 256.0
        %v3868 = vmul.f32 %v3860, %v3867
        %v3869 = vmul.f32 %v3866, %v3867
        %v3870 = vsub.f32 %v3848, %v3868
        %v3871 = vsub.f32 %v3850, %v3868
        %v3872 = vsub.f32 %v3852, %v3869
        %v3873 = vsub.f32 %v3854, %v3869
        %v3874 = vmul.f32 %v3870, %v3870
        %v3875 = vmul.f32 %v3871, %v3871
        %v3876 = vmul.f32 %v3872, %v3872
        %v3877 = vmul.f32 %v3873, %v3873
        %v3878 = vadd.f32 %v3874, %v3875
        %3879 = vadd.xlane.f32.xlu0 %v3878
        %v3880 = vpop.xlane.xlu0 %3879
        %v3881 = vsel %vm3861, %v3876, 0.0
        %v3882 = vsel %vm3861, %v3877, 0.0
        %v3883 = vadd.f32 %v3881, %v3882
        %3884 = vadd.xlane.f32.xlu0 %v3883
        %v3885 = vpop.xlane.xlu0 %3884
        %v3886 = vmul.f32 %v3880, %v3867
        %v3887 = vmul.f32 %v3885, %v3867
        %v3888 = vadd.f32 %v3886, 1e-05
        %v3889 = vadd.f32 %v3887, 1e-05
        %v3890 = vrsqrt.pop %v3888
        %v3891 = vrsqrt.pop %v3889
        %v3892 = vmul.f32 %v3870, %v3890
        %v3893 = vmul.f32 %v3871, %v3890
        %v3894 = vmul.f32 %v3872, %v3891
        %v3895 = vmul.f32 %v3873, %v3891
        %v3897 = vlaneseq
        %v3898 = vshrl.u32 %v3897, 7
        %v3899 = vsub.s32 0, %v3898
        %v3900 = vrot.slane %v3856, %v3899
        %v3901 = vlaneseq
        %v3902 = vshrl.u32 %v3901, 7
        %v3903 = vsub.s32 1, %v3902
        %v3904 = vrot.slane %v3856, %v3903
        %v3907 = vmul.f32 %v3892, %v3900
        %v3908 = vmul.f32 %v3893, %v3904
        %v3909 = vmul.f32 %v3894, %v3900
        %v3910 = vmul.f32 %v3895, %v3904
        %v3912 = vlaneseq
        %v3913 = vshrl.u32 %v3912, 7
        %v3914 = vsub.s32 0, %v3913
        %v3915 = vrot.slane %v3857, %v3914
        %v3916 = vlaneseq
        %v3917 = vshrl.u32 %v3916, 7
        %v3918 = vsub.s32 1, %v3917
        %v3919 = vrot.slane %v3857, %v3918
        %v3922 = vadd.f32 %v3907, %v3915
        %v3923 = vadd.f32 %v3908, %v3919
        %v3924 = vadd.f32 %v3909, %v3915
        %v3925 = vadd.f32 %v3910, %v3919
        %3926 = vst [vmem:[%s24] sm:$0xff] %v3922
        %3927 = vst [vmem:[%s24 + $0x8] sm:$0xff] %v3923
        %3928 = vst [vmem:[%s24 + $0x10] sm:$0x3] %v3924
        %3929 = vst [vmem:[%s24 + $0x18] sm:$0x3] %v3925
        %p3930 = scmp.eq.s32.totalorder %s42, 1
        // Predicated region
        $region181: #{vl_encoders_forward.1} parent=115 // pred_check
          %p3931 = pneg %p3930
        $region182: #{vl_encoders_forward.1} parent=115 // pred_check_branch
          %3933 = sbr.rel (%p3931) target = $region184
        $region183: #{vl_encoders_forward.1} parent=115 // pred_region
          %v3936 = vrot.slane %v3922, 4
          %v3937 = vrot.slane %v3923, 4
          %vm3940 = vcmask 1040384
          %v3941 = vsel %vm3940, %v3922, %v3936
          %v3942 = vsel %vm3940, %v3923, %v3937
          %v3943 = vpack.c.bf16 %v3941, %v3941
          %v3944 = vpack.c.bf16 %v3942, %v3942
          %v3945 = vld [vmem:[%s20] sm:$0xff]
          %v3946 = vld [vmem:[%s20 + $0x8] sm:$0xff]
          %v3947 = vld [vmem:[%s20 + $0x10] sm:$0xff]
          %v3948 = vld [vmem:[%s20 + $0x18] sm:$0xff]
          %v3949 = vld [vmem:[%s20 + $0x20] sm:$0xff]
          %v3950 = vld [vmem:[%s20 + $0x28] sm:$0xff]
          %v3951 = vld [vmem:[%s20 + $0x30] sm:$0xff]
          %v3952 = vld [vmem:[%s20 + $0x38] sm:$0xff]
          %v3953 = vld [vmem:[%s20 + $0x40] sm:$0xff]
          %v3954 = vld [vmem:[%s20 + $0x48] sm:$0xff]
          %v3955 = vld [vmem:[%s20 + $0x50] sm:$0xff]
          %v3956 = vld [vmem:[%s20 + $0x58] sm:$0xff]
          %v3957 = vld [vmem:[%s20 + $0x60] sm:$0xff]
          %v3958 = vld [vmem:[%s20 + $0x68] sm:$0xff]
          %v3959 = vld [vmem:[%s20 + $0x70] sm:$0xff]
          %v3960 = vld [vmem:[%s20 + $0x78] sm:$0xff]
          %v3961 = vld [vmem:[%s20 + $0x80] sm:$0xff]
          %v3962 = vld [vmem:[%s20 + $0x88] sm:$0xff]
          %v3963 = vld [vmem:[%s20 + $0x90] sm:$0xff]
          %v3964 = vld [vmem:[%s20 + $0x98] sm:$0xff]
          %v3965 = vld [vmem:[%s20 + $0xa0] sm:$0xff]
          %v3966 = vld [vmem:[%s20 + $0xa8] sm:$0xff]
          %v3967 = vld [vmem:[%s20 + $0xb0] sm:$0xff]
          %v3968 = vld [vmem:[%s20 + $0xb8] sm:$0xff]
          %v3969 = vld [vmem:[%s20 + $0xc0] sm:$0xff]
          %v3970 = vld [vmem:[%s20 + $0xc8] sm:$0xff]
          %v3971 = vld [vmem:[%s20 + $0xd0] sm:$0xff]
          %v3972 = vld [vmem:[%s20 + $0xd8] sm:$0xff]
          %v3973 = vld [vmem:[%s20 + $0xe0] sm:$0xff]
          %v3974 = vld [vmem:[%s20 + $0xe8] sm:$0xff]
          %v3975 = vld [vmem:[%s20 + $0xf0] sm:$0xff]
          %v3976 = vld [vmem:[%s20 + $0xf8] sm:$0xff]
          %v3977 = vld [vmem:[#allocation19] sm:$0x3]
          %v3979 = vlaneseq
          %v3980 = vshrl.u32 %v3979, 7
          %v3981 = vsub.s32 0, %v3980
          %v3982 = vrot.slane %v3977, %v3981
          %v3983 = vlaneseq
          %v3984 = vshrl.u32 %v3983, 7
          %v3985 = vsub.s32 1, %v3984
          %v3986 = vrot.slane %v3977, %v3985
          %v4021 = vunpack.c.l.b16 %v3945
          %v4022 = vunpack.c.h.b16 %v3945
          %v4023 = vunpack.c.l.b16 %v3946
          %v4024 = vunpack.c.h.b16 %v3946
          %v4025 = vunpack.c.l.b16 %v3947
          %v4026 = vunpack.c.h.b16 %v3947
          %v4027 = vunpack.c.l.b16 %v3948
          %v4028 = vunpack.c.h.b16 %v3948
          %v4029 = vunpack.c.l.b16 %v3949
          %v4030 = vunpack.c.h.b16 %v3949
          %v4031 = vunpack.c.l.b16 %v3950
          %v4032 = vunpack.c.h.b16 %v3950
          %v4033 = vunpack.c.l.b16 %v3951
          %v4034 = vunpack.c.h.b16 %v3951
          %v4035 = vunpack.c.l.b16 %v3952
          %v4036 = vunpack.c.h.b16 %v3952
          %v4037 = vunpack.c.l.b16 %v3953
          %v4038 = vunpack.c.h.b16 %v3953
          %v4039 = vunpack.c.l.b16 %v3954
          %v4040 = vunpack.c.h.b16 %v3954
          %v4041 = vunpack.c.l.b16 %v3955
          %v4042 = vunpack.c.h.b16 %v3955
          %v4043 = vunpack.c.l.b16 %v3956
          %v4044 = vunpack.c.h.b16 %v3956
          %v4045 = vunpack.c.l.b16 %v3957
          %v4046 = vunpack.c.h.b16 %v3957
          %v4047 = vunpack.c.l.b16 %v3958
          %v4048 = vunpack.c.h.b16 %v3958
          %v4049 = vunpack.c.l.b16 %v3959
          %v4050 = vunpack.c.h.b16 %v3959
          %v4051 = vunpack.c.l.b16 %v3960
          %v4052 = vunpack.c.h.b16 %v3960
          %v4053 = vunpack.c.l.b16 %v3961
          %v4054 = vunpack.c.h.b16 %v3961
          %v4055 = vunpack.c.l.b16 %v3962
          %v4056 = vunpack.c.h.b16 %v3962
          %v4057 = vunpack.c.l.b16 %v3963
          %v4058 = vunpack.c.h.b16 %v3963
          %v4059 = vunpack.c.l.b16 %v3964
          %v4060 = vunpack.c.h.b16 %v3964
          %v4061 = vunpack.c.l.b16 %v3965
          %v4062 = vunpack.c.h.b16 %v3965
          %v4063 = vunpack.c.l.b16 %v3966
          %v4064 = vunpack.c.h.b16 %v3966
          %v4065 = vunpack.c.l.b16 %v3967
          %v4066 = vunpack.c.h.b16 %v3967
          %v4067 = vunpack.c.l.b16 %v3968
          %v4068 = vunpack.c.h.b16 %v3968
          %v4069 = vunpack.c.l.b16 %v3969
          %v4070 = vunpack.c.h.b16 %v3969
          %v4071 = vunpack.c.l.b16 %v3970
          %v4072 = vunpack.c.h.b16 %v3970
          %v4073 = vunpack.c.l.b16 %v3971
          %v4074 = vunpack.c.h.b16 %v3971
          %v4075 = vunpack.c.l.b16 %v3972
          %v4076 = vunpack.c.h.b16 %v3972
          %v4077 = vunpack.c.l.b16 %v3973
          %v4078 = vunpack.c.h.b16 %v3973
          %v4079 = vunpack.c.l.b16 %v3974
          %v4080 = vunpack.c.h.b16 %v3974
          %v4081 = vunpack.c.l.b16 %v3975
          %v4082 = vunpack.c.h.b16 %v3975
          %v4083 = vunpack.c.l.b16 %v3976
          %v4084 = vunpack.c.h.b16 %v3976
          %v4085 = vpack.c.b16 %v4023, %v4021
          %v4086 = vpack.c.b16 %v4024, %v4022
          %v4087 = vpack.c.b16 %v4027, %v4025
          %v4088 = vpack.c.b16 %v4028, %v4026
          %v4089 = vpack.c.b16 %v4031, %v4029
          %v4090 = vpack.c.b16 %v4032, %v4030
          %v4091 = vpack.c.b16 %v4035, %v4033
          %v4092 = vpack.c.b16 %v4036, %v4034
          %v4093 = vpack.c.b16 %v4039, %v4037
          %v4094 = vpack.c.b16 %v4040, %v4038
          %v4095 = vpack.c.b16 %v4043, %v4041
          %v4096 = vpack.c.b16 %v4044, %v4042
          %v4097 = vpack.c.b16 %v4047, %v4045
          %v4098 = vpack.c.b16 %v4048, %v4046
          %v4099 = vpack.c.b16 %v4051, %v4049
          %v4100 = vpack.c.b16 %v4052, %v4050
          %v4101 = vpack.c.b16 %v4055, %v4053
          %v4102 = vpack.c.b16 %v4056, %v4054
          %v4103 = vpack.c.b16 %v4059, %v4057
          %v4104 = vpack.c.b16 %v4060, %v4058
          %v4105 = vpack.c.b16 %v4063, %v4061
          %v4106 = vpack.c.b16 %v4064, %v4062
          %v4107 = vpack.c.b16 %v4067, %v4065
          %v4108 = vpack.c.b16 %v4068, %v4066
          %v4109 = vpack.c.b16 %v4071, %v4069
          %v4110 = vpack.c.b16 %v4072, %v4070
          %v4111 = vpack.c.b16 %v4075, %v4073
          %v4112 = vpack.c.b16 %v4076, %v4074
          %v4113 = vpack.c.b16 %v4079, %v4077
          %v4114 = vpack.c.b16 %v4080, %v4078
          %v4115 = vpack.c.b16 %v4083, %v4081
          %v4116 = vpack.c.b16 %v4084, %v4082
          %4149 = vmatprep.subr.bf16.mxu0 %v4100
          %4150 = vmatpush1.bf16.msra.mxu0 %v4099
          %4151 = vmatprep.subr.bf16.mxu0 %v4098
          %4152 = vmatpush1.bf16.msra.mxu0 %v4097
          %4153 = vmatprep.subr.bf16.mxu0 %v4096
          %4154 = vmatpush1.bf16.msra.mxu0 %v4095
          %4155 = vmatprep.subr.bf16.mxu0 %v4094
          %4156 = vmatpush1.bf16.msra.mxu0 %v4093
          %4157 = vmatprep.subr.bf16.mxu0 %v4092
          %4158 = vmatpush1.bf16.msra.mxu0 %v4091
          %4159 = vmatprep.subr.bf16.mxu0 %v4090
          %4160 = vmatpush1.bf16.msra.mxu0 %v4089
          %4161 = vmatprep.subr.bf16.mxu0 %v4088
          %4162 = vmatpush1.bf16.msra.mxu0 %v4087
          %4163 = vmatprep.subr.bf16.mxu0 %v4086
          %4164 = vmatpush1.bf16.msra.mxu0 %v4085
          %4165 = vmatprep.subr.bf16.mxu0 %v4116
          %4166 = vmatpush2.bf16.msra.mxu0 %v4115
          %4167 = vmatprep.subr.bf16.mxu0 %v4114
          %4168 = vmatpush2.bf16.msra.mxu0 %v4113
          %4169 = vmatprep.subr.bf16.mxu0 %v4112
          %4170 = vmatpush2.bf16.msra.mxu0 %v4111
          %4171 = vmatprep.subr.bf16.mxu0 %v4110
          %4172 = vmatpush2.bf16.msra.mxu0 %v4109
          %4173 = vmatprep.subr.bf16.mxu0 %v4108
          %4174 = vmatpush2.bf16.msra.mxu0 %v4107
          %4175 = vmatprep.subr.bf16.mxu0 %v4106
          %4176 = vmatpush2.bf16.msra.mxu0 %v4105
          %4177 = vmatprep.subr.bf16.mxu0 %v4104
          %4178 = vmatpush2.bf16.msra.mxu0 %v4103
          %4179 = vmatprep.subr.bf16.mxu0 %v4102
          %4180 = vmatpush2.bf16.msra.mxu0 %v4101
          %4181 = vmatprep.mubr.bf16.mxu0 %v3944
          %4182 = vmatmul.mubr.bf16.gmra.mxu0 %v3943
          %v4183 = vpop.f32.mrf.mxu0
          %v4184 = vadd.f32 %v3982, %v4183
          %v4185 = vpop.f32.mrf.mxu0
          %v4186 = vadd.f32 %v3986, %v4185
          %v4187 = vpop.f32.mrf.mxu0
          %v4188 = vpop.f32.mrf.mxu0
          %4189 = vdwg.mxu0
          %v4190 = vtanh.pop %v4184
          %v4191 = vtanh.pop %v4186
          %v4192 = vpack.c.bf16 %v4190, %v4190
          %v4193 = vpack.c.bf16 %v4191, %v4191
          %v4194 = vld [vmem:[#allocation20] sm:$0xf]
          %v4195 = vld [vmem:[#allocation20 + $0x4] sm:$0xf]
          %v4196 = vld [vmem:[#allocation20 + $0x8] sm:$0xf]
          %v4197 = vld [vmem:[#allocation20 + $0xc] sm:$0xf]
          %v4198 = vld [vmem:[#allocation20 + $0x10] sm:$0xf]
          %v4199 = vld [vmem:[#allocation20 + $0x14] sm:$0xf]
          %v4200 = vld [vmem:[#allocation20 + $0x18] sm:$0xf]
          %v4201 = vld [vmem:[#allocation20 + $0x1c] sm:$0xf]
          %v4202 = vld [vmem:[#allocation20 + $0x20] sm:$0xf]
          %v4203 = vld [vmem:[#allocation20 + $0x24] sm:$0xf]
          %v4204 = vld [vmem:[#allocation20 + $0x28] sm:$0xf]
          %v4205 = vld [vmem:[#allocation20 + $0x2c] sm:$0xf]
          %v4206 = vld [vmem:[#allocation20 + $0x30] sm:$0xf]
          %v4207 = vld [vmem:[#allocation20 + $0x34] sm:$0xf]
          %v4208 = vld [vmem:[#allocation20 + $0x38] sm:$0xf]
          %v4209 = vld [vmem:[#allocation20 + $0x3c] sm:$0xf]
          %v4210 = vld [vmem:[#allocation20 + $0x40] sm:$0xf]
          %v4211 = vld [vmem:[#allocation20 + $0x44] sm:$0xf]
          %v4212 = vld [vmem:[#allocation20 + $0x48] sm:$0xf]
          %v4213 = vld [vmem:[#allocation20 + $0x4c] sm:$0xf]
          %v4214 = vld [vmem:[#allocation20 + $0x50] sm:$0xf]
          %v4215 = vld [vmem:[#allocation20 + $0x54] sm:$0xf]
          %v4216 = vld [vmem:[#allocation20 + $0x58] sm:$0xf]
          %v4217 = vld [vmem:[#allocation20 + $0x5c] sm:$0xf]
          %v4218 = vld [vmem:[#allocation20 + $0x60] sm:$0xf]
          %v4219 = vld [vmem:[#allocation20 + $0x64] sm:$0xf]
          %v4220 = vld [vmem:[#allocation20 + $0x68] sm:$0xf]
          %v4221 = vld [vmem:[#allocation20 + $0x6c] sm:$0xf]
          %v4222 = vld [vmem:[#allocation20 + $0x70] sm:$0xf]
          %v4223 = vld [vmem:[#allocation20 + $0x74] sm:$0xf]
          %v4224 = vld [vmem:[#allocation20 + $0x78] sm:$0xf]
          %v4225 = vld [vmem:[#allocation20 + $0x7c] sm:$0xf]
          %v4226 = vld [vmem:[#allocation21] sm:$0x1]
          %v4228 = vlaneseq
          %v4229 = vshrl.u32 %v4228, 7
          %v4230 = vsub.s32 0, %v4229
          %v4231 = vrot.slane %v4226, %v4230
          %v4265 = vunpack.c.l.b16 %v4194
          %v4266 = vunpack.c.l.b16 %v4195
          %v4267 = vunpack.c.l.b16 %v4196
          %v4268 = vunpack.c.l.b16 %v4197
          %v4269 = vunpack.c.l.b16 %v4198
          %v4270 = vunpack.c.l.b16 %v4199
          %v4271 = vunpack.c.l.b16 %v4200
          %v4272 = vunpack.c.l.b16 %v4201
          %v4273 = vunpack.c.l.b16 %v4202
          %v4274 = vunpack.c.l.b16 %v4203
          %v4275 = vunpack.c.l.b16 %v4204
          %v4276 = vunpack.c.l.b16 %v4205
          %v4277 = vunpack.c.l.b16 %v4206
          %v4278 = vunpack.c.l.b16 %v4207
          %v4279 = vunpack.c.l.b16 %v4208
          %v4280 = vunpack.c.l.b16 %v4209
          %v4281 = vunpack.c.l.b16 %v4210
          %v4282 = vunpack.c.l.b16 %v4211
          %v4283 = vunpack.c.l.b16 %v4212
          %v4284 = vunpack.c.l.b16 %v4213
          %v4285 = vunpack.c.l.b16 %v4214
          %v4286 = vunpack.c.l.b16 %v4215
          %v4287 = vunpack.c.l.b16 %v4216
          %v4288 = vunpack.c.l.b16 %v4217
          %v4289 = vunpack.c.l.b16 %v4218
          %v4290 = vunpack.c.l.b16 %v4219
          %v4291 = vunpack.c.l.b16 %v4220
          %v4292 = vunpack.c.l.b16 %v4221
          %v4293 = vunpack.c.l.b16 %v4222
          %v4294 = vunpack.c.l.b16 %v4223
          %v4295 = vunpack.c.l.b16 %v4224
          %v4296 = vunpack.c.l.b16 %v4225
          %v4297 = vpack.c.b16 %v4266, %v4265
          %v4298 = vpack.c.b16 %v4268, %v4267
          %v4299 = vpack.c.b16 %v4270, %v4269
          %v4300 = vpack.c.b16 %v4272, %v4271
          %v4301 = vpack.c.b16 %v4274, %v4273
          %v4302 = vpack.c.b16 %v4276, %v4275
          %v4303 = vpack.c.b16 %v4278, %v4277
          %v4304 = vpack.c.b16 %v4280, %v4279
          %v4305 = vpack.c.b16 %v4282, %v4281
          %v4306 = vpack.c.b16 %v4284, %v4283
          %v4307 = vpack.c.b16 %v4286, %v4285
          %v4308 = vpack.c.b16 %v4288, %v4287
          %v4309 = vpack.c.b16 %v4290, %v4289
          %v4310 = vpack.c.b16 %v4292, %v4291
          %v4311 = vpack.c.b16 %v4294, %v4293
          %v4312 = vpack.c.b16 %v4296, %v4295
          %4329 = vmatprep.subr.bf16.mxu0 0
          %4330 = vmatpush1.bf16.msra.mxu0 %v4304
          %4331 = vmatprep.subr.bf16.mxu0 0
          %4332 = vmatpush1.bf16.msra.mxu0 %v4303
          %4333 = vmatprep.subr.bf16.mxu0 0
          %4334 = vmatpush1.bf16.msra.mxu0 %v4302
          %4335 = vmatprep.subr.bf16.mxu0 0
          %4336 = vmatpush1.bf16.msra.mxu0 %v4301
          %4337 = vmatprep.subr.bf16.mxu0 0
          %4338 = vmatpush1.bf16.msra.mxu0 %v4300
          %4339 = vmatprep.subr.bf16.mxu0 0
          %4340 = vmatpush1.bf16.msra.mxu0 %v4299
          %4341 = vmatprep.subr.bf16.mxu0 0
          %4342 = vmatpush1.bf16.msra.mxu0 %v4298
          %4343 = vmatprep.subr.bf16.mxu0 0
          %4344 = vmatpush1.bf16.msra.mxu0 %v4297
          %4345 = vmatprep.subr.bf16.mxu0 0
          %4346 = vmatpush2.bf16.msra.mxu0 %v4312
          %4347 = vmatprep.subr.bf16.mxu0 0
          %4348 = vmatpush2.bf16.msra.mxu0 %v4311
          %4349 = vmatprep.subr.bf16.mxu0 0
          %4350 = vmatpush2.bf16.msra.mxu0 %v4310
          %4351 = vmatprep.subr.bf16.mxu0 0
          %4352 = vmatpush2.bf16.msra.mxu0 %v4309
          %4353 = vmatprep.subr.bf16.mxu0 0
          %4354 = vmatpush2.bf16.msra.mxu0 %v4308
          %4355 = vmatprep.subr.bf16.mxu0 0
          %4356 = vmatpush2.bf16.msra.mxu0 %v4307
          %4357 = vmatprep.subr.bf16.mxu0 0
          %4358 = vmatpush2.bf16.msra.mxu0 %v4306
          %4359 = vmatprep.subr.bf16.mxu0 0
          %4360 = vmatpush2.bf16.msra.mxu0 %v4305
          %4361 = vmatprep.mubr.bf16.mxu0 %v4193
          %4362 = vmatmul.mubr.bf16.gmra.mxu0 %v4192
          %v4363 = vpop.f32.mrf.mxu0
          %v4364 = vadd.f32 %v4231, %v4363
          %v4365 = vpop.f32.mrf.mxu0
          %v4366 = vpop.f32.mrf.mxu0
          %v4367 = vpop.f32.mrf.mxu0
          %4368 = vdwg.mxu0
          %4369 = vst [vmem:[#allocation23] sm:$0x3] %v4364
        $region184: #{vl_encoders_forward.1} parent=115 // pred_fallthru
          _
        // Predicated region
        $region185: #{vl_encoders_forward.1} parent=115 // pred_check
          %p4370 = pneg %p609
        $region186: #{vl_encoders_forward.1} parent=115 // pred_check_branch
          %4372 = sbr.rel (%p4370) target = $region188
        $region187: #{vl_encoders_forward.1} parent=115 // pred_region
          _
        $region188: #{vl_encoders_forward.1} parent=115 // pred_fallthru
          _
        // Predicated region
        $region189: #{vl_encoders_forward.1} parent=115 // pred_check
          %p4373 = pneg %p630
        $region190: #{vl_encoders_forward.1} parent=115 // pred_check_branch
          %4375 = sbr.rel (%p4373) target = $region192
        $region191: #{vl_encoders_forward.1} parent=115 // pred_region
          %s4377 = ssub.s32 32, 32
          %4378 = vsyncadd [#allocation5], %s4377
          %s4380 = sshll.u32 [#allocation23], 4
          %s4381 = int_to_ptr.vmem [resolvable:$true] %s4380
          %4383 = dma.vmem_to_hbm [thread:$0]  %s4381, 32, %s25, [#allocation5]
        $region192: #{vl_encoders_forward.1} parent=115 // pred_fallthru
          _
        // Predicated region
        $region193: #{vl_encoders_forward.1} parent=115 // pred_check
          %p4384 = pneg %p609
        $region194: #{vl_encoders_forward.1} parent=115 // pred_check_branch
          %4386 = sbr.rel (%p4384) target = $region196
        $region195: #{vl_encoders_forward.1} parent=115 // pred_region
          _
        $region196: #{vl_encoders_forward.1} parent=115 // pred_fallthru
          _
        // Predicated region
        $region197: #{vl_encoders_forward.1} parent=115 // pred_check
          %p4387 = pneg %p630
        $region198: #{vl_encoders_forward.1} parent=115 // pred_check_branch
          %4389 = sbr.rel (%p4387) target = $region200
        $region199: #{vl_encoders_forward.1} parent=115 // pred_region
          %4390 = dma.done [#allocation5], 32
        $region200: #{vl_encoders_forward.1} parent=115 // pred_fallthru
          _
      $region116: #{vl_encoders_forward.1} parent=5 // pred_fallthru
        _
      %p4391 = scmp.le.s32.totalorder 2, %s37
      // Predicated region
      $region201: #{vl_encoders_forward.1} parent=5 // pred_check
        %p4392 = pneg %p4391
      $region202: #{vl_encoders_forward.1} parent=5 // pred_check_branch
        %4394 = sbr.rel (%p4392) target = $region204
      $region203: #{vl_encoders_forward.1} parent=5 // pred_region
        %s4395 = ssub.s32 %s37, 2
      $region204: #{vl_encoders_forward.1} parent=5 // pred_fallthru
        _
    $region6: #{vl_encoders_forward.1} parent=1 // loop_footer
      %s41 = sadd.s32 1, %s37
    $region7: #{vl_encoders_forward.1} parent=1 // loop_footer_branch
      %36 = sbr.rel target = $region3
    $region8: #{vl_encoders_forward.1} parent=1 // loop_exit
      _
    %4396 = vsyncpa [#allocation4], 1
    %s4397 = scalar_lea.sflag [#allocation4], 1
    %4398 = vsyncpa %s4397, 1
    %4399 = vsyncpa [#allocation7], 1
    %4400 = vsyncpa [#allocation10], 1
    %4401 = vsyncpa [#allocation22], 1
    %4402 = vsyncpa [#allocation5], 1
    %s4403 = scalar_lea.sflag [#allocation5], 1
    %4404 = vsyncpa %s4403, 1

</llo_original>
